<compile_context>
chip_gen: v6e
topology: v6e:2x2x1
jax: 0.10.0
libtpu: 0.0.40
codegen_flags: <defaults>
</compile_context>

<pallas_src>
import jax
import jax.numpy as jnp
from jax import lax
from jax.experimental import pallas as pl
from jax.experimental.pallas import tpu as pltpu


_VMEM = pl.BlockSpec(memory_space=pltpu.MemorySpace.VMEM)


def _round_up(x, m):
    return ((x + m - 1) // m) * m


# ----------------------------- fused Pallas kernel ---------------------------

def _make_fused_lstm_kernel(*, seq, B, H, in_dim, num_layers):
    """Builds the fused kernel body (all LSTM layers + MLP head, no grid)."""
    n_lstm = 3 * num_layers

    def kernel(*refs):
        x_ref = refs[0]                                    # (seq*B, in_dim) time-major
        lstm_refs = refs[1:1 + n_lstm]                     # (wih, whh, bias) per layer
        w1_ref, b1_ref, w2_ref, b2_ref = refs[1 + n_lstm:1 + n_lstm + 4]
        out_ref = refs[1 + n_lstm + 4]                     # (num_layers*B, C_pad)
        (xproj_scr,   # (seq*B, 4H)       hoisted input projection (current layer)
         hseq_scr,    # (seq*B, H)        hidden sequence of current layer
         hn_scr,      # (num_layers*B, H) final hidden state of each layer
         h_scr,       # (B, H)            recurrent hidden state
         c_scr) = refs[1 + n_lstm + 5:]                    # (B, H) recurrent cell state

        for l in range(num_layers):
            wih_ref = lstm_refs[3 * l]
            whh_ref = lstm_refs[3 * l + 1]
            b_ref = lstm_refs[3 * l + 2]
            last_layer = (l == num_layers - 1)

            # ---- hoisted input projection: one MXU matmul per layer ----
            if l == 0:
                xin = x_ref[...]                           # (seq*B, in_dim)
            else:
                xin = hseq_scr[...]                        # (seq*B, H)
            xproj_scr[...] = (jnp.dot(xin, wih_ref[...],
                                      preferred_element_type=jnp.float32)
                              + b_ref[...])

            # zero initial state (h_0 = c_0 = 0, as in the PyTorch module)
            h_scr[...] = jnp.zeros_like(h_scr)
            c_scr[...] = jnp.zeros_like(c_scr)

            def step(t, carry):
                row = pl.multiple_of(t * B, B)
                gates = xproj_scr[pl.ds(row, B), :] + jnp.dot(
                    h_scr[...], whh_ref[...],
                    preferred_element_type=jnp.float32)    # (B, 4H)
                # Single full-vreg sigmoid for all 4 gates; the g block's
                # weights/bias were pre-scaled by 2 so tanh(x) = 2*sigmoid(2x)-1.
                s = jax.nn.sigmoid(gates)
                i_g = s[:, 0 * H:1 * H]
                f_g = s[:, 1 * H:2 * H]
                g_g = 2.0 * s[:, 2 * H:3 * H] - 1.0
                o_g = s[:, 3 * H:4 * H]
                c_new = f_g * c_scr[...] + i_g * g_g
                h_new = o_g * jnp.tanh(c_new)
                c_scr[...] = c_new
                h_scr[...] = h_new
                if not last_layer:                         # feeds the next layer
                    hseq_scr[pl.ds(row, B), :] = h_new
                return carry

            # fully unrolled time loop (seq is a small static int)
            lax.fori_loop(0, seq, step, 0, unroll=True)

            hn_scr[l * B:(l + 1) * B, :] = h_scr[...]

        # ---- MLP head: relu -> fc_1 -> relu -> fc (lane-dense padded output) ----
        h = jnp.maximum(hn_scr[...], 0.0)
        z = jnp.dot(h, w1_ref[...], preferred_element_type=jnp.float32) + b1_ref[...]
        z = jnp.maximum(z, 0.0)
        out_ref[...] = (jnp.dot(z, w2_ref[...], preferred_element_type=jnp.float32)
                        + b2_ref[...])

    return kernel


# ---------------------------------- wrapper ----------------------------------

@jax.jit
def lstm_model_forward(x, params):
    """x: (batch, seq, input_size) float32 (PyTorch batch_first layout)."""
    batch, seq, in_dim = x.shape
    H = params["lstm"][0][1].shape[0]
    num_layers = len(params["lstm"])
    num_classes = params["w2_t"].shape[1]
    B = _round_up(batch, 8)              # sublane padding -> unmasked vreg stores
    C_pad = _round_up(num_classes, 128)  # lane-dense head output; sliced below

    # Layout prep (a few hundred bytes; fuses into one tiny XLA op): time-major,
    # batch zero-padded to the sublane width, flattened to 2-D so each layer's
    # input projection is a single MXU matmul.
    x_tm = jnp.transpose(x, (1, 0, 2))                       # (seq, batch, feat)
    x_tm = jnp.pad(x_tm, ((0, 0), (0, B - batch), (0, 0)))   # (seq, B, feat)
    x_k = x_tm.reshape(seq * B, in_dim)

    # Pre-scale the g-gate block by 2 so the kernel can use one full-vreg
    # sigmoid for all four gates (tanh(x) == 2*sigmoid(2x) - 1).
    gate_scale = jnp.concatenate(
        [jnp.ones((2 * H,), jnp.float32),
         jnp.full((H,), 2.0, jnp.float32),
         jnp.ones((H,), jnp.float32)])
    lstm_args = []
    for (wih_t, whh_t, bias) in params["lstm"]:
        lstm_args += [wih_t * gate_scale, whh_t * gate_scale,
                      (bias * gate_scale).reshape(1, -1)]

    w2p = jnp.pad(params["w2_t"], ((0, 0), (0, C_pad - num_classes)))
    b2p = jnp.pad(params["b2"], (0, C_pad - num_classes)).reshape(1, -1)
    b1 = params["b1"].reshape(1, -1)

    kernel = _make_fused_lstm_kernel(seq=seq, B=B, H=H, in_dim=in_dim,
                                     num_layers=num_layers)
    n_in = 1 + 3 * num_layers + 4
    out_pad = pl.pallas_call(
        kernel,
        out_shape=jax.ShapeDtypeStruct((num_layers * B, C_pad), jnp.float32),
        in_specs=[_VMEM] * n_in,
        out_specs=_VMEM,
        scratch_shapes=[
            pltpu.VMEM((seq * B, 4 * H), jnp.float32),       # xproj
            pltpu.VMEM((seq * B, H), jnp.float32),           # hseq
            pltpu.VMEM((num_layers * B, H), jnp.float32),    # hn (all layers)
            pltpu.VMEM((B, H), jnp.float32),                 # h state
            pltpu.VMEM((B, H), jnp.float32),                 # c state
        ],
    )(x_k, *lstm_args, params["w1_t"], b1, w2p, b2p)

    # Drop batch/class padding; row order matches hn.view(-1, hidden).
    out = out_pad.reshape(num_layers, B, C_pad)[:, :batch, :num_classes]
    return out.reshape(num_layers * batch, num_classes)


# ----------------------- deterministic parameter init ------------------------

def init_params(key, num_classes, input_size, hidden_size, num_layers):
    k = 1.0 / jnp.sqrt(hidden_size)
    params = {"lstm": []}
    for layer in range(num_layers):
        in_dim = input_size if layer == 0 else hidden_size
        key, k1, k2, k3, k4 = jax.random.split(key, 5)
        w_ih = jax.random.uniform(k1, (4 * hidden_size, in_dim), jnp.float32, -k, k)
        w_hh = jax.random.uniform(k2, (4 * hidden_size, hidden_size), jnp.float32, -k, k)
        b_ih = jax.random.uniform(k3, (4 * hidden_size,), jnp.float32, -k, k)
        b_hh = jax.random.uniform(k4, (4 * hidden_size,), jnp.float32, -k, k)
        params["lstm"].append((w_ih.T, w_hh.T, b_ih + b_hh))
    key, k1, k2, k3, k4 = jax.random.split(key, 5)
    kf1 = 1.0 / jnp.sqrt(hidden_size)
    kf2 = 1.0 / jnp.sqrt(256.0)
    params["w1_t"] = jax.random.uniform(k1, (hidden_size, 256), jnp.float32, -kf1, kf1)
    params["b1"] = jax.random.uniform(k2, (256,), jnp.float32, -kf1, kf1)
    params["w2_t"] = jax.random.uniform(k3, (256, num_classes), jnp.float32, -kf2, kf2)
    params["b2"] = jax.random.uniform(k4, (num_classes,), jnp.float32, -kf2, kf2)
    return params


# ----------------------------- pure-JAX reference ----------------------------

def reference_forward(x, params):
    batch = x.shape[0]
    hidden = params["lstm"][0][1].shape[0]
    layer_in = x
    hn_list = []
    for (wih_t, whh_t, bias) in params["lstm"]:
        h = jnp.zeros((batch, hidden), jnp.float32)
        c = jnp.zeros((batch, hidden), jnp.float32)
        outs = []
        for t in range(x.shape[1]):
            g = layer_in[:, t, :] @ wih_t + h @ whh_t + bias
            i, f, gg, o = (jax.nn.sigmoid(g[:, :hidden]),
                           jax.nn.sigmoid(g[:, hidden:2 * hidden]),
                           jnp.tanh(g[:, 2 * hidden:3 * hidden]),
                           jax.nn.sigmoid(g[:, 3 * hidden:]))
            c = f * c + i * gg
            h = o * jnp.tanh(c)
            outs.append(h)
        layer_in = jnp.stack(outs, axis=1)
        hn_list.append(h)
    hn_flat = jnp.stack(hn_list, 0).reshape(-1, hidden)
    z = jnp.maximum(hn_flat, 0.0) @ params["w1_t"] + params["b1"]
    return jnp.maximum(z, 0.0) @ params["w2_t"] + params["b2"]


# ---------------------------------- main -------------------------------------

if __name__ == "__main__":
    num_classes = 5
    input_size = 4
    hidden_size = 32
    num_layers = 2
    seq_length = 8
    batch = 2

    key = jax.random.PRNGKey(0)
    key, pkey, xkey = jax.random.split(key, 3)
    params = init_params(pkey, num_classes, input_size, hidden_size, num_layers)
    x = jax.random.normal(xkey, (batch, seq_length, input_size), jnp.float32)

    out = lstm_model_forward(x, params)
    out = jax.block_until_ready(out)

    assert out.shape == (num_layers * batch, num_classes), out.shape

    ref = reference_forward(x, params)
    assert jnp.allclose(out, ref, atol=2e-4, rtol=2e-4), (
        jnp.max(jnp.abs(out - ref)), out, ref)

    print("KERNEL_OK")
</pallas_src>

<mosaic_0001>
module attributes {stable_mosaic.version = 11 : i64} {
  func.func @kernel(%arg0: memref<64x4xf32, #tpu.memory_space<vmem>>, %arg1: memref<4x128xf32, #tpu.memory_space<vmem>>, %arg2: memref<32x128xf32, #tpu.memory_space<vmem>>, %arg3: memref<1x128xf32, #tpu.memory_space<vmem>>, %arg4: memref<32x128xf32, #tpu.memory_space<vmem>>, %arg5: memref<32x128xf32, #tpu.memory_space<vmem>>, %arg6: memref<1x128xf32, #tpu.memory_space<vmem>>, %arg7: memref<32x256xf32, #tpu.memory_space<vmem>>, %arg8: memref<1x256xf32, #tpu.memory_space<vmem>>, %arg9: memref<256x128xf32, #tpu.memory_space<vmem>>, %arg10: memref<1x128xf32, #tpu.memory_space<vmem>>, %arg11: memref<16x128xf32, #tpu.memory_space<vmem>>, %arg12: memref<64x128xf32, #tpu.memory_space<vmem>>, %arg13: memref<64x32xf32, #tpu.memory_space<vmem>>, %arg14: memref<16x32xf32, #tpu.memory_space<vmem>>, %arg15: memref<8x32xf32, #tpu.memory_space<vmem>>, %arg16: memref<8x32xf32, #tpu.memory_space<vmem>>) attributes {dimension_semantics = [], scalar_prefetch = 0 : i64, scratch_operands = 5 : i64, tpu.core_type = #tpu.core_type<tc>} {
    %c0 = arith.constant 0 : index
    %c0_0 = arith.constant 0 : index
    %0 = vector.load %arg0[%c0, %c0_0] : memref<64x4xf32, #tpu.memory_space<vmem>>, vector<64x4xf32>
    %c0_1 = arith.constant 0 : index
    %c0_2 = arith.constant 0 : index
    %1 = vector.load %arg1[%c0_1, %c0_2] : memref<4x128xf32, #tpu.memory_space<vmem>>, vector<4x128xf32>
    %cst = arith.constant dense<0.000000e+00> : vector<64x128xf32>
    %2 = tpu.matmul %0, %1, %cst {dimension_numbers = #tpu.dot_dimension_numbers<[1], [0], [0], [1], [0, 0, 1, 1], [], []>} : vector<64x4xf32>, vector<4x128xf32>, vector<64x128xf32> -> vector<64x128xf32>
    %c0_3 = arith.constant 0 : index
    %c0_4 = arith.constant 0 : index
    %3 = vector.load %arg3[%c0_3, %c0_4] : memref<1x128xf32, #tpu.memory_space<vmem>>, vector<1x128xf32>
    %4 = vector.broadcast %3 : vector<1x128xf32> to vector<64x128xf32>
    %5 = arith.addf %2, %4 : vector<64x128xf32>
    %c0_5 = arith.constant 0 : index
    %c0_6 = arith.constant 0 : index
    %6 = vector.load %arg12[%c0_5, %c0_6] : memref<64x128xf32, #tpu.memory_space<vmem>>, vector<64x128xf32>
    tpu.vector_store %arg12[%c0_5, %c0_6], %5 {strides = array<i32>} : memref<64x128xf32, #tpu.memory_space<vmem>>, vector<64x128xf32>,
    %cst_7 = arith.constant 0.000000e+00 : f32
    %7 = vector.broadcast %cst_7 : f32 to vector<8x32xf32>
    %c0_8 = arith.constant 0 : index
    %c0_9 = arith.constant 0 : index
    %8 = vector.load %arg15[%c0_8, %c0_9] : memref<8x32xf32, #tpu.memory_space<vmem>>, vector<8x32xf32>
    tpu.vector_store %arg15[%c0_8, %c0_9], %7 {strides = array<i32>} : memref<8x32xf32, #tpu.memory_space<vmem>>, vector<8x32xf32>,
    %cst_10 = arith.constant 0.000000e+00 : f32
    %9 = vector.broadcast %cst_10 : f32 to vector<8x32xf32>
    %c0_11 = arith.constant 0 : index
    %c0_12 = arith.constant 0 : index
    %10 = vector.load %arg16[%c0_11, %c0_12] : memref<8x32xf32, #tpu.memory_space<vmem>>, vector<8x32xf32>
    tpu.vector_store %arg16[%c0_11, %c0_12], %9 {strides = array<i32>} : memref<8x32xf32, #tpu.memory_space<vmem>>, vector<8x32xf32>,
    %c0_i32 = arith.constant 0 : i32
    %c8_i32 = arith.constant 8 : i32
    %11 = arith.muli %c0_i32, %c8_i32 : i32
    %12 = tpu.assume_multiple %11, 8 : i32
    %13 = arith.index_cast %12 : i32 to index
    %c0_13 = arith.constant 0 : index
    %14 = vector.load %arg12[%13, %c0_13] : memref<64x128xf32, #tpu.memory_space<vmem>>, vector<8x128xf32>
    %c0_14 = arith.constant 0 : index
    %c0_15 = arith.constant 0 : index
    %15 = vector.load %arg15[%c0_14, %c0_15] : memref<8x32xf32, #tpu.memory_space<vmem>>, vector<8x32xf32>
    %c0_16 = arith.constant 0 : index
    %c0_17 = arith.constant 0 : index
    %16 = vector.load %arg2[%c0_16, %c0_17] : memref<32x128xf32, #tpu.memory_space<vmem>>, vector<32x128xf32>
    %cst_18 = arith.constant dense<0.000000e+00> : vector<8x128xf32>
    %17 = tpu.matmul %15, %16, %cst_18 {dimension_numbers = #tpu.dot_dimension_numbers<[1], [0], [0], [1], [0, 0, 1, 1], [], []>} : vector<8x32xf32>, vector<32x128xf32>, vector<8x128xf32> -> vector<8x128xf32>
    %18 = arith.addf %14, %17 : vector<8x128xf32>
    %19 = arith.negf %18 : vector<8x128xf32>
    %20 = math.exp %19 : vector<8x128xf32>
    %cst_19 = arith.constant 1.000000e+00 : f32
    %21 = vector.broadcast %cst_19 : f32 to vector<8x128xf32>
    %22 = arith.addf %21, %20 : vector<8x128xf32>
    %23 = arith.divf %21, %22 : vector<8x128xf32>
    %24 = vector.extract_strided_slice %23 {offsets = [0, 0], sizes = [8, 32], strides = [1, 1]} : vector<8x128xf32> to vector<8x32xf32>
    %25 = vector.extract_strided_slice %23 {offsets = [0, 32], sizes = [8, 32], strides = [1, 1]} : vector<8x128xf32> to vector<8x32xf32>
    %26 = vector.extract_strided_slice %23 {offsets = [0, 64], sizes = [8, 32], strides = [1, 1]} : vector<8x128xf32> to vector<8x32xf32>
    %cst_20 = arith.constant 2.000000e+00 : f32
    %27 = vector.broadcast %cst_20 : f32 to vector<8x32xf32>
    %28 = arith.mulf %27, %26 : vector<8x32xf32>
    %cst_21 = arith.constant 1.000000e+00 : f32
    %29 = vector.broadcast %cst_21 : f32 to vector<8x32xf32>
    %30 = arith.subf %28, %29 : vector<8x32xf32>
    %31 = vector.extract_strided_slice %23 {offsets = [0, 96], sizes = [8, 32], strides = [1, 1]} : vector<8x128xf32> to vector<8x32xf32>
    %c0_22 = arith.constant 0 : index
    %c0_23 = arith.constant 0 : index
    %32 = vector.load %arg16[%c0_22, %c0_23] : memref<8x32xf32, #tpu.memory_space<vmem>>, vector<8x32xf32>
    %33 = arith.mulf %25, %32 : vector<8x32xf32>
    %34 = arith.mulf %24, %30 : vector<8x32xf32>
    %35 = arith.addf %33, %34 : vector<8x32xf32>
    %36 = math.tanh %35 : vector<8x32xf32>
    %37 = arith.mulf %31, %36 : vector<8x32xf32>
    %c0_24 = arith.constant 0 : index
    %c0_25 = arith.constant 0 : index
    %38 = vector.load %arg16[%c0_24, %c0_25] : memref<8x32xf32, #tpu.memory_space<vmem>>, vector<8x32xf32>
    tpu.vector_store %arg16[%c0_24, %c0_25], %35 {strides = array<i32>} : memref<8x32xf32, #tpu.memory_space<vmem>>, vector<8x32xf32>,
    %c0_26 = arith.constant 0 : index
    %c0_27 = arith.constant 0 : index
    %39 = vector.load %arg15[%c0_26, %c0_27] : memref<8x32xf32, #tpu.memory_space<vmem>>, vector<8x32xf32>
    tpu.vector_store %arg15[%c0_26, %c0_27], %37 {strides = array<i32>} : memref<8x32xf32, #tpu.memory_space<vmem>>, vector<8x32xf32>,
    %40 = arith.index_cast %12 : i32 to index
    %c0_28 = arith.constant 0 : index
    %41 = vector.load %arg13[%40, %c0_28] : memref<64x32xf32, #tpu.memory_space<vmem>>, vector<8x32xf32>
    tpu.vector_store %arg13[%40, %c0_28], %37 {strides = array<i32>} : memref<64x32xf32, #tpu.memory_space<vmem>>, vector<8x32xf32>,
    %c1_i32 = arith.constant 1 : i32
    %c8_i32_29 = arith.constant 8 : i32
    %42 = arith.muli %c1_i32, %c8_i32_29 : i32
    %43 = tpu.assume_multiple %42, 8 : i32
    %44 = arith.index_cast %43 : i32 to index
    %c0_30 = arith.constant 0 : index
    %45 = vector.load %arg12[%44, %c0_30] : memref<64x128xf32, #tpu.memory_space<vmem>>, vector<8x128xf32>
    %c0_31 = arith.constant 0 : index
    %c0_32 = arith.constant 0 : index
    %46 = vector.load %arg15[%c0_31, %c0_32] : memref<8x32xf32, #tpu.memory_space<vmem>>, vector<8x32xf32>
    %c0_33 = arith.constant 0 : index
    %c0_34 = arith.constant 0 : index
    %47 = vector.load %arg2[%c0_33, %c0_34] : memref<32x128xf32, #tpu.memory_space<vmem>>, vector<32x128xf32>
    %cst_35 = arith.constant dense<0.000000e+00> : vector<8x128xf32>
    %48 = tpu.matmul %46, %47, %cst_35 {dimension_numbers = #tpu.dot_dimension_numbers<[1], [0], [0], [1], [0, 0, 1, 1], [], []>} : vector<8x32xf32>, vector<32x128xf32>, vector<8x128xf32> -> vector<8x128xf32>
    %49 = arith.addf %45, %48 : vector<8x128xf32>
    %50 = arith.negf %49 : vector<8x128xf32>
    %51 = math.exp %50 : vector<8x128xf32>
    %cst_36 = arith.constant 1.000000e+00 : f32
    %52 = vector.broadcast %cst_36 : f32 to vector<8x128xf32>
    %53 = arith.addf %52, %51 : vector<8x128xf32>
    %54 = arith.divf %52, %53 : vector<8x128xf32>
    %55 = vector.extract_strided_slice %54 {offsets = [0, 0], sizes = [8, 32], strides = [1, 1]} : vector<8x128xf32> to vector<8x32xf32>
    %56 = vector.extract_strided_slice %54 {offsets = [0, 32], sizes = [8, 32], strides = [1, 1]} : vector<8x128xf32> to vector<8x32xf32>
    %57 = vector.extract_strided_slice %54 {offsets = [0, 64], sizes = [8, 32], strides = [1, 1]} : vector<8x128xf32> to vector<8x32xf32>
    %cst_37 = arith.constant 2.000000e+00 : f32
    %58 = vector.broadcast %cst_37 : f32 to vector<8x32xf32>
    %59 = arith.mulf %58, %57 : vector<8x32xf32>
    %cst_38 = arith.constant 1.000000e+00 : f32
    %60 = vector.broadcast %cst_38 : f32 to vector<8x32xf32>
    %61 = arith.subf %59, %60 : vector<8x32xf32>
    %62 = vector.extract_strided_slice %54 {offsets = [0, 96], sizes = [8, 32], strides = [1, 1]} : vector<8x128xf32> to vector<8x32xf32>
    %c0_39 = arith.constant 0 : index
    %c0_40 = arith.constant 0 : index
    %63 = vector.load %arg16[%c0_39, %c0_40] : memref<8x32xf32, #tpu.memory_space<vmem>>, vector<8x32xf32>
    %64 = arith.mulf %56, %63 : vector<8x32xf32>
    %65 = arith.mulf %55, %61 : vector<8x32xf32>
    %66 = arith.addf %64, %65 : vector<8x32xf32>
    %67 = math.tanh %66 : vector<8x32xf32>
    %68 = arith.mulf %62, %67 : vector<8x32xf32>
    %c0_41 = arith.constant 0 : index
    %c0_42 = arith.constant 0 : index
    %69 = vector.load %arg16[%c0_41, %c0_42] : memref<8x32xf32, #tpu.memory_space<vmem>>, vector<8x32xf32>
    tpu.vector_store %arg16[%c0_41, %c0_42], %66 {strides = array<i32>} : memref<8x32xf32, #tpu.memory_space<vmem>>, vector<8x32xf32>,
    %c0_43 = arith.constant 0 : index
    %c0_44 = arith.constant 0 : index
    %70 = vector.load %arg15[%c0_43, %c0_44] : memref<8x32xf32, #tpu.memory_space<vmem>>, vector<8x32xf32>
    tpu.vector_store %arg15[%c0_43, %c0_44], %68 {strides = array<i32>} : memref<8x32xf32, #tpu.memory_space<vmem>>, vector<8x32xf32>,
    %71 = arith.index_cast %43 : i32 to index
    %c0_45 = arith.constant 0 : index
    %72 = vector.load %arg13[%71, %c0_45] : memref<64x32xf32, #tpu.memory_space<vmem>>, vector<8x32xf32>
    tpu.vector_store %arg13[%71, %c0_45], %68 {strides = array<i32>} : memref<64x32xf32, #tpu.memory_space<vmem>>, vector<8x32xf32>,
    %c2_i32 = arith.constant 2 : i32
    %c8_i32_46 = arith.constant 8 : i32
    %73 = arith.muli %c2_i32, %c8_i32_46 : i32
    %74 = tpu.assume_multiple %73, 8 : i32
    %75 = arith.index_cast %74 : i32 to index
    %c0_47 = arith.constant 0 : index
    %76 = vector.load %arg12[%75, %c0_47] : memref<64x128xf32, #tpu.memory_space<vmem>>, vector<8x128xf32>
    %c0_48 = arith.constant 0 : index
    %c0_49 = arith.constant 0 : index
    %77 = vector.load %arg15[%c0_48, %c0_49] : memref<8x32xf32, #tpu.memory_space<vmem>>, vector<8x32xf32>
    %c0_50 = arith.constant 0 : index
    %c0_51 = arith.constant 0 : index
    %78 = vector.load %arg2[%c0_50, %c0_51] : memref<32x128xf32, #tpu.memory_space<vmem>>, vector<32x128xf32>
    %cst_52 = arith.constant dense<0.000000e+00> : vector<8x128xf32>
    %79 = tpu.matmul %77, %78, %cst_52 {dimension_numbers = #tpu.dot_dimension_numbers<[1], [0], [0], [1], [0, 0, 1, 1], [], []>} : vector<8x32xf32>, vector<32x128xf32>, vector<8x128xf32> -> vector<8x128xf32>
    %80 = arith.addf %76, %79 : vector<8x128xf32>
    %81 = arith.negf %80 : vector<8x128xf32>
    %82 = math.exp %81 : vector<8x128xf32>
    %cst_53 = arith.constant 1.000000e+00 : f32
    %83 = vector.broadcast %cst_53 : f32 to vector<8x128xf32>
    %84 = arith.addf %83, %82 : vector<8x128xf32>
    %85 = arith.divf %83, %84 : vector<8x128xf32>
    %86 = vector.extract_strided_slice %85 {offsets = [0, 0], sizes = [8, 32], strides = [1, 1]} : vector<8x128xf32> to vector<8x32xf32>
    %87 = vector.extract_strided_slice %85 {offsets = [0, 32], sizes = [8, 32], strides = [1, 1]} : vector<8x128xf32> to vector<8x32xf32>
    %88 = vector.extract_strided_slice %85 {offsets = [0, 64], sizes = [8, 32], strides = [1, 1]} : vector<8x128xf32> to vector<8x32xf32>
    %cst_54 = arith.constant 2.000000e+00 : f32
    %89 = vector.broadcast %cst_54 : f32 to vector<8x32xf32>
    %90 = arith.mulf %89, %88 : vector<8x32xf32>
    %cst_55 = arith.constant 1.000000e+00 : f32
    %91 = vector.broadcast %cst_55 : f32 to vector<8x32xf32>
    %92 = arith.subf %90, %91 : vector<8x32xf32>
    %93 = vector.extract_strided_slice %85 {offsets = [0, 96], sizes = [8, 32], strides = [1, 1]} : vector<8x128xf32> to vector<8x32xf32>
    %c0_56 = arith.constant 0 : index
    %c0_57 = arith.constant 0 : index
    %94 = vector.load %arg16[%c0_56, %c0_57] : memref<8x32xf32, #tpu.memory_space<vmem>>, vector<8x32xf32>
    %95 = arith.mulf %87, %94 : vector<8x32xf32>
    %96 = arith.mulf %86, %92 : vector<8x32xf32>
    %97 = arith.addf %95, %96 : vector<8x32xf32>
    %98 = math.tanh %97 : vector<8x32xf32>
    %99 = arith.mulf %93, %98 : vector<8x32xf32>
    %c0_58 = arith.constant 0 : index
    %c0_59 = arith.constant 0 : index
    %100 = vector.load %arg16[%c0_58, %c0_59] : memref<8x32xf32, #tpu.memory_space<vmem>>, vector<8x32xf32>
    tpu.vector_store %arg16[%c0_58, %c0_59], %97 {strides = array<i32>} : memref<8x32xf32, #tpu.memory_space<vmem>>, vector<8x32xf32>,
    %c0_60 = arith.constant 0 : index
    %c0_61 = arith.constant 0 : index
    %101 = vector.load %arg15[%c0_60, %c0_61] : memref<8x32xf32, #tpu.memory_space<vmem>>, vector<8x32xf32>
    tpu.vector_store %arg15[%c0_60, %c0_61], %99 {strides = array<i32>} : memref<8x32xf32, #tpu.memory_space<vmem>>, vector<8x32xf32>,
    %102 = arith.index_cast %74 : i32 to index
    %c0_62 = arith.constant 0 : index
    %103 = vector.load %arg13[%102, %c0_62] : memref<64x32xf32, #tpu.memory_space<vmem>>, vector<8x32xf32>
    tpu.vector_store %arg13[%102, %c0_62], %99 {strides = array<i32>} : memref<64x32xf32, #tpu.memory_space<vmem>>, vector<8x32xf32>,
    %c3_i32 = arith.constant 3 : i32
    %c8_i32_63 = arith.constant 8 : i32
    %104 = arith.muli %c3_i32, %c8_i32_63 : i32
    %105 = tpu.assume_multiple %104, 8 : i32
    %106 = arith.index_cast %105 : i32 to index
    %c0_64 = arith.constant 0 : index
    %107 = vector.load %arg12[%106, %c0_64] : memref<64x128xf32, #tpu.memory_space<vmem>>, vector<8x128xf32>
    %c0_65 = arith.constant 0 : index
    %c0_66 = arith.constant 0 : index
    %108 = vector.load %arg15[%c0_65, %c0_66] : memref<8x32xf32, #tpu.memory_space<vmem>>, vector<8x32xf32>
    %c0_67 = arith.constant 0 : index
    %c0_68 = arith.constant 0 : index
    %109 = vector.load %arg2[%c0_67, %c0_68] : memref<32x128xf32, #tpu.memory_space<vmem>>, vector<32x128xf32>
    %cst_69 = arith.constant dense<0.000000e+00> : vector<8x128xf32>
    %110 = tpu.matmul %108, %109, %cst_69 {dimension_numbers = #tpu.dot_dimension_numbers<[1], [0], [0], [1], [0, 0, 1, 1], [], []>} : vector<8x32xf32>, vector<32x128xf32>, vector<8x128xf32> -> vector<8x128xf32>
    %111 = arith.addf %107, %110 : vector<8x128xf32>
    %112 = arith.negf %111 : vector<8x128xf32>
    %113 = math.exp %112 : vector<8x128xf32>
    %cst_70 = arith.constant 1.000000e+00 : f32
    %114 = vector.broadcast %cst_70 : f32 to vector<8x128xf32>
    %115 = arith.addf %114, %113 : vector<8x128xf32>
    %116 = arith.divf %114, %115 : vector<8x128xf32>
    %117 = vector.extract_strided_slice %116 {offsets = [0, 0], sizes = [8, 32], strides = [1, 1]} : vector<8x128xf32> to vector<8x32xf32>
    %118 = vector.extract_strided_slice %116 {offsets = [0, 32], sizes = [8, 32], strides = [1, 1]} : vector<8x128xf32> to vector<8x32xf32>
    %119 = vector.extract_strided_slice %116 {offsets = [0, 64], sizes = [8, 32], strides = [1, 1]} : vector<8x128xf32> to vector<8x32xf32>
    %cst_71 = arith.constant 2.000000e+00 : f32
    %120 = vector.broadcast %cst_71 : f32 to vector<8x32xf32>
    %121 = arith.mulf %120, %119 : vector<8x32xf32>
    %cst_72 = arith.constant 1.000000e+00 : f32
    %122 = vector.broadcast %cst_72 : f32 to vector<8x32xf32>
    %123 = arith.subf %121, %122 : vector<8x32xf32>
    %124 = vector.extract_strided_slice %116 {offsets = [0, 96], sizes = [8, 32], strides = [1, 1]} : vector<8x128xf32> to vector<8x32xf32>
    %c0_73 = arith.constant 0 : index
    %c0_74 = arith.constant 0 : index
    %125 = vector.load %arg16[%c0_73, %c0_74] : memref<8x32xf32, #tpu.memory_space<vmem>>, vector<8x32xf32>
    %126 = arith.mulf %118, %125 : vector<8x32xf32>
    %127 = arith.mulf %117, %123 : vector<8x32xf32>
    %128 = arith.addf %126, %127 : vector<8x32xf32>
    %129 = math.tanh %128 : vector<8x32xf32>
    %130 = arith.mulf %124, %129 : vector<8x32xf32>
    %c0_75 = arith.constant 0 : index
    %c0_76 = arith.constant 0 : index
    %131 = vector.load %arg16[%c0_75, %c0_76] : memref<8x32xf32, #tpu.memory_space<vmem>>, vector<8x32xf32>
    tpu.vector_store %arg16[%c0_75, %c0_76], %128 {strides = array<i32>} : memref<8x32xf32, #tpu.memory_space<vmem>>, vector<8x32xf32>,
    %c0_77 = arith.constant 0 : index
    %c0_78 = arith.constant 0 : index
    %132 = vector.load %arg15[%c0_77, %c0_78] : memref<8x32xf32, #tpu.memory_space<vmem>>, vector<8x32xf32>
    tpu.vector_store %arg15[%c0_77, %c0_78], %130 {strides = array<i32>} : memref<8x32xf32, #tpu.memory_space<vmem>>, vector<8x32xf32>,
    %133 = arith.index_cast %105 : i32 to index
    %c0_79 = arith.constant 0 : index
    %134 = vector.load %arg13[%133, %c0_79] : memref<64x32xf32, #tpu.memory_space<vmem>>, vector<8x32xf32>
    tpu.vector_store %arg13[%133, %c0_79], %130 {strides = array<i32>} : memref<64x32xf32, #tpu.memory_space<vmem>>, vector<8x32xf32>,
    %c4_i32 = arith.constant 4 : i32
    %c8_i32_80 = arith.constant 8 : i32
    %135 = arith.muli %c4_i32, %c8_i32_80 : i32
    %136 = tpu.assume_multiple %135, 8 : i32
    %137 = arith.index_cast %136 : i32 to index
    %c0_81 = arith.constant 0 : index
    %138 = vector.load %arg12[%137, %c0_81] : memref<64x128xf32, #tpu.memory_space<vmem>>, vector<8x128xf32>
    %c0_82 = arith.constant 0 : index
    %c0_83 = arith.constant 0 : index
    %139 = vector.load %arg15[%c0_82, %c0_83] : memref<8x32xf32, #tpu.memory_space<vmem>>, vector<8x32xf32>
    %c0_84 = arith.constant 0 : index
    %c0_85 = arith.constant 0 : index
    %140 = vector.load %arg2[%c0_84, %c0_85] : memref<32x128xf32, #tpu.memory_space<vmem>>, vector<32x128xf32>
    %cst_86 = arith.constant dense<0.000000e+00> : vector<8x128xf32>
    %141 = tpu.matmul %139, %140, %cst_86 {dimension_numbers = #tpu.dot_dimension_numbers<[1], [0], [0], [1], [0, 0, 1, 1], [], []>} : vector<8x32xf32>, vector<32x128xf32>, vector<8x128xf32> -> vector<8x128xf32>
    %142 = arith.addf %138, %141 : vector<8x128xf32>
    %143 = arith.negf %142 : vector<8x128xf32>
    %144 = math.exp %143 : vector<8x128xf32>
    %cst_87 = arith.constant 1.000000e+00 : f32
    %145 = vector.broadcast %cst_87 : f32 to vector<8x128xf32>
    %146 = arith.addf %145, %144 : vector<8x128xf32>
    %147 = arith.divf %145, %146 : vector<8x128xf32>
    %148 = vector.extract_strided_slice %147 {offsets = [0, 0], sizes = [8, 32], strides = [1, 1]} : vector<8x128xf32> to vector<8x32xf32>
    %149 = vector.extract_strided_slice %147 {offsets = [0, 32], sizes = [8, 32], strides = [1, 1]} : vector<8x128xf32> to vector<8x32xf32>
    %150 = vector.extract_strided_slice %147 {offsets = [0, 64], sizes = [8, 32], strides = [1, 1]} : vector<8x128xf32> to vector<8x32xf32>
    %cst_88 = arith.constant 2.000000e+00 : f32
    %151 = vector.broadcast %cst_88 : f32 to vector<8x32xf32>
    %152 = arith.mulf %151, %150 : vector<8x32xf32>
    %cst_89 = arith.constant 1.000000e+00 : f32
    %153 = vector.broadcast %cst_89 : f32 to vector<8x32xf32>
    %154 = arith.subf %152, %153 : vector<8x32xf32>
    %155 = vector.extract_strided_slice %147 {offsets = [0, 96], sizes = [8, 32], strides = [1, 1]} : vector<8x128xf32> to vector<8x32xf32>
    %c0_90 = arith.constant 0 : index
    %c0_91 = arith.constant 0 : index
    %156 = vector.load %arg16[%c0_90, %c0_91] : memref<8x32xf32, #tpu.memory_space<vmem>>, vector<8x32xf32>
    %157 = arith.mulf %149, %156 : vector<8x32xf32>
    %158 = arith.mulf %148, %154 : vector<8x32xf32>
    %159 = arith.addf %157, %158 : vector<8x32xf32>
    %160 = math.tanh %159 : vector<8x32xf32>
    %161 = arith.mulf %155, %160 : vector<8x32xf32>
    %c0_92 = arith.constant 0 : index
    %c0_93 = arith.constant 0 : index
    %162 = vector.load %arg16[%c0_92, %c0_93] : memref<8x32xf32, #tpu.memory_space<vmem>>, vector<8x32xf32>
    tpu.vector_store %arg16[%c0_92, %c0_93], %159 {strides = array<i32>} : memref<8x32xf32, #tpu.memory_space<vmem>>, vector<8x32xf32>,
    %c0_94 = arith.constant 0 : index
    %c0_95 = arith.constant 0 : index
    %163 = vector.load %arg15[%c0_94, %c0_95] : memref<8x32xf32, #tpu.memory_space<vmem>>, vector<8x32xf32>
    tpu.vector_store %arg15[%c0_94, %c0_95], %161 {strides = array<i32>} : memref<8x32xf32, #tpu.memory_space<vmem>>, vector<8x32xf32>,
    %164 = arith.index_cast %136 : i32 to index
    %c0_96 = arith.constant 0 : index
    %165 = vector.load %arg13[%164, %c0_96] : memref<64x32xf32, #tpu.memory_space<vmem>>, vector<8x32xf32>
    tpu.vector_store %arg13[%164, %c0_96], %161 {strides = array<i32>} : memref<64x32xf32, #tpu.memory_space<vmem>>, vector<8x32xf32>,
    %c5_i32 = arith.constant 5 : i32
    %c8_i32_97 = arith.constant 8 : i32
    %166 = arith.muli %c5_i32, %c8_i32_97 : i32
    %167 = tpu.assume_multiple %166, 8 : i32
    %168 = arith.index_cast %167 : i32 to index
    %c0_98 = arith.constant 0 : index
    %169 = vector.load %arg12[%168, %c0_98] : memref<64x128xf32, #tpu.memory_space<vmem>>, vector<8x128xf32>
    %c0_99 = arith.constant 0 : index
    %c0_100 = arith.constant 0 : index
    %170 = vector.load %arg15[%c0_99, %c0_100] : memref<8x32xf32, #tpu.memory_space<vmem>>, vector<8x32xf32>
    %c0_101 = arith.constant 0 : index
    %c0_102 = arith.constant 0 : index
    %171 = vector.load %arg2[%c0_101, %c0_102] : memref<32x128xf32, #tpu.memory_space<vmem>>, vector<32x128xf32>
    %cst_103 = arith.constant dense<0.000000e+00> : vector<8x128xf32>
    %172 = tpu.matmul %170, %171, %cst_103 {dimension_numbers = #tpu.dot_dimension_numbers<[1], [0], [0], [1], [0, 0, 1, 1], [], []>} : vector<8x32xf32>, vector<32x128xf32>, vector<8x128xf32> -> vector<8x128xf32>
    %173 = arith.addf %169, %172 : vector<8x128xf32>
    %174 = arith.negf %173 : vector<8x128xf32>
    %175 = math.exp %174 : vector<8x128xf32>
    %cst_104 = arith.constant 1.000000e+00 : f32
    %176 = vector.broadcast %cst_104 : f32 to vector<8x128xf32>
    %177 = arith.addf %176, %175 : vector<8x128xf32>
    %178 = arith.divf %176, %177 : vector<8x128xf32>
    %179 = vector.extract_strided_slice %178 {offsets = [0, 0], sizes = [8, 32], strides = [1, 1]} : vector<8x128xf32> to vector<8x32xf32>
    %180 = vector.extract_strided_slice %178 {offsets = [0, 32], sizes = [8, 32], strides = [1, 1]} : vector<8x128xf32> to vector<8x32xf32>
    %181 = vector.extract_strided_slice %178 {offsets = [0, 64], sizes = [8, 32], strides = [1, 1]} : vector<8x128xf32> to vector<8x32xf32>
    %cst_105 = arith.constant 2.000000e+00 : f32
    %182 = vector.broadcast %cst_105 : f32 to vector<8x32xf32>
    %183 = arith.mulf %182, %181 : vector<8x32xf32>
    %cst_106 = arith.constant 1.000000e+00 : f32
    %184 = vector.broadcast %cst_106 : f32 to vector<8x32xf32>
    %185 = arith.subf %183, %184 : vector<8x32xf32>
    %186 = vector.extract_strided_slice %178 {offsets = [0, 96], sizes = [8, 32], strides = [1, 1]} : vector<8x128xf32> to vector<8x32xf32>
    %c0_107 = arith.constant 0 : index
    %c0_108 = arith.constant 0 : index
    %187 = vector.load %arg16[%c0_107, %c0_108] : memref<8x32xf32, #tpu.memory_space<vmem>>, vector<8x32xf32>
    %188 = arith.mulf %180, %187 : vector<8x32xf32>
    %189 = arith.mulf %179, %185 : vector<8x32xf32>
    %190 = arith.addf %188, %189 : vector<8x32xf32>
    %191 = math.tanh %190 : vector<8x32xf32>
    %192 = arith.mulf %186, %191 : vector<8x32xf32>
    %c0_109 = arith.constant 0 : index
    %c0_110 = arith.constant 0 : index
    %193 = vector.load %arg16[%c0_109, %c0_110] : memref<8x32xf32, #tpu.memory_space<vmem>>, vector<8x32xf32>
    tpu.vector_store %arg16[%c0_109, %c0_110], %190 {strides = array<i32>} : memref<8x32xf32, #tpu.memory_space<vmem>>, vector<8x32xf32>,
    %c0_111 = arith.constant 0 : index
    %c0_112 = arith.constant 0 : index
    %194 = vector.load %arg15[%c0_111, %c0_112] : memref<8x32xf32, #tpu.memory_space<vmem>>, vector<8x32xf32>
    tpu.vector_store %arg15[%c0_111, %c0_112], %192 {strides = array<i32>} : memref<8x32xf32, #tpu.memory_space<vmem>>, vector<8x32xf32>,
    %195 = arith.index_cast %167 : i32 to index
    %c0_113 = arith.constant 0 : index
    %196 = vector.load %arg13[%195, %c0_113] : memref<64x32xf32, #tpu.memory_space<vmem>>, vector<8x32xf32>
    tpu.vector_store %arg13[%195, %c0_113], %192 {strides = array<i32>} : memref<64x32xf32, #tpu.memory_space<vmem>>, vector<8x32xf32>,
    %c6_i32 = arith.constant 6 : i32
    %c8_i32_114 = arith.constant 8 : i32
    %197 = arith.muli %c6_i32, %c8_i32_114 : i32
    %198 = tpu.assume_multiple %197, 8 : i32
    %199 = arith.index_cast %198 : i32 to index
    %c0_115 = arith.constant 0 : index
    %200 = vector.load %arg12[%199, %c0_115] : memref<64x128xf32, #tpu.memory_space<vmem>>, vector<8x128xf32>
    %c0_116 = arith.constant 0 : index
    %c0_117 = arith.constant 0 : index
    %201 = vector.load %arg15[%c0_116, %c0_117] : memref<8x32xf32, #tpu.memory_space<vmem>>, vector<8x32xf32>
    %c0_118 = arith.constant 0 : index
    %c0_119 = arith.constant 0 : index
    %202 = vector.load %arg2[%c0_118, %c0_119] : memref<32x128xf32, #tpu.memory_space<vmem>>, vector<32x128xf32>
    %cst_120 = arith.constant dense<0.000000e+00> : vector<8x128xf32>
    %203 = tpu.matmul %201, %202, %cst_120 {dimension_numbers = #tpu.dot_dimension_numbers<[1], [0], [0], [1], [0, 0, 1, 1], [], []>} : vector<8x32xf32>, vector<32x128xf32>, vector<8x128xf32> -> vector<8x128xf32>
    %204 = arith.addf %200, %203 : vector<8x128xf32>
    %205 = arith.negf %204 : vector<8x128xf32>
    %206 = math.exp %205 : vector<8x128xf32>
    %cst_121 = arith.constant 1.000000e+00 : f32
    %207 = vector.broadcast %cst_121 : f32 to vector<8x128xf32>
    %208 = arith.addf %207, %206 : vector<8x128xf32>
    %209 = arith.divf %207, %208 : vector<8x128xf32>
    %210 = vector.extract_strided_slice %209 {offsets = [0, 0], sizes = [8, 32], strides = [1, 1]} : vector<8x128xf32> to vector<8x32xf32>
    %211 = vector.extract_strided_slice %209 {offsets = [0, 32], sizes = [8, 32], strides = [1, 1]} : vector<8x128xf32> to vector<8x32xf32>
    %212 = vector.extract_strided_slice %209 {offsets = [0, 64], sizes = [8, 32], strides = [1, 1]} : vector<8x128xf32> to vector<8x32xf32>
    %cst_122 = arith.constant 2.000000e+00 : f32
    %213 = vector.broadcast %cst_122 : f32 to vector<8x32xf32>
    %214 = arith.mulf %213, %212 : vector<8x32xf32>
    %cst_123 = arith.constant 1.000000e+00 : f32
    %215 = vector.broadcast %cst_123 : f32 to vector<8x32xf32>
    %216 = arith.subf %214, %215 : vector<8x32xf32>
    %217 = vector.extract_strided_slice %209 {offsets = [0, 96], sizes = [8, 32], strides = [1, 1]} : vector<8x128xf32> to vector<8x32xf32>
    %c0_124 = arith.constant 0 : index
    %c0_125 = arith.constant 0 : index
    %218 = vector.load %arg16[%c0_124, %c0_125] : memref<8x32xf32, #tpu.memory_space<vmem>>, vector<8x32xf32>
    %219 = arith.mulf %211, %218 : vector<8x32xf32>
    %220 = arith.mulf %210, %216 : vector<8x32xf32>
    %221 = arith.addf %219, %220 : vector<8x32xf32>
    %222 = math.tanh %221 : vector<8x32xf32>
    %223 = arith.mulf %217, %222 : vector<8x32xf32>
    %c0_126 = arith.constant 0 : index
    %c0_127 = arith.constant 0 : index
    %224 = vector.load %arg16[%c0_126, %c0_127] : memref<8x32xf32, #tpu.memory_space<vmem>>, vector<8x32xf32>
    tpu.vector_store %arg16[%c0_126, %c0_127], %221 {strides = array<i32>} : memref<8x32xf32, #tpu.memory_space<vmem>>, vector<8x32xf32>,
    %c0_128 = arith.constant 0 : index
    %c0_129 = arith.constant 0 : index
    %225 = vector.load %arg15[%c0_128, %c0_129] : memref<8x32xf32, #tpu.memory_space<vmem>>, vector<8x32xf32>
    tpu.vector_store %arg15[%c0_128, %c0_129], %223 {strides = array<i32>} : memref<8x32xf32, #tpu.memory_space<vmem>>, vector<8x32xf32>,
    %226 = arith.index_cast %198 : i32 to index
    %c0_130 = arith.constant 0 : index
    %227 = vector.load %arg13[%226, %c0_130] : memref<64x32xf32, #tpu.memory_space<vmem>>, vector<8x32xf32>
    tpu.vector_store %arg13[%226, %c0_130], %223 {strides = array<i32>} : memref<64x32xf32, #tpu.memory_space<vmem>>, vector<8x32xf32>,
    %c7_i32 = arith.constant 7 : i32
    %c8_i32_131 = arith.constant 8 : i32
    %228 = arith.muli %c7_i32, %c8_i32_131 : i32
    %229 = tpu.assume_multiple %228, 8 : i32
    %230 = arith.index_cast %229 : i32 to index
    %c0_132 = arith.constant 0 : index
    %231 = vector.load %arg12[%230, %c0_132] : memref<64x128xf32, #tpu.memory_space<vmem>>, vector<8x128xf32>
    %c0_133 = arith.constant 0 : index
    %c0_134 = arith.constant 0 : index
    %232 = vector.load %arg15[%c0_133, %c0_134] : memref<8x32xf32, #tpu.memory_space<vmem>>, vector<8x32xf32>
    %c0_135 = arith.constant 0 : index
    %c0_136 = arith.constant 0 : index
    %233 = vector.load %arg2[%c0_135, %c0_136] : memref<32x128xf32, #tpu.memory_space<vmem>>, vector<32x128xf32>
    %cst_137 = arith.constant dense<0.000000e+00> : vector<8x128xf32>
    %234 = tpu.matmul %232, %233, %cst_137 {dimension_numbers = #tpu.dot_dimension_numbers<[1], [0], [0], [1], [0, 0, 1, 1], [], []>} : vector<8x32xf32>, vector<32x128xf32>, vector<8x128xf32> -> vector<8x128xf32>
    %235 = arith.addf %231, %234 : vector<8x128xf32>
    %236 = arith.negf %235 : vector<8x128xf32>
    %237 = math.exp %236 : vector<8x128xf32>
    %cst_138 = arith.constant 1.000000e+00 : f32
    %238 = vector.broadcast %cst_138 : f32 to vector<8x128xf32>
    %239 = arith.addf %238, %237 : vector<8x128xf32>
    %240 = arith.divf %238, %239 : vector<8x128xf32>
    %241 = vector.extract_strided_slice %240 {offsets = [0, 0], sizes = [8, 32], strides = [1, 1]} : vector<8x128xf32> to vector<8x32xf32>
    %242 = vector.extract_strided_slice %240 {offsets = [0, 32], sizes = [8, 32], strides = [1, 1]} : vector<8x128xf32> to vector<8x32xf32>
    %243 = vector.extract_strided_slice %240 {offsets = [0, 64], sizes = [8, 32], strides = [1, 1]} : vector<8x128xf32> to vector<8x32xf32>
    %cst_139 = arith.constant 2.000000e+00 : f32
    %244 = vector.broadcast %cst_139 : f32 to vector<8x32xf32>
    %245 = arith.mulf %244, %243 : vector<8x32xf32>
    %cst_140 = arith.constant 1.000000e+00 : f32
    %246 = vector.broadcast %cst_140 : f32 to vector<8x32xf32>
    %247 = arith.subf %245, %246 : vector<8x32xf32>
    %248 = vector.extract_strided_slice %240 {offsets = [0, 96], sizes = [8, 32], strides = [1, 1]} : vector<8x128xf32> to vector<8x32xf32>
    %c0_141 = arith.constant 0 : index
    %c0_142 = arith.constant 0 : index
    %249 = vector.load %arg16[%c0_141, %c0_142] : memref<8x32xf32, #tpu.memory_space<vmem>>, vector<8x32xf32>
    %250 = arith.mulf %242, %249 : vector<8x32xf32>
    %251 = arith.mulf %241, %247 : vector<8x32xf32>
    %252 = arith.addf %250, %251 : vector<8x32xf32>
    %253 = math.tanh %252 : vector<8x32xf32>
    %254 = arith.mulf %248, %253 : vector<8x32xf32>
    %c0_143 = arith.constant 0 : index
    %c0_144 = arith.constant 0 : index
    %255 = vector.load %arg16[%c0_143, %c0_144] : memref<8x32xf32, #tpu.memory_space<vmem>>, vector<8x32xf32>
    tpu.vector_store %arg16[%c0_143, %c0_144], %252 {strides = array<i32>} : memref<8x32xf32, #tpu.memory_space<vmem>>, vector<8x32xf32>,
    %c0_145 = arith.constant 0 : index
    %c0_146 = arith.constant 0 : index
    %256 = vector.load %arg15[%c0_145, %c0_146] : memref<8x32xf32, #tpu.memory_space<vmem>>, vector<8x32xf32>
    tpu.vector_store %arg15[%c0_145, %c0_146], %254 {strides = array<i32>} : memref<8x32xf32, #tpu.memory_space<vmem>>, vector<8x32xf32>,
    %257 = arith.index_cast %229 : i32 to index
    %c0_147 = arith.constant 0 : index
    %258 = vector.load %arg13[%257, %c0_147] : memref<64x32xf32, #tpu.memory_space<vmem>>, vector<8x32xf32>
    tpu.vector_store %arg13[%257, %c0_147], %254 {strides = array<i32>} : memref<64x32xf32, #tpu.memory_space<vmem>>, vector<8x32xf32>,
    %c8_i32_148 = arith.constant 8 : i32
    %c0_149 = arith.constant 0 : index
    %c0_150 = arith.constant 0 : index
    %259 = vector.load %arg15[%c0_149, %c0_150] : memref<8x32xf32, #tpu.memory_space<vmem>>, vector<8x32xf32>
    %c0_151 = arith.constant 0 : index
    %c0_152 = arith.constant 0 : index
    %260 = vector.load %arg14[%c0_151, %c0_152] : memref<16x32xf32, #tpu.memory_space<vmem>>, vector<8x32xf32>
    tpu.vector_store %arg14[%c0_151, %c0_152], %259 {strides = array<i32>} : memref<16x32xf32, #tpu.memory_space<vmem>>, vector<8x32xf32>,
    %c0_153 = arith.constant 0 : index
    %c0_154 = arith.constant 0 : index
    %261 = vector.load %arg13[%c0_153, %c0_154] : memref<64x32xf32, #tpu.memory_space<vmem>>, vector<64x32xf32>
    %c0_155 = arith.constant 0 : index
    %c0_156 = arith.constant 0 : index
    %262 = vector.load %arg4[%c0_155, %c0_156] : memref<32x128xf32, #tpu.memory_space<vmem>>, vector<32x128xf32>
    %cst_157 = arith.constant dense<0.000000e+00> : vector<64x128xf32>
    %263 = tpu.matmul %261, %262, %cst_157 {dimension_numbers = #tpu.dot_dimension_numbers<[1], [0], [0], [1], [0, 0, 1, 1], [], []>} : vector<64x32xf32>, vector<32x128xf32>, vector<64x128xf32> -> vector<64x128xf32>
    %c0_158 = arith.constant 0 : index
    %c0_159 = arith.constant 0 : index
    %264 = vector.load %arg6[%c0_158, %c0_159] : memref<1x128xf32, #tpu.memory_space<vmem>>, vector<1x128xf32>
    %265 = vector.broadcast %264 : vector<1x128xf32> to vector<64x128xf32>
    %266 = arith.addf %263, %265 : vector<64x128xf32>
    %c0_160 = arith.constant 0 : index
    %c0_161 = arith.constant 0 : index
    %267 = vector.load %arg12[%c0_160, %c0_161] : memref<64x128xf32, #tpu.memory_space<vmem>>, vector<64x128xf32>
    tpu.vector_store %arg12[%c0_160, %c0_161], %266 {strides = array<i32>} : memref<64x128xf32, #tpu.memory_space<vmem>>, vector<64x128xf32>,
    %cst_162 = arith.constant 0.000000e+00 : f32
    %268 = vector.broadcast %cst_162 : f32 to vector<8x32xf32>
    %c0_163 = arith.constant 0 : index
    %c0_164 = arith.constant 0 : index
    %269 = vector.load %arg15[%c0_163, %c0_164] : memref<8x32xf32, #tpu.memory_space<vmem>>, vector<8x32xf32>
    tpu.vector_store %arg15[%c0_163, %c0_164], %268 {strides = array<i32>} : memref<8x32xf32, #tpu.memory_space<vmem>>, vector<8x32xf32>,
    %cst_165 = arith.constant 0.000000e+00 : f32
    %270 = vector.broadcast %cst_165 : f32 to vector<8x32xf32>
    %c0_166 = arith.constant 0 : index
    %c0_167 = arith.constant 0 : index
    %271 = vector.load %arg16[%c0_166, %c0_167] : memref<8x32xf32, #tpu.memory_space<vmem>>, vector<8x32xf32>
    tpu.vector_store %arg16[%c0_166, %c0_167], %270 {strides = array<i32>} : memref<8x32xf32, #tpu.memory_space<vmem>>, vector<8x32xf32>,
    %c0_i32_168 = arith.constant 0 : i32
    %c8_i32_169 = arith.constant 8 : i32
    %272 = arith.muli %c0_i32_168, %c8_i32_169 : i32
    %273 = tpu.assume_multiple %272, 8 : i32
    %274 = arith.index_cast %273 : i32 to index
    %c0_170 = arith.constant 0 : index
    %275 = vector.load %arg12[%274, %c0_170] : memref<64x128xf32, #tpu.memory_space<vmem>>, vector<8x128xf32>
    %c0_171 = arith.constant 0 : index
    %c0_172 = arith.constant 0 : index
    %276 = vector.load %arg15[%c0_171, %c0_172] : memref<8x32xf32, #tpu.memory_space<vmem>>, vector<8x32xf32>
    %c0_173 = arith.constant 0 : index
    %c0_174 = arith.constant 0 : index
    %277 = vector.load %arg5[%c0_173, %c0_174] : memref<32x128xf32, #tpu.memory_space<vmem>>, vector<32x128xf32>
    %cst_175 = arith.constant dense<0.000000e+00> : vector<8x128xf32>
    %278 = tpu.matmul %276, %277, %cst_175 {dimension_numbers = #tpu.dot_dimension_numbers<[1], [0], [0], [1], [0, 0, 1, 1], [], []>} : vector<8x32xf32>, vector<32x128xf32>, vector<8x128xf32> -> vector<8x128xf32>
    %279 = arith.addf %275, %278 : vector<8x128xf32>
    %280 = arith.negf %279 : vector<8x128xf32>
    %281 = math.exp %280 : vector<8x128xf32>
    %cst_176 = arith.constant 1.000000e+00 : f32
    %282 = vector.broadcast %cst_176 : f32 to vector<8x128xf32>
    %283 = arith.addf %282, %281 : vector<8x128xf32>
    %284 = arith.divf %282, %283 : vector<8x128xf32>
    %285 = vector.extract_strided_slice %284 {offsets = [0, 0], sizes = [8, 32], strides = [1, 1]} : vector<8x128xf32> to vector<8x32xf32>
    %286 = vector.extract_strided_slice %284 {offsets = [0, 32], sizes = [8, 32], strides = [1, 1]} : vector<8x128xf32> to vector<8x32xf32>
    %287 = vector.extract_strided_slice %284 {offsets = [0, 64], sizes = [8, 32], strides = [1, 1]} : vector<8x128xf32> to vector<8x32xf32>
    %cst_177 = arith.constant 2.000000e+00 : f32
    %288 = vector.broadcast %cst_177 : f32 to vector<8x32xf32>
    %289 = arith.mulf %288, %287 : vector<8x32xf32>
    %cst_178 = arith.constant 1.000000e+00 : f32
    %290 = vector.broadcast %cst_178 : f32 to vector<8x32xf32>
    %291 = arith.subf %289, %290 : vector<8x32xf32>
    %292 = vector.extract_strided_slice %284 {offsets = [0, 96], sizes = [8, 32], strides = [1, 1]} : vector<8x128xf32> to vector<8x32xf32>
    %c0_179 = arith.constant 0 : index
    %c0_180 = arith.constant 0 : index
    %293 = vector.load %arg16[%c0_179, %c0_180] : memref<8x32xf32, #tpu.memory_space<vmem>>, vector<8x32xf32>
    %294 = arith.mulf %286, %293 : vector<8x32xf32>
    %295 = arith.mulf %285, %291 : vector<8x32xf32>
    %296 = arith.addf %294, %295 : vector<8x32xf32>
    %297 = math.tanh %296 : vector<8x32xf32>
    %298 = arith.mulf %292, %297 : vector<8x32xf32>
    %c0_181 = arith.constant 0 : index
    %c0_182 = arith.constant 0 : index
    %299 = vector.load %arg16[%c0_181, %c0_182] : memref<8x32xf32, #tpu.memory_space<vmem>>, vector<8x32xf32>
    tpu.vector_store %arg16[%c0_181, %c0_182], %296 {strides = array<i32>} : memref<8x32xf32, #tpu.memory_space<vmem>>, vector<8x32xf32>,
    %c0_183 = arith.constant 0 : index
    %c0_184 = arith.constant 0 : index
    %300 = vector.load %arg15[%c0_183, %c0_184] : memref<8x32xf32, #tpu.memory_space<vmem>>, vector<8x32xf32>
    tpu.vector_store %arg15[%c0_183, %c0_184], %298 {strides = array<i32>} : memref<8x32xf32, #tpu.memory_space<vmem>>, vector<8x32xf32>,
    %c1_i32_185 = arith.constant 1 : i32
    %c8_i32_186 = arith.constant 8 : i32
    %301 = arith.muli %c1_i32_185, %c8_i32_186 : i32
    %302 = tpu.assume_multiple %301, 8 : i32
    %303 = arith.index_cast %302 : i32 to index
    %c0_187 = arith.constant 0 : index
    %304 = vector.load %arg12[%303, %c0_187] : memref<64x128xf32, #tpu.memory_space<vmem>>, vector<8x128xf32>
    %c0_188 = arith.constant 0 : index
    %c0_189 = arith.constant 0 : index
    %305 = vector.load %arg15[%c0_188, %c0_189] : memref<8x32xf32, #tpu.memory_space<vmem>>, vector<8x32xf32>
    %c0_190 = arith.constant 0 : index
    %c0_191 = arith.constant 0 : index
    %306 = vector.load %arg5[%c0_190, %c0_191] : memref<32x128xf32, #tpu.memory_space<vmem>>, vector<32x128xf32>
    %cst_192 = arith.constant dense<0.000000e+00> : vector<8x128xf32>
    %307 = tpu.matmul %305, %306, %cst_192 {dimension_numbers = #tpu.dot_dimension_numbers<[1], [0], [0], [1], [0, 0, 1, 1], [], []>} : vector<8x32xf32>, vector<32x128xf32>, vector<8x128xf32> -> vector<8x128xf32>
    %308 = arith.addf %304, %307 : vector<8x128xf32>
    %309 = arith.negf %308 : vector<8x128xf32>
    %310 = math.exp %309 : vector<8x128xf32>
    %cst_193 = arith.constant 1.000000e+00 : f32
    %311 = vector.broadcast %cst_193 : f32 to vector<8x128xf32>
    %312 = arith.addf %311, %310 : vector<8x128xf32>
    %313 = arith.divf %311, %312 : vector<8x128xf32>
    %314 = vector.extract_strided_slice %313 {offsets = [0, 0], sizes = [8, 32], strides = [1, 1]} : vector<8x128xf32> to vector<8x32xf32>
    %315 = vector.extract_strided_slice %313 {offsets = [0, 32], sizes = [8, 32], strides = [1, 1]} : vector<8x128xf32> to vector<8x32xf32>
    %316 = vector.extract_strided_slice %313 {offsets = [0, 64], sizes = [8, 32], strides = [1, 1]} : vector<8x128xf32> to vector<8x32xf32>
    %cst_194 = arith.constant 2.000000e+00 : f32
    %317 = vector.broadcast %cst_194 : f32 to vector<8x32xf32>
    %318 = arith.mulf %317, %316 : vector<8x32xf32>
    %cst_195 = arith.constant 1.000000e+00 : f32
    %319 = vector.broadcast %cst_195 : f32 to vector<8x32xf32>
    %320 = arith.subf %318, %319 : vector<8x32xf32>
    %321 = vector.extract_strided_slice %313 {offsets = [0, 96], sizes = [8, 32], strides = [1, 1]} : vector<8x128xf32> to vector<8x32xf32>
    %c0_196 = arith.constant 0 : index
    %c0_197 = arith.constant 0 : index
    %322 = vector.load %arg16[%c0_196, %c0_197] : memref<8x32xf32, #tpu.memory_space<vmem>>, vector<8x32xf32>
    %323 = arith.mulf %315, %322 : vector<8x32xf32>
    %324 = arith.mulf %314, %320 : vector<8x32xf32>
    %325 = arith.addf %323, %324 : vector<8x32xf32>
    %326 = math.tanh %325 : vector<8x32xf32>
    %327 = arith.mulf %321, %326 : vector<8x32xf32>
    %c0_198 = arith.constant 0 : index
    %c0_199 = arith.constant 0 : index
    %328 = vector.load %arg16[%c0_198, %c0_199] : memref<8x32xf32, #tpu.memory_space<vmem>>, vector<8x32xf32>
    tpu.vector_store %arg16[%c0_198, %c0_199], %325 {strides = array<i32>} : memref<8x32xf32, #tpu.memory_space<vmem>>, vector<8x32xf32>,
    %c0_200 = arith.constant 0 : index
    %c0_201 = arith.constant 0 : index
    %329 = vector.load %arg15[%c0_200, %c0_201] : memref<8x32xf32, #tpu.memory_space<vmem>>, vector<8x32xf32>
    tpu.vector_store %arg15[%c0_200, %c0_201], %327 {strides = array<i32>} : memref<8x32xf32, #tpu.memory_space<vmem>>, vector<8x32xf32>,
    %c2_i32_202 = arith.constant 2 : i32
    %c8_i32_203 = arith.constant 8 : i32
    %330 = arith.muli %c2_i32_202, %c8_i32_203 : i32
    %331 = tpu.assume_multiple %330, 8 : i32
    %332 = arith.index_cast %331 : i32 to index
    %c0_204 = arith.constant 0 : index
    %333 = vector.load %arg12[%332, %c0_204] : memref<64x128xf32, #tpu.memory_space<vmem>>, vector<8x128xf32>
    %c0_205 = arith.constant 0 : index
    %c0_206 = arith.constant 0 : index
    %334 = vector.load %arg15[%c0_205, %c0_206] : memref<8x32xf32, #tpu.memory_space<vmem>>, vector<8x32xf32>
    %c0_207 = arith.constant 0 : index
    %c0_208 = arith.constant 0 : index
    %335 = vector.load %arg5[%c0_207, %c0_208] : memref<32x128xf32, #tpu.memory_space<vmem>>, vector<32x128xf32>
    %cst_209 = arith.constant dense<0.000000e+00> : vector<8x128xf32>
    %336 = tpu.matmul %334, %335, %cst_209 {dimension_numbers = #tpu.dot_dimension_numbers<[1], [0], [0], [1], [0, 0, 1, 1], [], []>} : vector<8x32xf32>, vector<32x128xf32>, vector<8x128xf32> -> vector<8x128xf32>
    %337 = arith.addf %333, %336 : vector<8x128xf32>
    %338 = arith.negf %337 : vector<8x128xf32>
    %339 = math.exp %338 : vector<8x128xf32>
    %cst_210 = arith.constant 1.000000e+00 : f32
    %340 = vector.broadcast %cst_210 : f32 to vector<8x128xf32>
    %341 = arith.addf %340, %339 : vector<8x128xf32>
    %342 = arith.divf %340, %341 : vector<8x128xf32>
    %343 = vector.extract_strided_slice %342 {offsets = [0, 0], sizes = [8, 32], strides = [1, 1]} : vector<8x128xf32> to vector<8x32xf32>
    %344 = vector.extract_strided_slice %342 {offsets = [0, 32], sizes = [8, 32], strides = [1, 1]} : vector<8x128xf32> to vector<8x32xf32>
    %345 = vector.extract_strided_slice %342 {offsets = [0, 64], sizes = [8, 32], strides = [1, 1]} : vector<8x128xf32> to vector<8x32xf32>
    %cst_211 = arith.constant 2.000000e+00 : f32
    %346 = vector.broadcast %cst_211 : f32 to vector<8x32xf32>
    %347 = arith.mulf %346, %345 : vector<8x32xf32>
    %cst_212 = arith.constant 1.000000e+00 : f32
    %348 = vector.broadcast %cst_212 : f32 to vector<8x32xf32>
    %349 = arith.subf %347, %348 : vector<8x32xf32>
    %350 = vector.extract_strided_slice %342 {offsets = [0, 96], sizes = [8, 32], strides = [1, 1]} : vector<8x128xf32> to vector<8x32xf32>
    %c0_213 = arith.constant 0 : index
    %c0_214 = arith.constant 0 : index
    %351 = vector.load %arg16[%c0_213, %c0_214] : memref<8x32xf32, #tpu.memory_space<vmem>>, vector<8x32xf32>
    %352 = arith.mulf %344, %351 : vector<8x32xf32>
    %353 = arith.mulf %343, %349 : vector<8x32xf32>
    %354 = arith.addf %352, %353 : vector<8x32xf32>
    %355 = math.tanh %354 : vector<8x32xf32>
    %356 = arith.mulf %350, %355 : vector<8x32xf32>
    %c0_215 = arith.constant 0 : index
    %c0_216 = arith.constant 0 : index
    %357 = vector.load %arg16[%c0_215, %c0_216] : memref<8x32xf32, #tpu.memory_space<vmem>>, vector<8x32xf32>
    tpu.vector_store %arg16[%c0_215, %c0_216], %354 {strides = array<i32>} : memref<8x32xf32, #tpu.memory_space<vmem>>, vector<8x32xf32>,
    %c0_217 = arith.constant 0 : index
    %c0_218 = arith.constant 0 : index
    %358 = vector.load %arg15[%c0_217, %c0_218] : memref<8x32xf32, #tpu.memory_space<vmem>>, vector<8x32xf32>
    tpu.vector_store %arg15[%c0_217, %c0_218], %356 {strides = array<i32>} : memref<8x32xf32, #tpu.memory_space<vmem>>, vector<8x32xf32>,
    %c3_i32_219 = arith.constant 3 : i32
    %c8_i32_220 = arith.constant 8 : i32
    %359 = arith.muli %c3_i32_219, %c8_i32_220 : i32
    %360 = tpu.assume_multiple %359, 8 : i32
    %361 = arith.index_cast %360 : i32 to index
    %c0_221 = arith.constant 0 : index
    %362 = vector.load %arg12[%361, %c0_221] : memref<64x128xf32, #tpu.memory_space<vmem>>, vector<8x128xf32>
    %c0_222 = arith.constant 0 : index
    %c0_223 = arith.constant 0 : index
    %363 = vector.load %arg15[%c0_222, %c0_223] : memref<8x32xf32, #tpu.memory_space<vmem>>, vector<8x32xf32>
    %c0_224 = arith.constant 0 : index
    %c0_225 = arith.constant 0 : index
    %364 = vector.load %arg5[%c0_224, %c0_225] : memref<32x128xf32, #tpu.memory_space<vmem>>, vector<32x128xf32>
    %cst_226 = arith.constant dense<0.000000e+00> : vector<8x128xf32>
    %365 = tpu.matmul %363, %364, %cst_226 {dimension_numbers = #tpu.dot_dimension_numbers<[1], [0], [0], [1], [0, 0, 1, 1], [], []>} : vector<8x32xf32>, vector<32x128xf32>, vector<8x128xf32> -> vector<8x128xf32>
    %366 = arith.addf %362, %365 : vector<8x128xf32>
    %367 = arith.negf %366 : vector<8x128xf32>
    %368 = math.exp %367 : vector<8x128xf32>
    %cst_227 = arith.constant 1.000000e+00 : f32
    %369 = vector.broadcast %cst_227 : f32 to vector<8x128xf32>
    %370 = arith.addf %369, %368 : vector<8x128xf32>
    %371 = arith.divf %369, %370 : vector<8x128xf32>
    %372 = vector.extract_strided_slice %371 {offsets = [0, 0], sizes = [8, 32], strides = [1, 1]} : vector<8x128xf32> to vector<8x32xf32>
    %373 = vector.extract_strided_slice %371 {offsets = [0, 32], sizes = [8, 32], strides = [1, 1]} : vector<8x128xf32> to vector<8x32xf32>
    %374 = vector.extract_strided_slice %371 {offsets = [0, 64], sizes = [8, 32], strides = [1, 1]} : vector<8x128xf32> to vector<8x32xf32>
    %cst_228 = arith.constant 2.000000e+00 : f32
    %375 = vector.broadcast %cst_228 : f32 to vector<8x32xf32>
    %376 = arith.mulf %375, %374 : vector<8x32xf32>
    %cst_229 = arith.constant 1.000000e+00 : f32
    %377 = vector.broadcast %cst_229 : f32 to vector<8x32xf32>
    %378 = arith.subf %376, %377 : vector<8x32xf32>
    %379 = vector.extract_strided_slice %371 {offsets = [0, 96], sizes = [8, 32], strides = [1, 1]} : vector<8x128xf32> to vector<8x32xf32>
    %c0_230 = arith.constant 0 : index
    %c0_231 = arith.constant 0 : index
    %380 = vector.load %arg16[%c0_230, %c0_231] : memref<8x32xf32, #tpu.memory_space<vmem>>, vector<8x32xf32>
    %381 = arith.mulf %373, %380 : vector<8x32xf32>
    %382 = arith.mulf %372, %378 : vector<8x32xf32>
    %383 = arith.addf %381, %382 : vector<8x32xf32>
    %384 = math.tanh %383 : vector<8x32xf32>
    %385 = arith.mulf %379, %384 : vector<8x32xf32>
    %c0_232 = arith.constant 0 : index
    %c0_233 = arith.constant 0 : index
    %386 = vector.load %arg16[%c0_232, %c0_233] : memref<8x32xf32, #tpu.memory_space<vmem>>, vector<8x32xf32>
    tpu.vector_store %arg16[%c0_232, %c0_233], %383 {strides = array<i32>} : memref<8x32xf32, #tpu.memory_space<vmem>>, vector<8x32xf32>,
    %c0_234 = arith.constant 0 : index
    %c0_235 = arith.constant 0 : index
    %387 = vector.load %arg15[%c0_234, %c0_235] : memref<8x32xf32, #tpu.memory_space<vmem>>, vector<8x32xf32>
    tpu.vector_store %arg15[%c0_234, %c0_235], %385 {strides = array<i32>} : memref<8x32xf32, #tpu.memory_space<vmem>>, vector<8x32xf32>,
    %c4_i32_236 = arith.constant 4 : i32
    %c8_i32_237 = arith.constant 8 : i32
    %388 = arith.muli %c4_i32_236, %c8_i32_237 : i32
    %389 = tpu.assume_multiple %388, 8 : i32
    %390 = arith.index_cast %389 : i32 to index
    %c0_238 = arith.constant 0 : index
    %391 = vector.load %arg12[%390, %c0_238] : memref<64x128xf32, #tpu.memory_space<vmem>>, vector<8x128xf32>
    %c0_239 = arith.constant 0 : index
    %c0_240 = arith.constant 0 : index
    %392 = vector.load %arg15[%c0_239, %c0_240] : memref<8x32xf32, #tpu.memory_space<vmem>>, vector<8x32xf32>
    %c0_241 = arith.constant 0 : index
    %c0_242 = arith.constant 0 : index
    %393 = vector.load %arg5[%c0_241, %c0_242] : memref<32x128xf32, #tpu.memory_space<vmem>>, vector<32x128xf32>
    %cst_243 = arith.constant dense<0.000000e+00> : vector<8x128xf32>
    %394 = tpu.matmul %392, %393, %cst_243 {dimension_numbers = #tpu.dot_dimension_numbers<[1], [0], [0], [1], [0, 0, 1, 1], [], []>} : vector<8x32xf32>, vector<32x128xf32>, vector<8x128xf32> -> vector<8x128xf32>
    %395 = arith.addf %391, %394 : vector<8x128xf32>
    %396 = arith.negf %395 : vector<8x128xf32>
    %397 = math.exp %396 : vector<8x128xf32>
    %cst_244 = arith.constant 1.000000e+00 : f32
    %398 = vector.broadcast %cst_244 : f32 to vector<8x128xf32>
    %399 = arith.addf %398, %397 : vector<8x128xf32>
    %400 = arith.divf %398, %399 : vector<8x128xf32>
    %401 = vector.extract_strided_slice %400 {offsets = [0, 0], sizes = [8, 32], strides = [1, 1]} : vector<8x128xf32> to vector<8x32xf32>
    %402 = vector.extract_strided_slice %400 {offsets = [0, 32], sizes = [8, 32], strides = [1, 1]} : vector<8x128xf32> to vector<8x32xf32>
    %403 = vector.extract_strided_slice %400 {offsets = [0, 64], sizes = [8, 32], strides = [1, 1]} : vector<8x128xf32> to vector<8x32xf32>
    %cst_245 = arith.constant 2.000000e+00 : f32
    %404 = vector.broadcast %cst_245 : f32 to vector<8x32xf32>
    %405 = arith.mulf %404, %403 : vector<8x32xf32>
    %cst_246 = arith.constant 1.000000e+00 : f32
    %406 = vector.broadcast %cst_246 : f32 to vector<8x32xf32>
    %407 = arith.subf %405, %406 : vector<8x32xf32>
    %408 = vector.extract_strided_slice %400 {offsets = [0, 96], sizes = [8, 32], strides = [1, 1]} : vector<8x128xf32> to vector<8x32xf32>
    %c0_247 = arith.constant 0 : index
    %c0_248 = arith.constant 0 : index
    %409 = vector.load %arg16[%c0_247, %c0_248] : memref<8x32xf32, #tpu.memory_space<vmem>>, vector<8x32xf32>
    %410 = arith.mulf %402, %409 : vector<8x32xf32>
    %411 = arith.mulf %401, %407 : vector<8x32xf32>
    %412 = arith.addf %410, %411 : vector<8x32xf32>
    %413 = math.tanh %412 : vector<8x32xf32>
    %414 = arith.mulf %408, %413 : vector<8x32xf32>
    %c0_249 = arith.constant 0 : index
    %c0_250 = arith.constant 0 : index
    %415 = vector.load %arg16[%c0_249, %c0_250] : memref<8x32xf32, #tpu.memory_space<vmem>>, vector<8x32xf32>
    tpu.vector_store %arg16[%c0_249, %c0_250], %412 {strides = array<i32>} : memref<8x32xf32, #tpu.memory_space<vmem>>, vector<8x32xf32>,
    %c0_251 = arith.constant 0 : index
    %c0_252 = arith.constant 0 : index
    %416 = vector.load %arg15[%c0_251, %c0_252] : memref<8x32xf32, #tpu.memory_space<vmem>>, vector<8x32xf32>
    tpu.vector_store %arg15[%c0_251, %c0_252], %414 {strides = array<i32>} : memref<8x32xf32, #tpu.memory_space<vmem>>, vector<8x32xf32>,
    %c5_i32_253 = arith.constant 5 : i32
    %c8_i32_254 = arith.constant 8 : i32
    %417 = arith.muli %c5_i32_253, %c8_i32_254 : i32
    %418 = tpu.assume_multiple %417, 8 : i32
    %419 = arith.index_cast %418 : i32 to index
    %c0_255 = arith.constant 0 : index
    %420 = vector.load %arg12[%419, %c0_255] : memref<64x128xf32, #tpu.memory_space<vmem>>, vector<8x128xf32>
    %c0_256 = arith.constant 0 : index
    %c0_257 = arith.constant 0 : index
    %421 = vector.load %arg15[%c0_256, %c0_257] : memref<8x32xf32, #tpu.memory_space<vmem>>, vector<8x32xf32>
    %c0_258 = arith.constant 0 : index
    %c0_259 = arith.constant 0 : index
    %422 = vector.load %arg5[%c0_258, %c0_259] : memref<32x128xf32, #tpu.memory_space<vmem>>, vector<32x128xf32>
    %cst_260 = arith.constant dense<0.000000e+00> : vector<8x128xf32>
    %423 = tpu.matmul %421, %422, %cst_260 {dimension_numbers = #tpu.dot_dimension_numbers<[1], [0], [0], [1], [0, 0, 1, 1], [], []>} : vector<8x32xf32>, vector<32x128xf32>, vector<8x128xf32> -> vector<8x128xf32>
    %424 = arith.addf %420, %423 : vector<8x128xf32>
    %425 = arith.negf %424 : vector<8x128xf32>
    %426 = math.exp %425 : vector<8x128xf32>
    %cst_261 = arith.constant 1.000000e+00 : f32
    %427 = vector.broadcast %cst_261 : f32 to vector<8x128xf32>
    %428 = arith.addf %427, %426 : vector<8x128xf32>
    %429 = arith.divf %427, %428 : vector<8x128xf32>
    %430 = vector.extract_strided_slice %429 {offsets = [0, 0], sizes = [8, 32], strides = [1, 1]} : vector<8x128xf32> to vector<8x32xf32>
    %431 = vector.extract_strided_slice %429 {offsets = [0, 32], sizes = [8, 32], strides = [1, 1]} : vector<8x128xf32> to vector<8x32xf32>
    %432 = vector.extract_strided_slice %429 {offsets = [0, 64], sizes = [8, 32], strides = [1, 1]} : vector<8x128xf32> to vector<8x32xf32>
    %cst_262 = arith.constant 2.000000e+00 : f32
    %433 = vector.broadcast %cst_262 : f32 to vector<8x32xf32>
    %434 = arith.mulf %433, %432 : vector<8x32xf32>
    %cst_263 = arith.constant 1.000000e+00 : f32
    %435 = vector.broadcast %cst_263 : f32 to vector<8x32xf32>
    %436 = arith.subf %434, %435 : vector<8x32xf32>
    %437 = vector.extract_strided_slice %429 {offsets = [0, 96], sizes = [8, 32], strides = [1, 1]} : vector<8x128xf32> to vector<8x32xf32>
    %c0_264 = arith.constant 0 : index
    %c0_265 = arith.constant 0 : index
    %438 = vector.load %arg16[%c0_264, %c0_265] : memref<8x32xf32, #tpu.memory_space<vmem>>, vector<8x32xf32>
    %439 = arith.mulf %431, %438 : vector<8x32xf32>
    %440 = arith.mulf %430, %436 : vector<8x32xf32>
    %441 = arith.addf %439, %440 : vector<8x32xf32>
    %442 = math.tanh %441 : vector<8x32xf32>
    %443 = arith.mulf %437, %442 : vector<8x32xf32>
    %c0_266 = arith.constant 0 : index
    %c0_267 = arith.constant 0 : index
    %444 = vector.load %arg16[%c0_266, %c0_267] : memref<8x32xf32, #tpu.memory_space<vmem>>, vector<8x32xf32>
    tpu.vector_store %arg16[%c0_266, %c0_267], %441 {strides = array<i32>} : memref<8x32xf32, #tpu.memory_space<vmem>>, vector<8x32xf32>,
    %c0_268 = arith.constant 0 : index
    %c0_269 = arith.constant 0 : index
    %445 = vector.load %arg15[%c0_268, %c0_269] : memref<8x32xf32, #tpu.memory_space<vmem>>, vector<8x32xf32>
    tpu.vector_store %arg15[%c0_268, %c0_269], %443 {strides = array<i32>} : memref<8x32xf32, #tpu.memory_space<vmem>>, vector<8x32xf32>,
    %c6_i32_270 = arith.constant 6 : i32
    %c8_i32_271 = arith.constant 8 : i32
    %446 = arith.muli %c6_i32_270, %c8_i32_271 : i32
    %447 = tpu.assume_multiple %446, 8 : i32
    %448 = arith.index_cast %447 : i32 to index
    %c0_272 = arith.constant 0 : index
    %449 = vector.load %arg12[%448, %c0_272] : memref<64x128xf32, #tpu.memory_space<vmem>>, vector<8x128xf32>
    %c0_273 = arith.constant 0 : index
    %c0_274 = arith.constant 0 : index
    %450 = vector.load %arg15[%c0_273, %c0_274] : memref<8x32xf32, #tpu.memory_space<vmem>>, vector<8x32xf32>
    %c0_275 = arith.constant 0 : index
    %c0_276 = arith.constant 0 : index
    %451 = vector.load %arg5[%c0_275, %c0_276] : memref<32x128xf32, #tpu.memory_space<vmem>>, vector<32x128xf32>
    %cst_277 = arith.constant dense<0.000000e+00> : vector<8x128xf32>
    %452 = tpu.matmul %450, %451, %cst_277 {dimension_numbers = #tpu.dot_dimension_numbers<[1], [0], [0], [1], [0, 0, 1, 1], [], []>} : vector<8x32xf32>, vector<32x128xf32>, vector<8x128xf32> -> vector<8x128xf32>
    %453 = arith.addf %449, %452 : vector<8x128xf32>
    %454 = arith.negf %453 : vector<8x128xf32>
    %455 = math.exp %454 : vector<8x128xf32>
    %cst_278 = arith.constant 1.000000e+00 : f32
    %456 = vector.broadcast %cst_278 : f32 to vector<8x128xf32>
    %457 = arith.addf %456, %455 : vector<8x128xf32>
    %458 = arith.divf %456, %457 : vector<8x128xf32>
    %459 = vector.extract_strided_slice %458 {offsets = [0, 0], sizes = [8, 32], strides = [1, 1]} : vector<8x128xf32> to vector<8x32xf32>
    %460 = vector.extract_strided_slice %458 {offsets = [0, 32], sizes = [8, 32], strides = [1, 1]} : vector<8x128xf32> to vector<8x32xf32>
    %461 = vector.extract_strided_slice %458 {offsets = [0, 64], sizes = [8, 32], strides = [1, 1]} : vector<8x128xf32> to vector<8x32xf32>
    %cst_279 = arith.constant 2.000000e+00 : f32
    %462 = vector.broadcast %cst_279 : f32 to vector<8x32xf32>
    %463 = arith.mulf %462, %461 : vector<8x32xf32>
    %cst_280 = arith.constant 1.000000e+00 : f32
    %464 = vector.broadcast %cst_280 : f32 to vector<8x32xf32>
    %465 = arith.subf %463, %464 : vector<8x32xf32>
    %466 = vector.extract_strided_slice %458 {offsets = [0, 96], sizes = [8, 32], strides = [1, 1]} : vector<8x128xf32> to vector<8x32xf32>
    %c0_281 = arith.constant 0 : index
    %c0_282 = arith.constant 0 : index
    %467 = vector.load %arg16[%c0_281, %c0_282] : memref<8x32xf32, #tpu.memory_space<vmem>>, vector<8x32xf32>
    %468 = arith.mulf %460, %467 : vector<8x32xf32>
    %469 = arith.mulf %459, %465 : vector<8x32xf32>
    %470 = arith.addf %468, %469 : vector<8x32xf32>
    %471 = math.tanh %470 : vector<8x32xf32>
    %472 = arith.mulf %466, %471 : vector<8x32xf32>
    %c0_283 = arith.constant 0 : index
    %c0_284 = arith.constant 0 : index
    %473 = vector.load %arg16[%c0_283, %c0_284] : memref<8x32xf32, #tpu.memory_space<vmem>>, vector<8x32xf32>
    tpu.vector_store %arg16[%c0_283, %c0_284], %470 {strides = array<i32>} : memref<8x32xf32, #tpu.memory_space<vmem>>, vector<8x32xf32>,
    %c0_285 = arith.constant 0 : index
    %c0_286 = arith.constant 0 : index
    %474 = vector.load %arg15[%c0_285, %c0_286] : memref<8x32xf32, #tpu.memory_space<vmem>>, vector<8x32xf32>
    tpu.vector_store %arg15[%c0_285, %c0_286], %472 {strides = array<i32>} : memref<8x32xf32, #tpu.memory_space<vmem>>, vector<8x32xf32>,
    %c7_i32_287 = arith.constant 7 : i32
    %c8_i32_288 = arith.constant 8 : i32
    %475 = arith.muli %c7_i32_287, %c8_i32_288 : i32
    %476 = tpu.assume_multiple %475, 8 : i32
    %477 = arith.index_cast %476 : i32 to index
    %c0_289 = arith.constant 0 : index
    %478 = vector.load %arg12[%477, %c0_289] : memref<64x128xf32, #tpu.memory_space<vmem>>, vector<8x128xf32>
    %c0_290 = arith.constant 0 : index
    %c0_291 = arith.constant 0 : index
    %479 = vector.load %arg15[%c0_290, %c0_291] : memref<8x32xf32, #tpu.memory_space<vmem>>, vector<8x32xf32>
    %c0_292 = arith.constant 0 : index
    %c0_293 = arith.constant 0 : index
    %480 = vector.load %arg5[%c0_292, %c0_293] : memref<32x128xf32, #tpu.memory_space<vmem>>, vector<32x128xf32>
    %cst_294 = arith.constant dense<0.000000e+00> : vector<8x128xf32>
    %481 = tpu.matmul %479, %480, %cst_294 {dimension_numbers = #tpu.dot_dimension_numbers<[1], [0], [0], [1], [0, 0, 1, 1], [], []>} : vector<8x32xf32>, vector<32x128xf32>, vector<8x128xf32> -> vector<8x128xf32>
    %482 = arith.addf %478, %481 : vector<8x128xf32>
    %483 = arith.negf %482 : vector<8x128xf32>
    %484 = math.exp %483 : vector<8x128xf32>
    %cst_295 = arith.constant 1.000000e+00 : f32
    %485 = vector.broadcast %cst_295 : f32 to vector<8x128xf32>
    %486 = arith.addf %485, %484 : vector<8x128xf32>
    %487 = arith.divf %485, %486 : vector<8x128xf32>
    %488 = vector.extract_strided_slice %487 {offsets = [0, 0], sizes = [8, 32], strides = [1, 1]} : vector<8x128xf32> to vector<8x32xf32>
    %489 = vector.extract_strided_slice %487 {offsets = [0, 32], sizes = [8, 32], strides = [1, 1]} : vector<8x128xf32> to vector<8x32xf32>
    %490 = vector.extract_strided_slice %487 {offsets = [0, 64], sizes = [8, 32], strides = [1, 1]} : vector<8x128xf32> to vector<8x32xf32>
    %cst_296 = arith.constant 2.000000e+00 : f32
    %491 = vector.broadcast %cst_296 : f32 to vector<8x32xf32>
    %492 = arith.mulf %491, %490 : vector<8x32xf32>
    %cst_297 = arith.constant 1.000000e+00 : f32
    %493 = vector.broadcast %cst_297 : f32 to vector<8x32xf32>
    %494 = arith.subf %492, %493 : vector<8x32xf32>
    %495 = vector.extract_strided_slice %487 {offsets = [0, 96], sizes = [8, 32], strides = [1, 1]} : vector<8x128xf32> to vector<8x32xf32>
    %c0_298 = arith.constant 0 : index
    %c0_299 = arith.constant 0 : index
    %496 = vector.load %arg16[%c0_298, %c0_299] : memref<8x32xf32, #tpu.memory_space<vmem>>, vector<8x32xf32>
    %497 = arith.mulf %489, %496 : vector<8x32xf32>
    %498 = arith.mulf %488, %494 : vector<8x32xf32>
    %499 = arith.addf %497, %498 : vector<8x32xf32>
    %500 = math.tanh %499 : vector<8x32xf32>
    %501 = arith.mulf %495, %500 : vector<8x32xf32>
    %c0_300 = arith.constant 0 : index
    %c0_301 = arith.constant 0 : index
    %502 = vector.load %arg16[%c0_300, %c0_301] : memref<8x32xf32, #tpu.memory_space<vmem>>, vector<8x32xf32>
    tpu.vector_store %arg16[%c0_300, %c0_301], %499 {strides = array<i32>} : memref<8x32xf32, #tpu.memory_space<vmem>>, vector<8x32xf32>,
    %c0_302 = arith.constant 0 : index
    %c0_303 = arith.constant 0 : index
    %503 = vector.load %arg15[%c0_302, %c0_303] : memref<8x32xf32, #tpu.memory_space<vmem>>, vector<8x32xf32>
    tpu.vector_store %arg15[%c0_302, %c0_303], %501 {strides = array<i32>} : memref<8x32xf32, #tpu.memory_space<vmem>>, vector<8x32xf32>,
    %c8_i32_304 = arith.constant 8 : i32
    %c0_305 = arith.constant 0 : index
    %c0_306 = arith.constant 0 : index
    %504 = vector.load %arg15[%c0_305, %c0_306] : memref<8x32xf32, #tpu.memory_space<vmem>>, vector<8x32xf32>
    %c8 = arith.constant 8 : index
    %c0_307 = arith.constant 0 : index
    %505 = vector.load %arg14[%c8, %c0_307] : memref<16x32xf32, #tpu.memory_space<vmem>>, vector<8x32xf32>
    tpu.vector_store %arg14[%c8, %c0_307], %504 {strides = array<i32>} : memref<16x32xf32, #tpu.memory_space<vmem>>, vector<8x32xf32>,
    %c0_308 = arith.constant 0 : index
    %c0_309 = arith.constant 0 : index
    %506 = vector.load %arg14[%c0_308, %c0_309] : memref<16x32xf32, #tpu.memory_space<vmem>>, vector<16x32xf32>
    %cst_310 = arith.constant 0.000000e+00 : f32
    %507 = vector.broadcast %cst_310 : f32 to vector<16x32xf32>
    %508 = arith.maximumf %506, %507 : vector<16x32xf32>
    %c0_311 = arith.constant 0 : index
    %c0_312 = arith.constant 0 : index
    %509 = vector.load %arg7[%c0_311, %c0_312] : memref<32x256xf32, #tpu.memory_space<vmem>>, vector<32x256xf32>
    %cst_313 = arith.constant dense<0.000000e+00> : vector<16x256xf32>
    %510 = tpu.matmul %508, %509, %cst_313 {dimension_numbers = #tpu.dot_dimension_numbers<[1], [0], [0], [1], [0, 0, 1, 1], [], []>} : vector<16x32xf32>, vector<32x256xf32>, vector<16x256xf32> -> vector<16x256xf32>
    %c0_314 = arith.constant 0 : index
    %c0_315 = arith.constant 0 : index
    %511 = vector.load %arg8[%c0_314, %c0_315] : memref<1x256xf32, #tpu.memory_space<vmem>>, vector<1x256xf32>
    %512 = vector.broadcast %511 : vector<1x256xf32> to vector<16x256xf32>
    %513 = arith.addf %510, %512 : vector<16x256xf32>
    %cst_316 = arith.constant 0.000000e+00 : f32
    %514 = vector.broadcast %cst_316 : f32 to vector<16x256xf32>
    %515 = arith.maximumf %513, %514 : vector<16x256xf32>
    %c0_317 = arith.constant 0 : index
    %c0_318 = arith.constant 0 : index
    %516 = vector.load %arg9[%c0_317, %c0_318] : memref<256x128xf32, #tpu.memory_space<vmem>>, vector<256x128xf32>
    %cst_319 = arith.constant dense<0.000000e+00> : vector<16x128xf32>
    %517 = tpu.matmul %515, %516, %cst_319 {dimension_numbers = #tpu.dot_dimension_numbers<[1], [0], [0], [1], [0, 0, 1, 1], [], []>} : vector<16x256xf32>, vector<256x128xf32>, vector<16x128xf32> -> vector<16x128xf32>
    %c0_320 = arith.constant 0 : index
    %c0_321 = arith.constant 0 : index
    %518 = vector.load %arg10[%c0_320, %c0_321] : memref<1x128xf32, #tpu.memory_space<vmem>>, vector<1x128xf32>
    %519 = vector.broadcast %518 : vector<1x128xf32> to vector<16x128xf32>
    %520 = arith.addf %517, %519 : vector<16x128xf32>
    %c0_322 = arith.constant 0 : index
    %c0_323 = arith.constant 0 : index
    %521 = vector.load %arg11[%c0_322, %c0_323] : memref<16x128xf32, #tpu.memory_space<vmem>>, vector<16x128xf32>
    tpu.vector_store %arg11[%c0_322, %c0_323], %520 {strides = array<i32>} : memref<16x128xf32, #tpu.memory_space<vmem>>, vector<16x128xf32>,
    return
  }
}

</mosaic_0001>

<llo_original>
// kernel: lstm_model_forward.1
$region0: #{lstm_model_forward.1}
  #allocation0 [shape = 'u32[]', space=smem, size = 0x4, offset = 0x4, fixed_abs, tag = 'smem constant byte address 0x4 - core index']
  #allocation1 [shape = 'u32[144,128]{1,0:T(1,128)}', space=vmem, size = 0x12000, scoped, tag = 'internal scratch']
  #allocation2 [shape = 'f32[64,128]{1,0:T(8,128)}', space=vmem, size = 0x8000, scoped, tag = 'scratch operand']
  #allocation3 [shape = 'f32[64,32]{1,0:T(8,128)}', space=vmem, size = 0x8000, scoped, tag = 'scratch operand']
  #allocation4 [shape = 'f32[16,32]{1,0:T(8,128)}', space=vmem, size = 0x2000, scoped, tag = 'scratch operand']
  #allocation5 [shape = 'f32[8,32]{1,0:T(8,128)}', space=vmem, size = 0x1000, scoped, tag = 'scratch operand']
  #allocation6 [shape = 'f32[8,32]{1,0:T(8,128)}', space=vmem, size = 0x1000, scoped, tag = 'scratch operand']
  %s0 = inlined_call_operand.vmem [shape: f32[64,4], index: 0, kind: input, shape index: {}]
  %s1 = inlined_call_operand.vmem [shape: f32[4,128], index: 1, kind: input, shape index: {}]
  %s2 = inlined_call_operand.vmem [shape: f32[32,128], index: 2, kind: input, shape index: {}]
  %s3 = inlined_call_operand.vmem [shape: f32[1,128], index: 3, kind: input, shape index: {}]
  %s4 = inlined_call_operand.vmem [shape: f32[32,128], index: 4, kind: input, shape index: {}]
  %s5 = inlined_call_operand.vmem [shape: f32[32,128], index: 5, kind: input, shape index: {}]
  %s6 = inlined_call_operand.vmem [shape: f32[1,128], index: 6, kind: input, shape index: {}]
  %s7 = inlined_call_operand.vmem [shape: f32[32,256], index: 7, kind: input, shape index: {}]
  %s8 = inlined_call_operand.vmem [shape: f32[1,256], index: 8, kind: input, shape index: {}]
  %s9 = inlined_call_operand.vmem [shape: f32[256,128], index: 9, kind: input, shape index: {}]
  %s10 = inlined_call_operand.vmem [shape: f32[1,128], index: 10, kind: input, shape index: {}]
  %s11 = inlined_call_operand.vmem [shape: f32[16,128], index: 11, kind: output, shape index: {}]
  %s12 = sld [smem:[#allocation0]]
  $region54: #{lstm_model_forward.1} parent=0
    _
  %s14 = ssub.s32 1, %s12
  %s15 = scalar_select 0, %s14, %s12
  // Predicated region
  $region2: #{lstm_model_forward.1} parent=0 // pred_check
    _
  $region3: #{lstm_model_forward.1} parent=0 // pred_check_branch
    %17 = sbr.rel (0) target = $region5
  $region4: #{lstm_model_forward.1} parent=0 // pred_region
    _
  $region5: #{lstm_model_forward.1} parent=0 // pred_fallthru
    _
  // Predicated region
  $region6: #{lstm_model_forward.1} parent=0 // pred_check
    _
  $region7: #{lstm_model_forward.1} parent=0 // pred_check_branch
    %19 = sbr.rel (0) target = $region9
  $region8: #{lstm_model_forward.1} parent=0 // pred_region
    _
  $region9: #{lstm_model_forward.1} parent=0 // pred_fallthru
    _
  // Predicated region
  $region10: #{lstm_model_forward.1} parent=0 // pred_check
    _
  $region11: #{lstm_model_forward.1} parent=0 // pred_check_branch
    %21 = sbr.rel (0) target = $region13
  $region12: #{lstm_model_forward.1} parent=0 // pred_region
    _
  $region13: #{lstm_model_forward.1} parent=0 // pred_fallthru
    _
  // Predicated region
  $region14: #{lstm_model_forward.1} parent=0 // pred_check
    _
  $region15: #{lstm_model_forward.1} parent=0 // pred_check_branch
    %23 = sbr.rel (0) target = $region17
  $region16: #{lstm_model_forward.1} parent=0 // pred_region
    _
  $region17: #{lstm_model_forward.1} parent=0 // pred_fallthru
    _
  // Predicated region
  $region18: #{lstm_model_forward.1} parent=0 // pred_check
    _
  $region19: #{lstm_model_forward.1} parent=0 // pred_check_branch
    %25 = sbr.rel (0) target = $region21
  $region20: #{lstm_model_forward.1} parent=0 // pred_region
    _
  $region21: #{lstm_model_forward.1} parent=0 // pred_fallthru
    _
  // Predicated region
  $region22: #{lstm_model_forward.1} parent=0 // pred_check
    _
  $region23: #{lstm_model_forward.1} parent=0 // pred_check_branch
    %27 = sbr.rel (0) target = $region25
  $region24: #{lstm_model_forward.1} parent=0 // pred_region
    _
  $region25: #{lstm_model_forward.1} parent=0 // pred_fallthru
    _
  // Predicated region
  $region26: #{lstm_model_forward.1} parent=0 // pred_check
    _
  $region27: #{lstm_model_forward.1} parent=0 // pred_check_branch
    %29 = sbr.rel (0) target = $region29
  $region28: #{lstm_model_forward.1} parent=0 // pred_region
    _
  $region29: #{lstm_model_forward.1} parent=0 // pred_fallthru
    _
  // Predicated region
  $region30: #{lstm_model_forward.1} parent=0 // pred_check
    _
  $region31: #{lstm_model_forward.1} parent=0 // pred_check_branch
    %31 = sbr.rel (0) target = $region33
  $region32: #{lstm_model_forward.1} parent=0 // pred_region
    _
  $region33: #{lstm_model_forward.1} parent=0 // pred_fallthru
    _
  // Predicated region
  $region34: #{lstm_model_forward.1} parent=0 // pred_check
    _
  $region35: #{lstm_model_forward.1} parent=0 // pred_check_branch
    %33 = sbr.rel (0) target = $region37
  $region36: #{lstm_model_forward.1} parent=0 // pred_region
    _
  $region37: #{lstm_model_forward.1} parent=0 // pred_fallthru
    _
  // Predicated region
  $region38: #{lstm_model_forward.1} parent=0 // pred_check
    _
  $region39: #{lstm_model_forward.1} parent=0 // pred_check_branch
    %35 = sbr.rel (0) target = $region41
  $region40: #{lstm_model_forward.1} parent=0 // pred_region
    _
  $region41: #{lstm_model_forward.1} parent=0 // pred_fallthru
    _
  // Predicated region
  $region42: #{lstm_model_forward.1} parent=0 // pred_check
    _
  $region43: #{lstm_model_forward.1} parent=0 // pred_check_branch
    %37 = sbr.rel (0) target = $region45
  $region44: #{lstm_model_forward.1} parent=0 // pred_region
    _
  $region45: #{lstm_model_forward.1} parent=0 // pred_fallthru
    _
  %v38 = vld [vmem:[%s0] sm:$0xff]
  %v39 = vld [vmem:[%s0 + $0x8] sm:$0xff]
  %v40 = vld [vmem:[%s0 + $0x10] sm:$0xff]
  %v41 = vld [vmem:[%s0 + $0x18] sm:$0xff]
  %v42 = vld [vmem:[%s0 + $0x20] sm:$0xff]
  %v43 = vld [vmem:[%s0 + $0x28] sm:$0xff]
  %v44 = vld [vmem:[%s0 + $0x30] sm:$0xff]
  %v45 = vld [vmem:[%s0 + $0x38] sm:$0xff]
  %v46 = vld [vmem:[%s1] sm:$0xf]
  %v47 = vld [vmem:[%s3] sm:$0x1]
  %v49 = vlaneseq
  %v50 = vshrl.u32 %v49, 7
  %v51 = vsub.s32 0, %v50
  %v52 = vrot.slane %v47, %v51
  %vm54 = vcmask 31744
  %v56 = vsel %vm54, %v38, 0
  %v59 = vsel %vm54, %v39, 0
  %v62 = vsel %vm54, %v40, 0
  %v65 = vsel %vm54, %v41, 0
  %v68 = vsel %vm54, %v42, 0
  %v71 = vsel %vm54, %v43, 0
  %v74 = vsel %vm54, %v44, 0
  %v77 = vsel %vm54, %v45, 0
  %vm79 = vcmask 1043456
  %v81 = vsel %vm79, %v46, 0
  %83 = vmatprep.subr.mxu0 0.0
  %84 = vmatpush1.msra.mxu0 0.0
  %85 = vmatprep.subr.mxu0 0.0
  %86 = vmatpush1.msra.mxu0 0.0
  %87 = vmatprep.subr.mxu0 0.0
  %88 = vmatpush1.msra.mxu0 0.0
  %89 = vmatprep.subr.mxu0 0.0
  %90 = vmatpush1.msra.mxu0 0.0
  %91 = vmatprep.subr.mxu0 0.0
  %92 = vmatpush1.msra.mxu0 0.0
  %93 = vmatprep.subr.mxu0 0.0
  %94 = vmatpush1.msra.mxu0 0.0
  %95 = vmatprep.subr.mxu0 0.0
  %96 = vmatpush1.msra.mxu0 0.0
  %97 = vmatprep.subr.mxu0 0.0
  %98 = vmatpush1.msra.mxu0 0.0
  %99 = vmatprep.subr.mxu0 0.0
  %100 = vmatpush1.msra.mxu0 0.0
  %101 = vmatprep.subr.mxu0 0.0
  %102 = vmatpush1.msra.mxu0 0.0
  %103 = vmatprep.subr.mxu0 0.0
  %104 = vmatpush1.msra.mxu0 0.0
  %105 = vmatprep.subr.mxu0 0.0
  %106 = vmatpush1.msra.mxu0 0.0
  %107 = vmatprep.subr.mxu0 0.0
  %108 = vmatpush1.msra.mxu0 0.0
  %109 = vmatprep.subr.mxu0 0.0
  %110 = vmatpush1.msra.mxu0 0.0
  %111 = vmatprep.subr.mxu0 0.0
  %112 = vmatpush1.msra.mxu0 0.0
  %113 = vmatprep.subr.mxu0 0.0
  %114 = vmatpush1.msra.mxu0 %v81
  %115 = vmatprep.subr.mxu0 0.0
  %116 = vmatpush2.msra.mxu0 0.0
  %117 = vmatprep.subr.mxu0 0.0
  %118 = vmatpush2.msra.mxu0 0.0
  %119 = vmatprep.subr.mxu0 0.0
  %120 = vmatpush2.msra.mxu0 0.0
  %121 = vmatprep.subr.mxu0 0.0
  %122 = vmatpush2.msra.mxu0 0.0
  %123 = vmatprep.subr.mxu0 0.0
  %124 = vmatpush2.msra.mxu0 0.0
  %125 = vmatprep.subr.mxu0 0.0
  %126 = vmatpush2.msra.mxu0 0.0
  %127 = vmatprep.subr.mxu0 0.0
  %128 = vmatpush2.msra.mxu0 0.0
  %129 = vmatprep.subr.mxu0 0.0
  %130 = vmatpush2.msra.mxu0 0.0
  %131 = vmatprep.subr.mxu0 0.0
  %132 = vmatpush2.msra.mxu0 0.0
  %133 = vmatprep.subr.mxu0 0.0
  %134 = vmatpush2.msra.mxu0 0.0
  %135 = vmatprep.subr.mxu0 0.0
  %136 = vmatpush2.msra.mxu0 0.0
  %137 = vmatprep.subr.mxu0 0.0
  %138 = vmatpush2.msra.mxu0 0.0
  %139 = vmatprep.subr.mxu0 0.0
  %140 = vmatpush2.msra.mxu0 0.0
  %141 = vmatprep.subr.mxu0 0.0
  %142 = vmatpush2.msra.mxu0 0.0
  %143 = vmatprep.subr.mxu0 0.0
  %144 = vmatpush2.msra.mxu0 0.0
  %145 = vmatprep.subr.mxu0 0.0
  %146 = vmatpush2.msra.mxu0 0.0
  %147 = vmatprep.mubr.f32.mxu0 0.0
  %148 = vmatmul.mubr.f32.gmra.mxu0 %v56
  %v149 = vpop.f32.mrf.mxu0
  %v150 = vadd.f32 %v52, %v149
  %v151 = vpop.f32.mrf.mxu0
  %152 = vmatprep.mubr.f32.mxu0 0.0
  %153 = vmatmul.mubr.f32.gmra.mxu0 %v59
  %v154 = vpop.f32.mrf.mxu0
  %v155 = vadd.f32 %v52, %v154
  %v156 = vpop.f32.mrf.mxu0
  %157 = vmatprep.mubr.f32.mxu0 0.0
  %158 = vmatmul.mubr.f32.gmra.mxu0 %v62
  %v159 = vpop.f32.mrf.mxu0
  %v160 = vadd.f32 %v52, %v159
  %v161 = vpop.f32.mrf.mxu0
  %162 = vmatprep.mubr.f32.mxu0 0.0
  %163 = vmatmul.mubr.f32.gmra.mxu0 %v65
  %v164 = vpop.f32.mrf.mxu0
  %v165 = vadd.f32 %v52, %v164
  %v166 = vpop.f32.mrf.mxu0
  %167 = vmatprep.mubr.f32.mxu0 0.0
  %168 = vmatmul.mubr.f32.gmra.mxu0 %v68
  %v169 = vpop.f32.mrf.mxu0
  %v170 = vadd.f32 %v52, %v169
  %v171 = vpop.f32.mrf.mxu0
  %172 = vmatprep.mubr.f32.mxu0 0.0
  %173 = vmatmul.mubr.f32.gmra.mxu0 %v71
  %v174 = vpop.f32.mrf.mxu0
  %v175 = vadd.f32 %v52, %v174
  %v176 = vpop.f32.mrf.mxu0
  %177 = vmatprep.mubr.f32.mxu0 0.0
  %178 = vmatmul.mubr.f32.gmra.mxu0 %v74
  %v179 = vpop.f32.mrf.mxu0
  %v180 = vadd.f32 %v52, %v179
  %v181 = vpop.f32.mrf.mxu0
  %182 = vmatprep.mubr.f32.mxu0 0.0
  %183 = vmatmul.mubr.f32.gmra.mxu0 %v77
  %v184 = vpop.f32.mrf.mxu0
  %v185 = vadd.f32 %v52, %v184
  %v186 = vpop.f32.mrf.mxu0
  %187 = vdwg.mxu0
  %188 = vst [vmem:[#allocation2] sm:$0xff] %v150
  %189 = vst [vmem:[#allocation2 + $0x8] sm:$0xff] %v155
  %190 = vst [vmem:[#allocation2 + $0x10] sm:$0xff] %v160
  %191 = vst [vmem:[#allocation2 + $0x18] sm:$0xff] %v165
  %192 = vst [vmem:[#allocation2 + $0x20] sm:$0xff] %v170
  %193 = vst [vmem:[#allocation2 + $0x28] sm:$0xff] %v175
  %194 = vst [vmem:[#allocation2 + $0x30] sm:$0xff] %v180
  %195 = vst [vmem:[#allocation2 + $0x38] sm:$0xff] %v185
  %vm196 = vcmask 261120
  %197 = vst.msk [vmem:[#allocation5] sm:$0xff] %vm196, 0.0
  %198 = vst.msk [vmem:[#allocation6] sm:$0xff] %vm196, 0.0
  %v199 = vld [vmem:[#allocation2] sm:$0xff]
  %v200 = vld [vmem:[#allocation5] sm:$0xff]
  %v201 = vld [vmem:[%s2] sm:$0xff]
  %v202 = vld [vmem:[%s2 + $0x8] sm:$0xff]
  %v203 = vld [vmem:[%s2 + $0x10] sm:$0xff]
  %v204 = vld [vmem:[%s2 + $0x18] sm:$0xff]
  %v206 = vsel %vm196, %v200, 0
  %208 = vmatprep.subr.mxu0 0.0
  %209 = vmatpush1.msra.mxu0 0.0
  %210 = vmatprep.subr.mxu0 0.0
  %211 = vmatpush1.msra.mxu0 0.0
  %212 = vmatprep.subr.mxu0 0.0
  %213 = vmatpush1.msra.mxu0 0.0
  %214 = vmatprep.subr.mxu0 0.0
  %215 = vmatpush1.msra.mxu0 0.0
  %216 = vmatprep.subr.mxu0 0.0
  %217 = vmatpush1.msra.mxu0 0.0
  %218 = vmatprep.subr.mxu0 0.0
  %219 = vmatpush1.msra.mxu0 0.0
  %220 = vmatprep.subr.mxu0 0.0
  %221 = vmatpush1.msra.mxu0 0.0
  %222 = vmatprep.subr.mxu0 0.0
  %223 = vmatpush1.msra.mxu0 0.0
  %224 = vmatprep.subr.mxu0 0.0
  %225 = vmatpush1.msra.mxu0 0.0
  %226 = vmatprep.subr.mxu0 0.0
  %227 = vmatpush1.msra.mxu0 0.0
  %228 = vmatprep.subr.mxu0 0.0
  %229 = vmatpush1.msra.mxu0 0.0
  %230 = vmatprep.subr.mxu0 0.0
  %231 = vmatpush1.msra.mxu0 0.0
  %232 = vmatprep.subr.mxu0 0.0
  %233 = vmatpush1.msra.mxu0 %v204
  %234 = vmatprep.subr.mxu0 0.0
  %235 = vmatpush1.msra.mxu0 %v203
  %236 = vmatprep.subr.mxu0 0.0
  %237 = vmatpush1.msra.mxu0 %v202
  %238 = vmatprep.subr.mxu0 0.0
  %239 = vmatpush1.msra.mxu0 %v201
  %240 = vmatprep.subr.mxu0 0.0
  %241 = vmatpush2.msra.mxu0 0.0
  %242 = vmatprep.subr.mxu0 0.0
  %243 = vmatpush2.msra.mxu0 0.0
  %244 = vmatprep.subr.mxu0 0.0
  %245 = vmatpush2.msra.mxu0 0.0
  %246 = vmatprep.subr.mxu0 0.0
  %247 = vmatpush2.msra.mxu0 0.0
  %248 = vmatprep.subr.mxu0 0.0
  %249 = vmatpush2.msra.mxu0 0.0
  %250 = vmatprep.subr.mxu0 0.0
  %251 = vmatpush2.msra.mxu0 0.0
  %252 = vmatprep.subr.mxu0 0.0
  %253 = vmatpush2.msra.mxu0 0.0
  %254 = vmatprep.subr.mxu0 0.0
  %255 = vmatpush2.msra.mxu0 0.0
  %256 = vmatprep.subr.mxu0 0.0
  %257 = vmatpush2.msra.mxu0 0.0
  %258 = vmatprep.subr.mxu0 0.0
  %259 = vmatpush2.msra.mxu0 0.0
  %260 = vmatprep.subr.mxu0 0.0
  %261 = vmatpush2.msra.mxu0 0.0
  %262 = vmatprep.subr.mxu0 0.0
  %263 = vmatpush2.msra.mxu0 0.0
  %264 = vmatprep.subr.mxu0 0.0
  %265 = vmatpush2.msra.mxu0 0.0
  %266 = vmatprep.subr.mxu0 0.0
  %267 = vmatpush2.msra.mxu0 0.0
  %268 = vmatprep.subr.mxu0 0.0
  %269 = vmatpush2.msra.mxu0 0.0
  %270 = vmatprep.subr.mxu0 0.0
  %271 = vmatpush2.msra.mxu0 0.0
  %272 = vmatprep.mubr.f32.mxu0 0.0
  %273 = vmatmul.mubr.f32.gmra.mxu0 %v206
  %v274 = vpop.f32.mrf.mxu0
  %v275 = vadd.f32 0.0, %v274
  %v276 = vpop.f32.mrf.mxu0
  %277 = vdwg.mxu0
  %v278 = vadd.f32 %v199, %v275
  %v279 = vxor.u32 %v278, 2147483648
  %v280 = vmul.f32 %v279, 1.442695
  %v281 = vpow.pop %v280
  %v282 = vadd.f32 %v281, 1.0
  %v283 = vrcp.pop %v282
  %v284 = vmul.f32 1.0, %v283
  %v285 = vmul.f32 %v284, 2.0
  %v286 = vsub.f32 %v285, 1.0
  %v287 = vld [vmem:[#allocation6] sm:$0xff]
  %289 = vrot.lane.b32.xlu0 %v287, 32
  %v290 = vpop.permute.xlu0 %289
  %v292 = vmul.f32 %v284, %v290
  %294 = vrot.lane.b32.xlu0 %v286, 64
  %v295 = vpop.permute.xlu0 %294
  %v297 = vmul.f32 %v284, %v295
  %299 = vrot.lane.b32.xlu0 %v297, 32
  %v300 = vpop.permute.xlu0 %299
  %v302 = vadd.f32 %v292, %v300
  %v303 = vtanh.pop %v302
  %305 = vrot.lane.b32.xlu0 %v303, 64
  %v306 = vpop.permute.xlu0 %305
  %v308 = vmul.f32 %v284, %v306
  %310 = vrot.lane.b32.xlu0 %v302, 96
  %v311 = vpop.permute.xlu0 %310
  %313 = vst.msk [vmem:[#allocation6] sm:$0xff] %vm196, %v311
  %315 = vrot.lane.b32.xlu0 %v308, 32
  %v316 = vpop.permute.xlu0 %315
  %318 = vst.msk [vmem:[#allocation5] sm:$0xff] %vm196, %v316
  %319 = vst.msk [vmem:[#allocation3] sm:$0xff] %vm196, %v316
  %s320 = scalar_lea.vmem [#allocation2], 8
  %v321 = vld [vmem:[%s320] sm:$0xff]
  %v322 = vld [vmem:[#allocation5] sm:$0xff]
  %v323 = vld [vmem:[%s2] sm:$0xff]
  %v324 = vld [vmem:[%s2 + $0x8] sm:$0xff]
  %v325 = vld [vmem:[%s2 + $0x10] sm:$0xff]
  %v326 = vld [vmem:[%s2 + $0x18] sm:$0xff]
  %v328 = vsel %vm196, %v322, 0
  %330 = vmatprep.subr.mxu0 0.0
  %331 = vmatpush1.msra.mxu0 0.0
  %332 = vmatprep.subr.mxu0 0.0
  %333 = vmatpush1.msra.mxu0 0.0
  %334 = vmatprep.subr.mxu0 0.0
  %335 = vmatpush1.msra.mxu0 0.0
  %336 = vmatprep.subr.mxu0 0.0
  %337 = vmatpush1.msra.mxu0 0.0
  %338 = vmatprep.subr.mxu0 0.0
  %339 = vmatpush1.msra.mxu0 0.0
  %340 = vmatprep.subr.mxu0 0.0
  %341 = vmatpush1.msra.mxu0 0.0
  %342 = vmatprep.subr.mxu0 0.0
  %343 = vmatpush1.msra.mxu0 0.0
  %344 = vmatprep.subr.mxu0 0.0
  %345 = vmatpush1.msra.mxu0 0.0
  %346 = vmatprep.subr.mxu0 0.0
  %347 = vmatpush1.msra.mxu0 0.0
  %348 = vmatprep.subr.mxu0 0.0
  %349 = vmatpush1.msra.mxu0 0.0
  %350 = vmatprep.subr.mxu0 0.0
  %351 = vmatpush1.msra.mxu0 0.0
  %352 = vmatprep.subr.mxu0 0.0
  %353 = vmatpush1.msra.mxu0 0.0
  %354 = vmatprep.subr.mxu0 0.0
  %355 = vmatpush1.msra.mxu0 %v326
  %356 = vmatprep.subr.mxu0 0.0
  %357 = vmatpush1.msra.mxu0 %v325
  %358 = vmatprep.subr.mxu0 0.0
  %359 = vmatpush1.msra.mxu0 %v324
  %360 = vmatprep.subr.mxu0 0.0
  %361 = vmatpush1.msra.mxu0 %v323
  %362 = vmatprep.subr.mxu0 0.0
  %363 = vmatpush2.msra.mxu0 0.0
  %364 = vmatprep.subr.mxu0 0.0
  %365 = vmatpush2.msra.mxu0 0.0
  %366 = vmatprep.subr.mxu0 0.0
  %367 = vmatpush2.msra.mxu0 0.0
  %368 = vmatprep.subr.mxu0 0.0
  %369 = vmatpush2.msra.mxu0 0.0
  %370 = vmatprep.subr.mxu0 0.0
  %371 = vmatpush2.msra.mxu0 0.0
  %372 = vmatprep.subr.mxu0 0.0
  %373 = vmatpush2.msra.mxu0 0.0
  %374 = vmatprep.subr.mxu0 0.0
  %375 = vmatpush2.msra.mxu0 0.0
  %376 = vmatprep.subr.mxu0 0.0
  %377 = vmatpush2.msra.mxu0 0.0
  %378 = vmatprep.subr.mxu0 0.0
  %379 = vmatpush2.msra.mxu0 0.0
  %380 = vmatprep.subr.mxu0 0.0
  %381 = vmatpush2.msra.mxu0 0.0
  %382 = vmatprep.subr.mxu0 0.0
  %383 = vmatpush2.msra.mxu0 0.0
  %384 = vmatprep.subr.mxu0 0.0
  %385 = vmatpush2.msra.mxu0 0.0
  %386 = vmatprep.subr.mxu0 0.0
  %387 = vmatpush2.msra.mxu0 0.0
  %388 = vmatprep.subr.mxu0 0.0
  %389 = vmatpush2.msra.mxu0 0.0
  %390 = vmatprep.subr.mxu0 0.0
  %391 = vmatpush2.msra.mxu0 0.0
  %392 = vmatprep.subr.mxu0 0.0
  %393 = vmatpush2.msra.mxu0 0.0
  %394 = vmatprep.mubr.f32.mxu0 0.0
  %395 = vmatmul.mubr.f32.gmra.mxu0 %v328
  %v396 = vpop.f32.mrf.mxu0
  %v397 = vadd.f32 0.0, %v396
  %v398 = vpop.f32.mrf.mxu0
  %399 = vdwg.mxu0
  %v400 = vadd.f32 %v321, %v397
  %v401 = vxor.u32 %v400, 2147483648
  %v402 = vmul.f32 %v401, 1.442695
  %v403 = vpow.pop %v402
  %v404 = vadd.f32 %v403, 1.0
  %v405 = vrcp.pop %v404
  %v406 = vmul.f32 1.0, %v405
  %v407 = vmul.f32 %v406, 2.0
  %v408 = vsub.f32 %v407, 1.0
  %v409 = vld [vmem:[#allocation6] sm:$0xff]
  %411 = vrot.lane.b32.xlu0 %v409, 32
  %v412 = vpop.permute.xlu0 %411
  %v414 = vmul.f32 %v406, %v412
  %416 = vrot.lane.b32.xlu0 %v408, 64
  %v417 = vpop.permute.xlu0 %416
  %v419 = vmul.f32 %v406, %v417
  %421 = vrot.lane.b32.xlu0 %v419, 32
  %v422 = vpop.permute.xlu0 %421
  %v424 = vadd.f32 %v414, %v422
  %v425 = vtanh.pop %v424
  %427 = vrot.lane.b32.xlu0 %v425, 64
  %v428 = vpop.permute.xlu0 %427
  %v430 = vmul.f32 %v406, %v428
  %432 = vrot.lane.b32.xlu0 %v424, 96
  %v433 = vpop.permute.xlu0 %432
  %435 = vst.msk [vmem:[#allocation6] sm:$0xff] %vm196, %v433
  %437 = vrot.lane.b32.xlu0 %v430, 32
  %v438 = vpop.permute.xlu0 %437
  %440 = vst.msk [vmem:[#allocation5] sm:$0xff] %vm196, %v438
  %s441 = scalar_lea.vmem [#allocation3], 8
  %442 = vst.msk [vmem:[%s441] sm:$0xff] %vm196, %v438
  %s443 = scalar_lea.vmem [#allocation2], 16
  %v444 = vld [vmem:[%s443] sm:$0xff]
  %v445 = vld [vmem:[#allocation5] sm:$0xff]
  %v446 = vld [vmem:[%s2] sm:$0xff]
  %v447 = vld [vmem:[%s2 + $0x8] sm:$0xff]
  %v448 = vld [vmem:[%s2 + $0x10] sm:$0xff]
  %v449 = vld [vmem:[%s2 + $0x18] sm:$0xff]
  %v451 = vsel %vm196, %v445, 0
  %453 = vmatprep.subr.mxu0 0.0
  %454 = vmatpush1.msra.mxu0 0.0
  %455 = vmatprep.subr.mxu0 0.0
  %456 = vmatpush1.msra.mxu0 0.0
  %457 = vmatprep.subr.mxu0 0.0
  %458 = vmatpush1.msra.mxu0 0.0
  %459 = vmatprep.subr.mxu0 0.0
  %460 = vmatpush1.msra.mxu0 0.0
  %461 = vmatprep.subr.mxu0 0.0
  %462 = vmatpush1.msra.mxu0 0.0
  %463 = vmatprep.subr.mxu0 0.0
  %464 = vmatpush1.msra.mxu0 0.0
  %465 = vmatprep.subr.mxu0 0.0
  %466 = vmatpush1.msra.mxu0 0.0
  %467 = vmatprep.subr.mxu0 0.0
  %468 = vmatpush1.msra.mxu0 0.0
  %469 = vmatprep.subr.mxu0 0.0
  %470 = vmatpush1.msra.mxu0 0.0
  %471 = vmatprep.subr.mxu0 0.0
  %472 = vmatpush1.msra.mxu0 0.0
  %473 = vmatprep.subr.mxu0 0.0
  %474 = vmatpush1.msra.mxu0 0.0
  %475 = vmatprep.subr.mxu0 0.0
  %476 = vmatpush1.msra.mxu0 0.0
  %477 = vmatprep.subr.mxu0 0.0
  %478 = vmatpush1.msra.mxu0 %v449
  %479 = vmatprep.subr.mxu0 0.0
  %480 = vmatpush1.msra.mxu0 %v448
  %481 = vmatprep.subr.mxu0 0.0
  %482 = vmatpush1.msra.mxu0 %v447
  %483 = vmatprep.subr.mxu0 0.0
  %484 = vmatpush1.msra.mxu0 %v446
  %485 = vmatprep.subr.mxu0 0.0
  %486 = vmatpush2.msra.mxu0 0.0
  %487 = vmatprep.subr.mxu0 0.0
  %488 = vmatpush2.msra.mxu0 0.0
  %489 = vmatprep.subr.mxu0 0.0
  %490 = vmatpush2.msra.mxu0 0.0
  %491 = vmatprep.subr.mxu0 0.0
  %492 = vmatpush2.msra.mxu0 0.0
  %493 = vmatprep.subr.mxu0 0.0
  %494 = vmatpush2.msra.mxu0 0.0
  %495 = vmatprep.subr.mxu0 0.0
  %496 = vmatpush2.msra.mxu0 0.0
  %497 = vmatprep.subr.mxu0 0.0
  %498 = vmatpush2.msra.mxu0 0.0
  %499 = vmatprep.subr.mxu0 0.0
  %500 = vmatpush2.msra.mxu0 0.0
  %501 = vmatprep.subr.mxu0 0.0
  %502 = vmatpush2.msra.mxu0 0.0
  %503 = vmatprep.subr.mxu0 0.0
  %504 = vmatpush2.msra.mxu0 0.0
  %505 = vmatprep.subr.mxu0 0.0
  %506 = vmatpush2.msra.mxu0 0.0
  %507 = vmatprep.subr.mxu0 0.0
  %508 = vmatpush2.msra.mxu0 0.0
  %509 = vmatprep.subr.mxu0 0.0
  %510 = vmatpush2.msra.mxu0 0.0
  %511 = vmatprep.subr.mxu0 0.0
  %512 = vmatpush2.msra.mxu0 0.0
  %513 = vmatprep.subr.mxu0 0.0
  %514 = vmatpush2.msra.mxu0 0.0
  %515 = vmatprep.subr.mxu0 0.0
  %516 = vmatpush2.msra.mxu0 0.0
  %517 = vmatprep.mubr.f32.mxu0 0.0
  %518 = vmatmul.mubr.f32.gmra.mxu0 %v451
  %v519 = vpop.f32.mrf.mxu0
  %v520 = vadd.f32 0.0, %v519
  %v521 = vpop.f32.mrf.mxu0
  %522 = vdwg.mxu0
  %v523 = vadd.f32 %v444, %v520
  %v524 = vxor.u32 %v523, 2147483648
  %v525 = vmul.f32 %v524, 1.442695
  %v526 = vpow.pop %v525
  %v527 = vadd.f32 %v526, 1.0
  %v528 = vrcp.pop %v527
  %v529 = vmul.f32 1.0, %v528
  %v530 = vmul.f32 %v529, 2.0
  %v531 = vsub.f32 %v530, 1.0
  %v532 = vld [vmem:[#allocation6] sm:$0xff]
  %534 = vrot.lane.b32.xlu0 %v532, 32
  %v535 = vpop.permute.xlu0 %534
  %v537 = vmul.f32 %v529, %v535
  %539 = vrot.lane.b32.xlu0 %v531, 64
  %v540 = vpop.permute.xlu0 %539
  %v542 = vmul.f32 %v529, %v540
  %544 = vrot.lane.b32.xlu0 %v542, 32
  %v545 = vpop.permute.xlu0 %544
  %v547 = vadd.f32 %v537, %v545
  %v548 = vtanh.pop %v547
  %550 = vrot.lane.b32.xlu0 %v548, 64
  %v551 = vpop.permute.xlu0 %550
  %v553 = vmul.f32 %v529, %v551
  %555 = vrot.lane.b32.xlu0 %v547, 96
  %v556 = vpop.permute.xlu0 %555
  %558 = vst.msk [vmem:[#allocation6] sm:$0xff] %vm196, %v556
  %560 = vrot.lane.b32.xlu0 %v553, 32
  %v561 = vpop.permute.xlu0 %560
  %563 = vst.msk [vmem:[#allocation5] sm:$0xff] %vm196, %v561
  %s564 = scalar_lea.vmem [#allocation3], 16
  %565 = vst.msk [vmem:[%s564] sm:$0xff] %vm196, %v561
  %s566 = scalar_lea.vmem [#allocation2], 24
  %v567 = vld [vmem:[%s566] sm:$0xff]
  %v568 = vld [vmem:[#allocation5] sm:$0xff]
  %v569 = vld [vmem:[%s2] sm:$0xff]
  %v570 = vld [vmem:[%s2 + $0x8] sm:$0xff]
  %v571 = vld [vmem:[%s2 + $0x10] sm:$0xff]
  %v572 = vld [vmem:[%s2 + $0x18] sm:$0xff]
  %v574 = vsel %vm196, %v568, 0
  %576 = vmatprep.subr.mxu0 0.0
  %577 = vmatpush1.msra.mxu0 0.0
  %578 = vmatprep.subr.mxu0 0.0
  %579 = vmatpush1.msra.mxu0 0.0
  %580 = vmatprep.subr.mxu0 0.0
  %581 = vmatpush1.msra.mxu0 0.0
  %582 = vmatprep.subr.mxu0 0.0
  %583 = vmatpush1.msra.mxu0 0.0
  %584 = vmatprep.subr.mxu0 0.0
  %585 = vmatpush1.msra.mxu0 0.0
  %586 = vmatprep.subr.mxu0 0.0
  %587 = vmatpush1.msra.mxu0 0.0
  %588 = vmatprep.subr.mxu0 0.0
  %589 = vmatpush1.msra.mxu0 0.0
  %590 = vmatprep.subr.mxu0 0.0
  %591 = vmatpush1.msra.mxu0 0.0
  %592 = vmatprep.subr.mxu0 0.0
  %593 = vmatpush1.msra.mxu0 0.0
  %594 = vmatprep.subr.mxu0 0.0
  %595 = vmatpush1.msra.mxu0 0.0
  %596 = vmatprep.subr.mxu0 0.0
  %597 = vmatpush1.msra.mxu0 0.0
  %598 = vmatprep.subr.mxu0 0.0
  %599 = vmatpush1.msra.mxu0 0.0
  %600 = vmatprep.subr.mxu0 0.0
  %601 = vmatpush1.msra.mxu0 %v572
  %602 = vmatprep.subr.mxu0 0.0
  %603 = vmatpush1.msra.mxu0 %v571
  %604 = vmatprep.subr.mxu0 0.0
  %605 = vmatpush1.msra.mxu0 %v570
  %606 = vmatprep.subr.mxu0 0.0
  %607 = vmatpush1.msra.mxu0 %v569
  %608 = vmatprep.subr.mxu0 0.0
  %609 = vmatpush2.msra.mxu0 0.0
  %610 = vmatprep.subr.mxu0 0.0
  %611 = vmatpush2.msra.mxu0 0.0
  %612 = vmatprep.subr.mxu0 0.0
  %613 = vmatpush2.msra.mxu0 0.0
  %614 = vmatprep.subr.mxu0 0.0
  %615 = vmatpush2.msra.mxu0 0.0
  %616 = vmatprep.subr.mxu0 0.0
  %617 = vmatpush2.msra.mxu0 0.0
  %618 = vmatprep.subr.mxu0 0.0
  %619 = vmatpush2.msra.mxu0 0.0
  %620 = vmatprep.subr.mxu0 0.0
  %621 = vmatpush2.msra.mxu0 0.0
  %622 = vmatprep.subr.mxu0 0.0
  %623 = vmatpush2.msra.mxu0 0.0
  %624 = vmatprep.subr.mxu0 0.0
  %625 = vmatpush2.msra.mxu0 0.0
  %626 = vmatprep.subr.mxu0 0.0
  %627 = vmatpush2.msra.mxu0 0.0
  %628 = vmatprep.subr.mxu0 0.0
  %629 = vmatpush2.msra.mxu0 0.0
  %630 = vmatprep.subr.mxu0 0.0
  %631 = vmatpush2.msra.mxu0 0.0
  %632 = vmatprep.subr.mxu0 0.0
  %633 = vmatpush2.msra.mxu0 0.0
  %634 = vmatprep.subr.mxu0 0.0
  %635 = vmatpush2.msra.mxu0 0.0
  %636 = vmatprep.subr.mxu0 0.0
  %637 = vmatpush2.msra.mxu0 0.0
  %638 = vmatprep.subr.mxu0 0.0
  %639 = vmatpush2.msra.mxu0 0.0
  %640 = vmatprep.mubr.f32.mxu0 0.0
  %641 = vmatmul.mubr.f32.gmra.mxu0 %v574
  %v642 = vpop.f32.mrf.mxu0
  %v643 = vadd.f32 0.0, %v642
  %v644 = vpop.f32.mrf.mxu0
  %645 = vdwg.mxu0
  %v646 = vadd.f32 %v567, %v643
  %v647 = vxor.u32 %v646, 2147483648
  %v648 = vmul.f32 %v647, 1.442695
  %v649 = vpow.pop %v648
  %v650 = vadd.f32 %v649, 1.0
  %v651 = vrcp.pop %v650
  %v652 = vmul.f32 1.0, %v651
  %v653 = vmul.f32 %v652, 2.0
  %v654 = vsub.f32 %v653, 1.0
  %v655 = vld [vmem:[#allocation6] sm:$0xff]
  %657 = vrot.lane.b32.xlu0 %v655, 32
  %v658 = vpop.permute.xlu0 %657
  %v660 = vmul.f32 %v652, %v658
  %662 = vrot.lane.b32.xlu0 %v654, 64
  %v663 = vpop.permute.xlu0 %662
  %v665 = vmul.f32 %v652, %v663
  %667 = vrot.lane.b32.xlu0 %v665, 32
  %v668 = vpop.permute.xlu0 %667
  %v670 = vadd.f32 %v660, %v668
  %v671 = vtanh.pop %v670
  %673 = vrot.lane.b32.xlu0 %v671, 64
  %v674 = vpop.permute.xlu0 %673
  %v676 = vmul.f32 %v652, %v674
  %678 = vrot.lane.b32.xlu0 %v670, 96
  %v679 = vpop.permute.xlu0 %678
  %681 = vst.msk [vmem:[#allocation6] sm:$0xff] %vm196, %v679
  %683 = vrot.lane.b32.xlu0 %v676, 32
  %v684 = vpop.permute.xlu0 %683
  %686 = vst.msk [vmem:[#allocation5] sm:$0xff] %vm196, %v684
  %s687 = scalar_lea.vmem [#allocation3], 24
  %688 = vst.msk [vmem:[%s687] sm:$0xff] %vm196, %v684
  %s689 = scalar_lea.vmem [#allocation2], 32
  %v690 = vld [vmem:[%s689] sm:$0xff]
  %v691 = vld [vmem:[#allocation5] sm:$0xff]
  %v692 = vld [vmem:[%s2] sm:$0xff]
  %v693 = vld [vmem:[%s2 + $0x8] sm:$0xff]
  %v694 = vld [vmem:[%s2 + $0x10] sm:$0xff]
  %v695 = vld [vmem:[%s2 + $0x18] sm:$0xff]
  %v697 = vsel %vm196, %v691, 0
  %699 = vmatprep.subr.mxu0 0.0
  %700 = vmatpush1.msra.mxu0 0.0
  %701 = vmatprep.subr.mxu0 0.0
  %702 = vmatpush1.msra.mxu0 0.0
  %703 = vmatprep.subr.mxu0 0.0
  %704 = vmatpush1.msra.mxu0 0.0
  %705 = vmatprep.subr.mxu0 0.0
  %706 = vmatpush1.msra.mxu0 0.0
  %707 = vmatprep.subr.mxu0 0.0
  %708 = vmatpush1.msra.mxu0 0.0
  %709 = vmatprep.subr.mxu0 0.0
  %710 = vmatpush1.msra.mxu0 0.0
  %711 = vmatprep.subr.mxu0 0.0
  %712 = vmatpush1.msra.mxu0 0.0
  %713 = vmatprep.subr.mxu0 0.0
  %714 = vmatpush1.msra.mxu0 0.0
  %715 = vmatprep.subr.mxu0 0.0
  %716 = vmatpush1.msra.mxu0 0.0
  %717 = vmatprep.subr.mxu0 0.0
  %718 = vmatpush1.msra.mxu0 0.0
  %719 = vmatprep.subr.mxu0 0.0
  %720 = vmatpush1.msra.mxu0 0.0
  %721 = vmatprep.subr.mxu0 0.0
  %722 = vmatpush1.msra.mxu0 0.0
  %723 = vmatprep.subr.mxu0 0.0
  %724 = vmatpush1.msra.mxu0 %v695
  %725 = vmatprep.subr.mxu0 0.0
  %726 = vmatpush1.msra.mxu0 %v694
  %727 = vmatprep.subr.mxu0 0.0
  %728 = vmatpush1.msra.mxu0 %v693
  %729 = vmatprep.subr.mxu0 0.0
  %730 = vmatpush1.msra.mxu0 %v692
  %731 = vmatprep.subr.mxu0 0.0
  %732 = vmatpush2.msra.mxu0 0.0
  %733 = vmatprep.subr.mxu0 0.0
  %734 = vmatpush2.msra.mxu0 0.0
  %735 = vmatprep.subr.mxu0 0.0
  %736 = vmatpush2.msra.mxu0 0.0
  %737 = vmatprep.subr.mxu0 0.0
  %738 = vmatpush2.msra.mxu0 0.0
  %739 = vmatprep.subr.mxu0 0.0
  %740 = vmatpush2.msra.mxu0 0.0
  %741 = vmatprep.subr.mxu0 0.0
  %742 = vmatpush2.msra.mxu0 0.0
  %743 = vmatprep.subr.mxu0 0.0
  %744 = vmatpush2.msra.mxu0 0.0
  %745 = vmatprep.subr.mxu0 0.0
  %746 = vmatpush2.msra.mxu0 0.0
  %747 = vmatprep.subr.mxu0 0.0
  %748 = vmatpush2.msra.mxu0 0.0
  %749 = vmatprep.subr.mxu0 0.0
  %750 = vmatpush2.msra.mxu0 0.0
  %751 = vmatprep.subr.mxu0 0.0
  %752 = vmatpush2.msra.mxu0 0.0
  %753 = vmatprep.subr.mxu0 0.0
  %754 = vmatpush2.msra.mxu0 0.0
  %755 = vmatprep.subr.mxu0 0.0
  %756 = vmatpush2.msra.mxu0 0.0
  %757 = vmatprep.subr.mxu0 0.0
  %758 = vmatpush2.msra.mxu0 0.0
  %759 = vmatprep.subr.mxu0 0.0
  %760 = vmatpush2.msra.mxu0 0.0
  %761 = vmatprep.subr.mxu0 0.0
  %762 = vmatpush2.msra.mxu0 0.0
  %763 = vmatprep.mubr.f32.mxu0 0.0
  %764 = vmatmul.mubr.f32.gmra.mxu0 %v697
  %v765 = vpop.f32.mrf.mxu0
  %v766 = vadd.f32 0.0, %v765
  %v767 = vpop.f32.mrf.mxu0
  %768 = vdwg.mxu0
  %v769 = vadd.f32 %v690, %v766
  %v770 = vxor.u32 %v769, 2147483648
  %v771 = vmul.f32 %v770, 1.442695
  %v772 = vpow.pop %v771
  %v773 = vadd.f32 %v772, 1.0
  %v774 = vrcp.pop %v773
  %v775 = vmul.f32 1.0, %v774
  %v776 = vmul.f32 %v775, 2.0
  %v777 = vsub.f32 %v776, 1.0
  %v778 = vld [vmem:[#allocation6] sm:$0xff]
  %780 = vrot.lane.b32.xlu0 %v778, 32
  %v781 = vpop.permute.xlu0 %780
  %v783 = vmul.f32 %v775, %v781
  %785 = vrot.lane.b32.xlu0 %v777, 64
  %v786 = vpop.permute.xlu0 %785
  %v788 = vmul.f32 %v775, %v786
  %790 = vrot.lane.b32.xlu0 %v788, 32
  %v791 = vpop.permute.xlu0 %790
  %v793 = vadd.f32 %v783, %v791
  %v794 = vtanh.pop %v793
  %796 = vrot.lane.b32.xlu0 %v794, 64
  %v797 = vpop.permute.xlu0 %796
  %v799 = vmul.f32 %v775, %v797
  %801 = vrot.lane.b32.xlu0 %v793, 96
  %v802 = vpop.permute.xlu0 %801
  %804 = vst.msk [vmem:[#allocation6] sm:$0xff] %vm196, %v802
  %806 = vrot.lane.b32.xlu0 %v799, 32
  %v807 = vpop.permute.xlu0 %806
  %809 = vst.msk [vmem:[#allocation5] sm:$0xff] %vm196, %v807
  %s810 = scalar_lea.vmem [#allocation3], 32
  %811 = vst.msk [vmem:[%s810] sm:$0xff] %vm196, %v807
  %s812 = scalar_lea.vmem [#allocation2], 40
  %v813 = vld [vmem:[%s812] sm:$0xff]
  %v814 = vld [vmem:[#allocation5] sm:$0xff]
  %v815 = vld [vmem:[%s2] sm:$0xff]
  %v816 = vld [vmem:[%s2 + $0x8] sm:$0xff]
  %v817 = vld [vmem:[%s2 + $0x10] sm:$0xff]
  %v818 = vld [vmem:[%s2 + $0x18] sm:$0xff]
  %v820 = vsel %vm196, %v814, 0
  %822 = vmatprep.subr.mxu0 0.0
  %823 = vmatpush1.msra.mxu0 0.0
  %824 = vmatprep.subr.mxu0 0.0
  %825 = vmatpush1.msra.mxu0 0.0
  %826 = vmatprep.subr.mxu0 0.0
  %827 = vmatpush1.msra.mxu0 0.0
  %828 = vmatprep.subr.mxu0 0.0
  %829 = vmatpush1.msra.mxu0 0.0
  %830 = vmatprep.subr.mxu0 0.0
  %831 = vmatpush1.msra.mxu0 0.0
  %832 = vmatprep.subr.mxu0 0.0
  %833 = vmatpush1.msra.mxu0 0.0
  %834 = vmatprep.subr.mxu0 0.0
  %835 = vmatpush1.msra.mxu0 0.0
  %836 = vmatprep.subr.mxu0 0.0
  %837 = vmatpush1.msra.mxu0 0.0
  %838 = vmatprep.subr.mxu0 0.0
  %839 = vmatpush1.msra.mxu0 0.0
  %840 = vmatprep.subr.mxu0 0.0
  %841 = vmatpush1.msra.mxu0 0.0
  %842 = vmatprep.subr.mxu0 0.0
  %843 = vmatpush1.msra.mxu0 0.0
  %844 = vmatprep.subr.mxu0 0.0
  %845 = vmatpush1.msra.mxu0 0.0
  %846 = vmatprep.subr.mxu0 0.0
  %847 = vmatpush1.msra.mxu0 %v818
  %848 = vmatprep.subr.mxu0 0.0
  %849 = vmatpush1.msra.mxu0 %v817
  %850 = vmatprep.subr.mxu0 0.0
  %851 = vmatpush1.msra.mxu0 %v816
  %852 = vmatprep.subr.mxu0 0.0
  %853 = vmatpush1.msra.mxu0 %v815
  %854 = vmatprep.subr.mxu0 0.0
  %855 = vmatpush2.msra.mxu0 0.0
  %856 = vmatprep.subr.mxu0 0.0
  %857 = vmatpush2.msra.mxu0 0.0
  %858 = vmatprep.subr.mxu0 0.0
  %859 = vmatpush2.msra.mxu0 0.0
  %860 = vmatprep.subr.mxu0 0.0
  %861 = vmatpush2.msra.mxu0 0.0
  %862 = vmatprep.subr.mxu0 0.0
  %863 = vmatpush2.msra.mxu0 0.0
  %864 = vmatprep.subr.mxu0 0.0
  %865 = vmatpush2.msra.mxu0 0.0
  %866 = vmatprep.subr.mxu0 0.0
  %867 = vmatpush2.msra.mxu0 0.0
  %868 = vmatprep.subr.mxu0 0.0
  %869 = vmatpush2.msra.mxu0 0.0
  %870 = vmatprep.subr.mxu0 0.0
  %871 = vmatpush2.msra.mxu0 0.0
  %872 = vmatprep.subr.mxu0 0.0
  %873 = vmatpush2.msra.mxu0 0.0
  %874 = vmatprep.subr.mxu0 0.0
  %875 = vmatpush2.msra.mxu0 0.0
  %876 = vmatprep.subr.mxu0 0.0
  %877 = vmatpush2.msra.mxu0 0.0
  %878 = vmatprep.subr.mxu0 0.0
  %879 = vmatpush2.msra.mxu0 0.0
  %880 = vmatprep.subr.mxu0 0.0
  %881 = vmatpush2.msra.mxu0 0.0
  %882 = vmatprep.subr.mxu0 0.0
  %883 = vmatpush2.msra.mxu0 0.0
  %884 = vmatprep.subr.mxu0 0.0
  %885 = vmatpush2.msra.mxu0 0.0
  %886 = vmatprep.mubr.f32.mxu0 0.0
  %887 = vmatmul.mubr.f32.gmra.mxu0 %v820
  %v888 = vpop.f32.mrf.mxu0
  %v889 = vadd.f32 0.0, %v888
  %v890 = vpop.f32.mrf.mxu0
  %891 = vdwg.mxu0
  %v892 = vadd.f32 %v813, %v889
  %v893 = vxor.u32 %v892, 2147483648
  %v894 = vmul.f32 %v893, 1.442695
  %v895 = vpow.pop %v894
  %v896 = vadd.f32 %v895, 1.0
  %v897 = vrcp.pop %v896
  %v898 = vmul.f32 1.0, %v897
  %v899 = vmul.f32 %v898, 2.0
  %v900 = vsub.f32 %v899, 1.0
  %v901 = vld [vmem:[#allocation6] sm:$0xff]
  %903 = vrot.lane.b32.xlu0 %v901, 32
  %v904 = vpop.permute.xlu0 %903
  %v906 = vmul.f32 %v898, %v904
  %908 = vrot.lane.b32.xlu0 %v900, 64
  %v909 = vpop.permute.xlu0 %908
  %v911 = vmul.f32 %v898, %v909
  %913 = vrot.lane.b32.xlu0 %v911, 32
  %v914 = vpop.permute.xlu0 %913
  %v916 = vadd.f32 %v906, %v914
  %v917 = vtanh.pop %v916
  %919 = vrot.lane.b32.xlu0 %v917, 64
  %v920 = vpop.permute.xlu0 %919
  %v922 = vmul.f32 %v898, %v920
  %924 = vrot.lane.b32.xlu0 %v916, 96
  %v925 = vpop.permute.xlu0 %924
  %927 = vst.msk [vmem:[#allocation6] sm:$0xff] %vm196, %v925
  %929 = vrot.lane.b32.xlu0 %v922, 32
  %v930 = vpop.permute.xlu0 %929
  %932 = vst.msk [vmem:[#allocation5] sm:$0xff] %vm196, %v930
  %s933 = scalar_lea.vmem [#allocation3], 40
  %934 = vst.msk [vmem:[%s933] sm:$0xff] %vm196, %v930
  %s935 = scalar_lea.vmem [#allocation2], 48
  %v936 = vld [vmem:[%s935] sm:$0xff]
  %v937 = vld [vmem:[#allocation5] sm:$0xff]
  %v938 = vld [vmem:[%s2] sm:$0xff]
  %v939 = vld [vmem:[%s2 + $0x8] sm:$0xff]
  %v940 = vld [vmem:[%s2 + $0x10] sm:$0xff]
  %v941 = vld [vmem:[%s2 + $0x18] sm:$0xff]
  %v943 = vsel %vm196, %v937, 0
  %945 = vmatprep.subr.mxu0 0.0
  %946 = vmatpush1.msra.mxu0 0.0
  %947 = vmatprep.subr.mxu0 0.0
  %948 = vmatpush1.msra.mxu0 0.0
  %949 = vmatprep.subr.mxu0 0.0
  %950 = vmatpush1.msra.mxu0 0.0
  %951 = vmatprep.subr.mxu0 0.0
  %952 = vmatpush1.msra.mxu0 0.0
  %953 = vmatprep.subr.mxu0 0.0
  %954 = vmatpush1.msra.mxu0 0.0
  %955 = vmatprep.subr.mxu0 0.0
  %956 = vmatpush1.msra.mxu0 0.0
  %957 = vmatprep.subr.mxu0 0.0
  %958 = vmatpush1.msra.mxu0 0.0
  %959 = vmatprep.subr.mxu0 0.0
  %960 = vmatpush1.msra.mxu0 0.0
  %961 = vmatprep.subr.mxu0 0.0
  %962 = vmatpush1.msra.mxu0 0.0
  %963 = vmatprep.subr.mxu0 0.0
  %964 = vmatpush1.msra.mxu0 0.0
  %965 = vmatprep.subr.mxu0 0.0
  %966 = vmatpush1.msra.mxu0 0.0
  %967 = vmatprep.subr.mxu0 0.0
  %968 = vmatpush1.msra.mxu0 0.0
  %969 = vmatprep.subr.mxu0 0.0
  %970 = vmatpush1.msra.mxu0 %v941
  %971 = vmatprep.subr.mxu0 0.0
  %972 = vmatpush1.msra.mxu0 %v940
  %973 = vmatprep.subr.mxu0 0.0
  %974 = vmatpush1.msra.mxu0 %v939
  %975 = vmatprep.subr.mxu0 0.0
  %976 = vmatpush1.msra.mxu0 %v938
  %977 = vmatprep.subr.mxu0 0.0
  %978 = vmatpush2.msra.mxu0 0.0
  %979 = vmatprep.subr.mxu0 0.0
  %980 = vmatpush2.msra.mxu0 0.0
  %981 = vmatprep.subr.mxu0 0.0
  %982 = vmatpush2.msra.mxu0 0.0
  %983 = vmatprep.subr.mxu0 0.0
  %984 = vmatpush2.msra.mxu0 0.0
  %985 = vmatprep.subr.mxu0 0.0
  %986 = vmatpush2.msra.mxu0 0.0
  %987 = vmatprep.subr.mxu0 0.0
  %988 = vmatpush2.msra.mxu0 0.0
  %989 = vmatprep.subr.mxu0 0.0
  %990 = vmatpush2.msra.mxu0 0.0
  %991 = vmatprep.subr.mxu0 0.0
  %992 = vmatpush2.msra.mxu0 0.0
  %993 = vmatprep.subr.mxu0 0.0
  %994 = vmatpush2.msra.mxu0 0.0
  %995 = vmatprep.subr.mxu0 0.0
  %996 = vmatpush2.msra.mxu0 0.0
  %997 = vmatprep.subr.mxu0 0.0
  %998 = vmatpush2.msra.mxu0 0.0
  %999 = vmatprep.subr.mxu0 0.0
  %1000 = vmatpush2.msra.mxu0 0.0
  %1001 = vmatprep.subr.mxu0 0.0
  %1002 = vmatpush2.msra.mxu0 0.0
  %1003 = vmatprep.subr.mxu0 0.0
  %1004 = vmatpush2.msra.mxu0 0.0
  %1005 = vmatprep.subr.mxu0 0.0
  %1006 = vmatpush2.msra.mxu0 0.0
  %1007 = vmatprep.subr.mxu0 0.0
  %1008 = vmatpush2.msra.mxu0 0.0
  %1009 = vmatprep.mubr.f32.mxu0 0.0
  %1010 = vmatmul.mubr.f32.gmra.mxu0 %v943
  %v1011 = vpop.f32.mrf.mxu0
  %v1012 = vadd.f32 0.0, %v1011
  %v1013 = vpop.f32.mrf.mxu0
  %1014 = vdwg.mxu0
  %v1015 = vadd.f32 %v936, %v1012
  %v1016 = vxor.u32 %v1015, 2147483648
  %v1017 = vmul.f32 %v1016, 1.442695
  %v1018 = vpow.pop %v1017
  %v1019 = vadd.f32 %v1018, 1.0
  %v1020 = vrcp.pop %v1019
  %v1021 = vmul.f32 1.0, %v1020
  %v1022 = vmul.f32 %v1021, 2.0
  %v1023 = vsub.f32 %v1022, 1.0
  %v1024 = vld [vmem:[#allocation6] sm:$0xff]
  %1026 = vrot.lane.b32.xlu0 %v1024, 32
  %v1027 = vpop.permute.xlu0 %1026
  %v1029 = vmul.f32 %v1021, %v1027
  %1031 = vrot.lane.b32.xlu0 %v1023, 64
  %v1032 = vpop.permute.xlu0 %1031
  %v1034 = vmul.f32 %v1021, %v1032
  %1036 = vrot.lane.b32.xlu0 %v1034, 32
  %v1037 = vpop.permute.xlu0 %1036
  %v1039 = vadd.f32 %v1029, %v1037
  %v1040 = vtanh.pop %v1039
  %1042 = vrot.lane.b32.xlu0 %v1040, 64
  %v1043 = vpop.permute.xlu0 %1042
  %v1045 = vmul.f32 %v1021, %v1043
  %1047 = vrot.lane.b32.xlu0 %v1039, 96
  %v1048 = vpop.permute.xlu0 %1047
  %1050 = vst.msk [vmem:[#allocation6] sm:$0xff] %vm196, %v1048
  %1052 = vrot.lane.b32.xlu0 %v1045, 32
  %v1053 = vpop.permute.xlu0 %1052
  %1055 = vst.msk [vmem:[#allocation5] sm:$0xff] %vm196, %v1053
  %s1056 = scalar_lea.vmem [#allocation3], 48
  %1057 = vst.msk [vmem:[%s1056] sm:$0xff] %vm196, %v1053
  %s1058 = scalar_lea.vmem [#allocation2], 56
  %v1059 = vld [vmem:[%s1058] sm:$0xff]
  %v1060 = vld [vmem:[#allocation5] sm:$0xff]
  %v1061 = vld [vmem:[%s2] sm:$0xff]
  %v1062 = vld [vmem:[%s2 + $0x8] sm:$0xff]
  %v1063 = vld [vmem:[%s2 + $0x10] sm:$0xff]
  %v1064 = vld [vmem:[%s2 + $0x18] sm:$0xff]
  %v1066 = vsel %vm196, %v1060, 0
  %1068 = vmatprep.subr.mxu0 0.0
  %1069 = vmatpush1.msra.mxu0 0.0
  %1070 = vmatprep.subr.mxu0 0.0
  %1071 = vmatpush1.msra.mxu0 0.0
  %1072 = vmatprep.subr.mxu0 0.0
  %1073 = vmatpush1.msra.mxu0 0.0
  %1074 = vmatprep.subr.mxu0 0.0
  %1075 = vmatpush1.msra.mxu0 0.0
  %1076 = vmatprep.subr.mxu0 0.0
  %1077 = vmatpush1.msra.mxu0 0.0
  %1078 = vmatprep.subr.mxu0 0.0
  %1079 = vmatpush1.msra.mxu0 0.0
  %1080 = vmatprep.subr.mxu0 0.0
  %1081 = vmatpush1.msra.mxu0 0.0
  %1082 = vmatprep.subr.mxu0 0.0
  %1083 = vmatpush1.msra.mxu0 0.0
  %1084 = vmatprep.subr.mxu0 0.0
  %1085 = vmatpush1.msra.mxu0 0.0
  %1086 = vmatprep.subr.mxu0 0.0
  %1087 = vmatpush1.msra.mxu0 0.0
  %1088 = vmatprep.subr.mxu0 0.0
  %1089 = vmatpush1.msra.mxu0 0.0
  %1090 = vmatprep.subr.mxu0 0.0
  %1091 = vmatpush1.msra.mxu0 0.0
  %1092 = vmatprep.subr.mxu0 0.0
  %1093 = vmatpush1.msra.mxu0 %v1064
  %1094 = vmatprep.subr.mxu0 0.0
  %1095 = vmatpush1.msra.mxu0 %v1063
  %1096 = vmatprep.subr.mxu0 0.0
  %1097 = vmatpush1.msra.mxu0 %v1062
  %1098 = vmatprep.subr.mxu0 0.0
  %1099 = vmatpush1.msra.mxu0 %v1061
  %1100 = vmatprep.subr.mxu0 0.0
  %1101 = vmatpush2.msra.mxu0 0.0
  %1102 = vmatprep.subr.mxu0 0.0
  %1103 = vmatpush2.msra.mxu0 0.0
  %1104 = vmatprep.subr.mxu0 0.0
  %1105 = vmatpush2.msra.mxu0 0.0
  %1106 = vmatprep.subr.mxu0 0.0
  %1107 = vmatpush2.msra.mxu0 0.0
  %1108 = vmatprep.subr.mxu0 0.0
  %1109 = vmatpush2.msra.mxu0 0.0
  %1110 = vmatprep.subr.mxu0 0.0
  %1111 = vmatpush2.msra.mxu0 0.0
  %1112 = vmatprep.subr.mxu0 0.0
  %1113 = vmatpush2.msra.mxu0 0.0
  %1114 = vmatprep.subr.mxu0 0.0
  %1115 = vmatpush2.msra.mxu0 0.0
  %1116 = vmatprep.subr.mxu0 0.0
  %1117 = vmatpush2.msra.mxu0 0.0
  %1118 = vmatprep.subr.mxu0 0.0
  %1119 = vmatpush2.msra.mxu0 0.0
  %1120 = vmatprep.subr.mxu0 0.0
  %1121 = vmatpush2.msra.mxu0 0.0
  %1122 = vmatprep.subr.mxu0 0.0
  %1123 = vmatpush2.msra.mxu0 0.0
  %1124 = vmatprep.subr.mxu0 0.0
  %1125 = vmatpush2.msra.mxu0 0.0
  %1126 = vmatprep.subr.mxu0 0.0
  %1127 = vmatpush2.msra.mxu0 0.0
  %1128 = vmatprep.subr.mxu0 0.0
  %1129 = vmatpush2.msra.mxu0 0.0
  %1130 = vmatprep.subr.mxu0 0.0
  %1131 = vmatpush2.msra.mxu0 0.0
  %1132 = vmatprep.mubr.f32.mxu0 0.0
  %1133 = vmatmul.mubr.f32.gmra.mxu0 %v1066
  %v1134 = vpop.f32.mrf.mxu0
  %v1135 = vadd.f32 0.0, %v1134
  %v1136 = vpop.f32.mrf.mxu0
  %1137 = vdwg.mxu0
  %v1138 = vadd.f32 %v1059, %v1135
  %v1139 = vxor.u32 %v1138, 2147483648
  %v1140 = vmul.f32 %v1139, 1.442695
  %v1141 = vpow.pop %v1140
  %v1142 = vadd.f32 %v1141, 1.0
  %v1143 = vrcp.pop %v1142
  %v1144 = vmul.f32 1.0, %v1143
  %v1145 = vmul.f32 %v1144, 2.0
  %v1146 = vsub.f32 %v1145, 1.0
  %v1147 = vld [vmem:[#allocation6] sm:$0xff]
  %1149 = vrot.lane.b32.xlu0 %v1147, 32
  %v1150 = vpop.permute.xlu0 %1149
  %v1152 = vmul.f32 %v1144, %v1150
  %1154 = vrot.lane.b32.xlu0 %v1146, 64
  %v1155 = vpop.permute.xlu0 %1154
  %v1157 = vmul.f32 %v1144, %v1155
  %1159 = vrot.lane.b32.xlu0 %v1157, 32
  %v1160 = vpop.permute.xlu0 %1159
  %v1162 = vadd.f32 %v1152, %v1160
  %v1163 = vtanh.pop %v1162
  %1165 = vrot.lane.b32.xlu0 %v1163, 64
  %v1166 = vpop.permute.xlu0 %1165
  %v1168 = vmul.f32 %v1144, %v1166
  %1170 = vrot.lane.b32.xlu0 %v1162, 96
  %v1171 = vpop.permute.xlu0 %1170
  %1173 = vst.msk [vmem:[#allocation6] sm:$0xff] %vm196, %v1171
  %1175 = vrot.lane.b32.xlu0 %v1168, 32
  %v1176 = vpop.permute.xlu0 %1175
  %1178 = vst.msk [vmem:[#allocation5] sm:$0xff] %vm196, %v1176
  %s1179 = scalar_lea.vmem [#allocation3], 56
  %1180 = vst.msk [vmem:[%s1179] sm:$0xff] %vm196, %v1176
  %v1181 = vld [vmem:[#allocation5] sm:$0xff]
  %1182 = vst.msk [vmem:[#allocation4] sm:$0xff] %vm196, %v1181
  %v1183 = vld [vmem:[#allocation3] sm:$0xff]
  %v1184 = vld [vmem:[#allocation3 + $0x8] sm:$0xff]
  %v1185 = vld [vmem:[#allocation3 + $0x10] sm:$0xff]
  %v1186 = vld [vmem:[#allocation3 + $0x18] sm:$0xff]
  %v1187 = vld [vmem:[#allocation3 + $0x20] sm:$0xff]
  %v1188 = vld [vmem:[#allocation3 + $0x28] sm:$0xff]
  %v1189 = vld [vmem:[#allocation3 + $0x30] sm:$0xff]
  %v1190 = vld [vmem:[#allocation3 + $0x38] sm:$0xff]
  %v1191 = vld [vmem:[%s4] sm:$0xff]
  %v1192 = vld [vmem:[%s4 + $0x8] sm:$0xff]
  %v1193 = vld [vmem:[%s4 + $0x10] sm:$0xff]
  %v1194 = vld [vmem:[%s4 + $0x18] sm:$0xff]
  %v1195 = vld [vmem:[%s6] sm:$0x1]
  %v1197 = vlaneseq
  %v1198 = vshrl.u32 %v1197, 7
  %v1199 = vsub.s32 0, %v1198
  %v1200 = vrot.slane %v1195, %v1199
  %v1203 = vsel %vm196, %v1183, 0
  %v1206 = vsel %vm196, %v1184, 0
  %v1209 = vsel %vm196, %v1185, 0
  %v1212 = vsel %vm196, %v1186, 0
  %v1215 = vsel %vm196, %v1187, 0
  %v1218 = vsel %vm196, %v1188, 0
  %v1221 = vsel %vm196, %v1189, 0
  %v1224 = vsel %vm196, %v1190, 0
  %1226 = vmatprep.subr.mxu0 0.0
  %1227 = vmatpush1.msra.mxu0 0.0
  %1228 = vmatprep.subr.mxu0 0.0
  %1229 = vmatpush1.msra.mxu0 0.0
  %1230 = vmatprep.subr.mxu0 0.0
  %1231 = vmatpush1.msra.mxu0 0.0
  %1232 = vmatprep.subr.mxu0 0.0
  %1233 = vmatpush1.msra.mxu0 0.0
  %1234 = vmatprep.subr.mxu0 0.0
  %1235 = vmatpush1.msra.mxu0 0.0
  %1236 = vmatprep.subr.mxu0 0.0
  %1237 = vmatpush1.msra.mxu0 0.0
  %1238 = vmatprep.subr.mxu0 0.0
  %1239 = vmatpush1.msra.mxu0 0.0
  %1240 = vmatprep.subr.mxu0 0.0
  %1241 = vmatpush1.msra.mxu0 0.0
  %1242 = vmatprep.subr.mxu0 0.0
  %1243 = vmatpush1.msra.mxu0 0.0
  %1244 = vmatprep.subr.mxu0 0.0
  %1245 = vmatpush1.msra.mxu0 0.0
  %1246 = vmatprep.subr.mxu0 0.0
  %1247 = vmatpush1.msra.mxu0 0.0
  %1248 = vmatprep.subr.mxu0 0.0
  %1249 = vmatpush1.msra.mxu0 0.0
  %1250 = vmatprep.subr.mxu0 0.0
  %1251 = vmatpush1.msra.mxu0 %v1194
  %1252 = vmatprep.subr.mxu0 0.0
  %1253 = vmatpush1.msra.mxu0 %v1193
  %1254 = vmatprep.subr.mxu0 0.0
  %1255 = vmatpush1.msra.mxu0 %v1192
  %1256 = vmatprep.subr.mxu0 0.0
  %1257 = vmatpush1.msra.mxu0 %v1191
  %1258 = vmatprep.subr.mxu0 0.0
  %1259 = vmatpush2.msra.mxu0 0.0
  %1260 = vmatprep.subr.mxu0 0.0
  %1261 = vmatpush2.msra.mxu0 0.0
  %1262 = vmatprep.subr.mxu0 0.0
  %1263 = vmatpush2.msra.mxu0 0.0
  %1264 = vmatprep.subr.mxu0 0.0
  %1265 = vmatpush2.msra.mxu0 0.0
  %1266 = vmatprep.subr.mxu0 0.0
  %1267 = vmatpush2.msra.mxu0 0.0
  %1268 = vmatprep.subr.mxu0 0.0
  %1269 = vmatpush2.msra.mxu0 0.0
  %1270 = vmatprep.subr.mxu0 0.0
  %1271 = vmatpush2.msra.mxu0 0.0
  %1272 = vmatprep.subr.mxu0 0.0
  %1273 = vmatpush2.msra.mxu0 0.0
  %1274 = vmatprep.subr.mxu0 0.0
  %1275 = vmatpush2.msra.mxu0 0.0
  %1276 = vmatprep.subr.mxu0 0.0
  %1277 = vmatpush2.msra.mxu0 0.0
  %1278 = vmatprep.subr.mxu0 0.0
  %1279 = vmatpush2.msra.mxu0 0.0
  %1280 = vmatprep.subr.mxu0 0.0
  %1281 = vmatpush2.msra.mxu0 0.0
  %1282 = vmatprep.subr.mxu0 0.0
  %1283 = vmatpush2.msra.mxu0 0.0
  %1284 = vmatprep.subr.mxu0 0.0
  %1285 = vmatpush2.msra.mxu0 0.0
  %1286 = vmatprep.subr.mxu0 0.0
  %1287 = vmatpush2.msra.mxu0 0.0
  %1288 = vmatprep.subr.mxu0 0.0
  %1289 = vmatpush2.msra.mxu0 0.0
  %1290 = vmatprep.mubr.f32.mxu0 0.0
  %1291 = vmatmul.mubr.f32.gmra.mxu0 %v1203
  %v1292 = vpop.f32.mrf.mxu0
  %v1293 = vadd.f32 %v1200, %v1292
  %v1294 = vpop.f32.mrf.mxu0
  %1295 = vmatprep.mubr.f32.mxu0 0.0
  %1296 = vmatmul.mubr.f32.gmra.mxu0 %v1206
  %v1297 = vpop.f32.mrf.mxu0
  %v1298 = vadd.f32 %v1200, %v1297
  %v1299 = vpop.f32.mrf.mxu0
  %1300 = vmatprep.mubr.f32.mxu0 0.0
  %1301 = vmatmul.mubr.f32.gmra.mxu0 %v1209
  %v1302 = vpop.f32.mrf.mxu0
  %v1303 = vadd.f32 %v1200, %v1302
  %v1304 = vpop.f32.mrf.mxu0
  %1305 = vmatprep.mubr.f32.mxu0 0.0
  %1306 = vmatmul.mubr.f32.gmra.mxu0 %v1212
  %v1307 = vpop.f32.mrf.mxu0
  %v1308 = vadd.f32 %v1200, %v1307
  %v1309 = vpop.f32.mrf.mxu0
  %1310 = vmatprep.mubr.f32.mxu0 0.0
  %1311 = vmatmul.mubr.f32.gmra.mxu0 %v1215
  %v1312 = vpop.f32.mrf.mxu0
  %v1313 = vadd.f32 %v1200, %v1312
  %v1314 = vpop.f32.mrf.mxu0
  %1315 = vmatprep.mubr.f32.mxu0 0.0
  %1316 = vmatmul.mubr.f32.gmra.mxu0 %v1218
  %v1317 = vpop.f32.mrf.mxu0
  %v1318 = vadd.f32 %v1200, %v1317
  %v1319 = vpop.f32.mrf.mxu0
  %1320 = vmatprep.mubr.f32.mxu0 0.0
  %1321 = vmatmul.mubr.f32.gmra.mxu0 %v1221
  %v1322 = vpop.f32.mrf.mxu0
  %v1323 = vadd.f32 %v1200, %v1322
  %v1324 = vpop.f32.mrf.mxu0
  %1325 = vmatprep.mubr.f32.mxu0 0.0
  %1326 = vmatmul.mubr.f32.gmra.mxu0 %v1224
  %v1327 = vpop.f32.mrf.mxu0
  %v1328 = vadd.f32 %v1200, %v1327
  %v1329 = vpop.f32.mrf.mxu0
  %1330 = vdwg.mxu0
  %1331 = vst [vmem:[#allocation2] sm:$0xff] %v1293
  %1332 = vst [vmem:[#allocation2 + $0x8] sm:$0xff] %v1298
  %1333 = vst [vmem:[#allocation2 + $0x10] sm:$0xff] %v1303
  %1334 = vst [vmem:[#allocation2 + $0x18] sm:$0xff] %v1308
  %1335 = vst [vmem:[#allocation2 + $0x20] sm:$0xff] %v1313
  %1336 = vst [vmem:[#allocation2 + $0x28] sm:$0xff] %v1318
  %1337 = vst [vmem:[#allocation2 + $0x30] sm:$0xff] %v1323
  %1338 = vst [vmem:[#allocation2 + $0x38] sm:$0xff] %v1328
  %1339 = vst.msk [vmem:[#allocation5] sm:$0xff] %vm196, 0.0
  %1340 = vst.msk [vmem:[#allocation6] sm:$0xff] %vm196, 0.0
  %v1341 = vld [vmem:[#allocation2] sm:$0xff]
  %v1342 = vld [vmem:[#allocation5] sm:$0xff]
  %v1343 = vld [vmem:[%s5] sm:$0xff]
  %v1344 = vld [vmem:[%s5 + $0x8] sm:$0xff]
  %v1345 = vld [vmem:[%s5 + $0x10] sm:$0xff]
  %v1346 = vld [vmem:[%s5 + $0x18] sm:$0xff]
  %v1348 = vsel %vm196, %v1342, 0
  %1350 = vmatprep.subr.mxu0 0.0
  %1351 = vmatpush1.msra.mxu0 0.0
  %1352 = vmatprep.subr.mxu0 0.0
  %1353 = vmatpush1.msra.mxu0 0.0
  %1354 = vmatprep.subr.mxu0 0.0
  %1355 = vmatpush1.msra.mxu0 0.0
  %1356 = vmatprep.subr.mxu0 0.0
  %1357 = vmatpush1.msra.mxu0 0.0
  %1358 = vmatprep.subr.mxu0 0.0
  %1359 = vmatpush1.msra.mxu0 0.0
  %1360 = vmatprep.subr.mxu0 0.0
  %1361 = vmatpush1.msra.mxu0 0.0
  %1362 = vmatprep.subr.mxu0 0.0
  %1363 = vmatpush1.msra.mxu0 0.0
  %1364 = vmatprep.subr.mxu0 0.0
  %1365 = vmatpush1.msra.mxu0 0.0
  %1366 = vmatprep.subr.mxu0 0.0
  %1367 = vmatpush1.msra.mxu0 0.0
  %1368 = vmatprep.subr.mxu0 0.0
  %1369 = vmatpush1.msra.mxu0 0.0
  %1370 = vmatprep.subr.mxu0 0.0
  %1371 = vmatpush1.msra.mxu0 0.0
  %1372 = vmatprep.subr.mxu0 0.0
  %1373 = vmatpush1.msra.mxu0 0.0
  %1374 = vmatprep.subr.mxu0 0.0
  %1375 = vmatpush1.msra.mxu0 %v1346
  %1376 = vmatprep.subr.mxu0 0.0
  %1377 = vmatpush1.msra.mxu0 %v1345
  %1378 = vmatprep.subr.mxu0 0.0
  %1379 = vmatpush1.msra.mxu0 %v1344
  %1380 = vmatprep.subr.mxu0 0.0
  %1381 = vmatpush1.msra.mxu0 %v1343
  %1382 = vmatprep.subr.mxu0 0.0
  %1383 = vmatpush2.msra.mxu0 0.0
  %1384 = vmatprep.subr.mxu0 0.0
  %1385 = vmatpush2.msra.mxu0 0.0
  %1386 = vmatprep.subr.mxu0 0.0
  %1387 = vmatpush2.msra.mxu0 0.0
  %1388 = vmatprep.subr.mxu0 0.0
  %1389 = vmatpush2.msra.mxu0 0.0
  %1390 = vmatprep.subr.mxu0 0.0
  %1391 = vmatpush2.msra.mxu0 0.0
  %1392 = vmatprep.subr.mxu0 0.0
  %1393 = vmatpush2.msra.mxu0 0.0
  %1394 = vmatprep.subr.mxu0 0.0
  %1395 = vmatpush2.msra.mxu0 0.0
  %1396 = vmatprep.subr.mxu0 0.0
  %1397 = vmatpush2.msra.mxu0 0.0
  %1398 = vmatprep.subr.mxu0 0.0
  %1399 = vmatpush2.msra.mxu0 0.0
  %1400 = vmatprep.subr.mxu0 0.0
  %1401 = vmatpush2.msra.mxu0 0.0
  %1402 = vmatprep.subr.mxu0 0.0
  %1403 = vmatpush2.msra.mxu0 0.0
  %1404 = vmatprep.subr.mxu0 0.0
  %1405 = vmatpush2.msra.mxu0 0.0
  %1406 = vmatprep.subr.mxu0 0.0
  %1407 = vmatpush2.msra.mxu0 0.0
  %1408 = vmatprep.subr.mxu0 0.0
  %1409 = vmatpush2.msra.mxu0 0.0
  %1410 = vmatprep.subr.mxu0 0.0
  %1411 = vmatpush2.msra.mxu0 0.0
  %1412 = vmatprep.subr.mxu0 0.0
  %1413 = vmatpush2.msra.mxu0 0.0
  %1414 = vmatprep.mubr.f32.mxu0 0.0
  %1415 = vmatmul.mubr.f32.gmra.mxu0 %v1348
  %v1416 = vpop.f32.mrf.mxu0
  %v1417 = vadd.f32 0.0, %v1416
  %v1418 = vpop.f32.mrf.mxu0
  %1419 = vdwg.mxu0
  %v1420 = vadd.f32 %v1341, %v1417
  %v1421 = vxor.u32 %v1420, 2147483648
  %v1422 = vmul.f32 %v1421, 1.442695
  %v1423 = vpow.pop %v1422
  %v1424 = vadd.f32 %v1423, 1.0
  %v1425 = vrcp.pop %v1424
  %v1426 = vmul.f32 1.0, %v1425
  %v1427 = vmul.f32 %v1426, 2.0
  %v1428 = vsub.f32 %v1427, 1.0
  %v1429 = vld [vmem:[#allocation6] sm:$0xff]
  %1431 = vrot.lane.b32.xlu0 %v1429, 32
  %v1432 = vpop.permute.xlu0 %1431
  %v1434 = vmul.f32 %v1426, %v1432
  %1436 = vrot.lane.b32.xlu0 %v1428, 64
  %v1437 = vpop.permute.xlu0 %1436
  %v1439 = vmul.f32 %v1426, %v1437
  %1441 = vrot.lane.b32.xlu0 %v1439, 32
  %v1442 = vpop.permute.xlu0 %1441
  %v1444 = vadd.f32 %v1434, %v1442
  %v1445 = vtanh.pop %v1444
  %1447 = vrot.lane.b32.xlu0 %v1445, 64
  %v1448 = vpop.permute.xlu0 %1447
  %v1450 = vmul.f32 %v1426, %v1448
  %1452 = vrot.lane.b32.xlu0 %v1444, 96
  %v1453 = vpop.permute.xlu0 %1452
  %1455 = vst.msk [vmem:[#allocation6] sm:$0xff] %vm196, %v1453
  %1457 = vrot.lane.b32.xlu0 %v1450, 32
  %v1458 = vpop.permute.xlu0 %1457
  %1460 = vst.msk [vmem:[#allocation5] sm:$0xff] %vm196, %v1458
  %v1461 = vld [vmem:[%s320] sm:$0xff]
  %v1462 = vld [vmem:[#allocation5] sm:$0xff]
  %v1463 = vld [vmem:[%s5] sm:$0xff]
  %v1464 = vld [vmem:[%s5 + $0x8] sm:$0xff]
  %v1465 = vld [vmem:[%s5 + $0x10] sm:$0xff]
  %v1466 = vld [vmem:[%s5 + $0x18] sm:$0xff]
  %v1468 = vsel %vm196, %v1462, 0
  %1470 = vmatprep.subr.mxu0 0.0
  %1471 = vmatpush1.msra.mxu0 0.0
  %1472 = vmatprep.subr.mxu0 0.0
  %1473 = vmatpush1.msra.mxu0 0.0
  %1474 = vmatprep.subr.mxu0 0.0
  %1475 = vmatpush1.msra.mxu0 0.0
  %1476 = vmatprep.subr.mxu0 0.0
  %1477 = vmatpush1.msra.mxu0 0.0
  %1478 = vmatprep.subr.mxu0 0.0
  %1479 = vmatpush1.msra.mxu0 0.0
  %1480 = vmatprep.subr.mxu0 0.0
  %1481 = vmatpush1.msra.mxu0 0.0
  %1482 = vmatprep.subr.mxu0 0.0
  %1483 = vmatpush1.msra.mxu0 0.0
  %1484 = vmatprep.subr.mxu0 0.0
  %1485 = vmatpush1.msra.mxu0 0.0
  %1486 = vmatprep.subr.mxu0 0.0
  %1487 = vmatpush1.msra.mxu0 0.0
  %1488 = vmatprep.subr.mxu0 0.0
  %1489 = vmatpush1.msra.mxu0 0.0
  %1490 = vmatprep.subr.mxu0 0.0
  %1491 = vmatpush1.msra.mxu0 0.0
  %1492 = vmatprep.subr.mxu0 0.0
  %1493 = vmatpush1.msra.mxu0 0.0
  %1494 = vmatprep.subr.mxu0 0.0
  %1495 = vmatpush1.msra.mxu0 %v1466
  %1496 = vmatprep.subr.mxu0 0.0
  %1497 = vmatpush1.msra.mxu0 %v1465
  %1498 = vmatprep.subr.mxu0 0.0
  %1499 = vmatpush1.msra.mxu0 %v1464
  %1500 = vmatprep.subr.mxu0 0.0
  %1501 = vmatpush1.msra.mxu0 %v1463
  %1502 = vmatprep.subr.mxu0 0.0
  %1503 = vmatpush2.msra.mxu0 0.0
  %1504 = vmatprep.subr.mxu0 0.0
  %1505 = vmatpush2.msra.mxu0 0.0
  %1506 = vmatprep.subr.mxu0 0.0
  %1507 = vmatpush2.msra.mxu0 0.0
  %1508 = vmatprep.subr.mxu0 0.0
  %1509 = vmatpush2.msra.mxu0 0.0
  %1510 = vmatprep.subr.mxu0 0.0
  %1511 = vmatpush2.msra.mxu0 0.0
  %1512 = vmatprep.subr.mxu0 0.0
  %1513 = vmatpush2.msra.mxu0 0.0
  %1514 = vmatprep.subr.mxu0 0.0
  %1515 = vmatpush2.msra.mxu0 0.0
  %1516 = vmatprep.subr.mxu0 0.0
  %1517 = vmatpush2.msra.mxu0 0.0
  %1518 = vmatprep.subr.mxu0 0.0
  %1519 = vmatpush2.msra.mxu0 0.0
  %1520 = vmatprep.subr.mxu0 0.0
  %1521 = vmatpush2.msra.mxu0 0.0
  %1522 = vmatprep.subr.mxu0 0.0
  %1523 = vmatpush2.msra.mxu0 0.0
  %1524 = vmatprep.subr.mxu0 0.0
  %1525 = vmatpush2.msra.mxu0 0.0
  %1526 = vmatprep.subr.mxu0 0.0
  %1527 = vmatpush2.msra.mxu0 0.0
  %1528 = vmatprep.subr.mxu0 0.0
  %1529 = vmatpush2.msra.mxu0 0.0
  %1530 = vmatprep.subr.mxu0 0.0
  %1531 = vmatpush2.msra.mxu0 0.0
  %1532 = vmatprep.subr.mxu0 0.0
  %1533 = vmatpush2.msra.mxu0 0.0
  %1534 = vmatprep.mubr.f32.mxu0 0.0
  %1535 = vmatmul.mubr.f32.gmra.mxu0 %v1468
  %v1536 = vpop.f32.mrf.mxu0
  %v1537 = vadd.f32 0.0, %v1536
  %v1538 = vpop.f32.mrf.mxu0
  %1539 = vdwg.mxu0
  %v1540 = vadd.f32 %v1461, %v1537
  %v1541 = vxor.u32 %v1540, 2147483648
  %v1542 = vmul.f32 %v1541, 1.442695
  %v1543 = vpow.pop %v1542
  %v1544 = vadd.f32 %v1543, 1.0
  %v1545 = vrcp.pop %v1544
  %v1546 = vmul.f32 1.0, %v1545
  %v1547 = vmul.f32 %v1546, 2.0
  %v1548 = vsub.f32 %v1547, 1.0
  %v1549 = vld [vmem:[#allocation6] sm:$0xff]
  %1551 = vrot.lane.b32.xlu0 %v1549, 32
  %v1552 = vpop.permute.xlu0 %1551
  %v1554 = vmul.f32 %v1546, %v1552
  %1556 = vrot.lane.b32.xlu0 %v1548, 64
  %v1557 = vpop.permute.xlu0 %1556
  %v1559 = vmul.f32 %v1546, %v1557
  %1561 = vrot.lane.b32.xlu0 %v1559, 32
  %v1562 = vpop.permute.xlu0 %1561
  %v1564 = vadd.f32 %v1554, %v1562
  %v1565 = vtanh.pop %v1564
  %1567 = vrot.lane.b32.xlu0 %v1565, 64
  %v1568 = vpop.permute.xlu0 %1567
  %v1570 = vmul.f32 %v1546, %v1568
  %1572 = vrot.lane.b32.xlu0 %v1564, 96
  %v1573 = vpop.permute.xlu0 %1572
  %1575 = vst.msk [vmem:[#allocation6] sm:$0xff] %vm196, %v1573
  %1577 = vrot.lane.b32.xlu0 %v1570, 32
  %v1578 = vpop.permute.xlu0 %1577
  %1580 = vst.msk [vmem:[#allocation5] sm:$0xff] %vm196, %v1578
  %v1581 = vld [vmem:[%s443] sm:$0xff]
  %v1582 = vld [vmem:[#allocation5] sm:$0xff]
  %v1583 = vld [vmem:[%s5] sm:$0xff]
  %v1584 = vld [vmem:[%s5 + $0x8] sm:$0xff]
  %v1585 = vld [vmem:[%s5 + $0x10] sm:$0xff]
  %v1586 = vld [vmem:[%s5 + $0x18] sm:$0xff]
  %v1588 = vsel %vm196, %v1582, 0
  %1590 = vmatprep.subr.mxu0 0.0
  %1591 = vmatpush1.msra.mxu0 0.0
  %1592 = vmatprep.subr.mxu0 0.0
  %1593 = vmatpush1.msra.mxu0 0.0
  %1594 = vmatprep.subr.mxu0 0.0
  %1595 = vmatpush1.msra.mxu0 0.0
  %1596 = vmatprep.subr.mxu0 0.0
  %1597 = vmatpush1.msra.mxu0 0.0
  %1598 = vmatprep.subr.mxu0 0.0
  %1599 = vmatpush1.msra.mxu0 0.0
  %1600 = vmatprep.subr.mxu0 0.0
  %1601 = vmatpush1.msra.mxu0 0.0
  %1602 = vmatprep.subr.mxu0 0.0
  %1603 = vmatpush1.msra.mxu0 0.0
  %1604 = vmatprep.subr.mxu0 0.0
  %1605 = vmatpush1.msra.mxu0 0.0
  %1606 = vmatprep.subr.mxu0 0.0
  %1607 = vmatpush1.msra.mxu0 0.0
  %1608 = vmatprep.subr.mxu0 0.0
  %1609 = vmatpush1.msra.mxu0 0.0
  %1610 = vmatprep.subr.mxu0 0.0
  %1611 = vmatpush1.msra.mxu0 0.0
  %1612 = vmatprep.subr.mxu0 0.0
  %1613 = vmatpush1.msra.mxu0 0.0
  %1614 = vmatprep.subr.mxu0 0.0
  %1615 = vmatpush1.msra.mxu0 %v1586
  %1616 = vmatprep.subr.mxu0 0.0
  %1617 = vmatpush1.msra.mxu0 %v1585
  %1618 = vmatprep.subr.mxu0 0.0
  %1619 = vmatpush1.msra.mxu0 %v1584
  %1620 = vmatprep.subr.mxu0 0.0
  %1621 = vmatpush1.msra.mxu0 %v1583
  %1622 = vmatprep.subr.mxu0 0.0
  %1623 = vmatpush2.msra.mxu0 0.0
  %1624 = vmatprep.subr.mxu0 0.0
  %1625 = vmatpush2.msra.mxu0 0.0
  %1626 = vmatprep.subr.mxu0 0.0
  %1627 = vmatpush2.msra.mxu0 0.0
  %1628 = vmatprep.subr.mxu0 0.0
  %1629 = vmatpush2.msra.mxu0 0.0
  %1630 = vmatprep.subr.mxu0 0.0
  %1631 = vmatpush2.msra.mxu0 0.0
  %1632 = vmatprep.subr.mxu0 0.0
  %1633 = vmatpush2.msra.mxu0 0.0
  %1634 = vmatprep.subr.mxu0 0.0
  %1635 = vmatpush2.msra.mxu0 0.0
  %1636 = vmatprep.subr.mxu0 0.0
  %1637 = vmatpush2.msra.mxu0 0.0
  %1638 = vmatprep.subr.mxu0 0.0
  %1639 = vmatpush2.msra.mxu0 0.0
  %1640 = vmatprep.subr.mxu0 0.0
  %1641 = vmatpush2.msra.mxu0 0.0
  %1642 = vmatprep.subr.mxu0 0.0
  %1643 = vmatpush2.msra.mxu0 0.0
  %1644 = vmatprep.subr.mxu0 0.0
  %1645 = vmatpush2.msra.mxu0 0.0
  %1646 = vmatprep.subr.mxu0 0.0
  %1647 = vmatpush2.msra.mxu0 0.0
  %1648 = vmatprep.subr.mxu0 0.0
  %1649 = vmatpush2.msra.mxu0 0.0
  %1650 = vmatprep.subr.mxu0 0.0
  %1651 = vmatpush2.msra.mxu0 0.0
  %1652 = vmatprep.subr.mxu0 0.0
  %1653 = vmatpush2.msra.mxu0 0.0
  %1654 = vmatprep.mubr.f32.mxu0 0.0
  %1655 = vmatmul.mubr.f32.gmra.mxu0 %v1588
  %v1656 = vpop.f32.mrf.mxu0
  %v1657 = vadd.f32 0.0, %v1656
  %v1658 = vpop.f32.mrf.mxu0
  %1659 = vdwg.mxu0
  %v1660 = vadd.f32 %v1581, %v1657
  %v1661 = vxor.u32 %v1660, 2147483648
  %v1662 = vmul.f32 %v1661, 1.442695
  %v1663 = vpow.pop %v1662
  %v1664 = vadd.f32 %v1663, 1.0
  %v1665 = vrcp.pop %v1664
  %v1666 = vmul.f32 1.0, %v1665
  %v1667 = vmul.f32 %v1666, 2.0
  %v1668 = vsub.f32 %v1667, 1.0
  %v1669 = vld [vmem:[#allocation6] sm:$0xff]
  %1671 = vrot.lane.b32.xlu0 %v1669, 32
  %v1672 = vpop.permute.xlu0 %1671
  %v1674 = vmul.f32 %v1666, %v1672
  %1676 = vrot.lane.b32.xlu0 %v1668, 64
  %v1677 = vpop.permute.xlu0 %1676
  %v1679 = vmul.f32 %v1666, %v1677
  %1681 = vrot.lane.b32.xlu0 %v1679, 32
  %v1682 = vpop.permute.xlu0 %1681
  %v1684 = vadd.f32 %v1674, %v1682
  %v1685 = vtanh.pop %v1684
  %1687 = vrot.lane.b32.xlu0 %v1685, 64
  %v1688 = vpop.permute.xlu0 %1687
  %v1690 = vmul.f32 %v1666, %v1688
  %1692 = vrot.lane.b32.xlu0 %v1684, 96
  %v1693 = vpop.permute.xlu0 %1692
  %1695 = vst.msk [vmem:[#allocation6] sm:$0xff] %vm196, %v1693
  %1697 = vrot.lane.b32.xlu0 %v1690, 32
  %v1698 = vpop.permute.xlu0 %1697
  %1700 = vst.msk [vmem:[#allocation5] sm:$0xff] %vm196, %v1698
  %v1701 = vld [vmem:[%s566] sm:$0xff]
  %v1702 = vld [vmem:[#allocation5] sm:$0xff]
  %v1703 = vld [vmem:[%s5] sm:$0xff]
  %v1704 = vld [vmem:[%s5 + $0x8] sm:$0xff]
  %v1705 = vld [vmem:[%s5 + $0x10] sm:$0xff]
  %v1706 = vld [vmem:[%s5 + $0x18] sm:$0xff]
  %v1708 = vsel %vm196, %v1702, 0
  %1710 = vmatprep.subr.mxu0 0.0
  %1711 = vmatpush1.msra.mxu0 0.0
  %1712 = vmatprep.subr.mxu0 0.0
  %1713 = vmatpush1.msra.mxu0 0.0
  %1714 = vmatprep.subr.mxu0 0.0
  %1715 = vmatpush1.msra.mxu0 0.0
  %1716 = vmatprep.subr.mxu0 0.0
  %1717 = vmatpush1.msra.mxu0 0.0
  %1718 = vmatprep.subr.mxu0 0.0
  %1719 = vmatpush1.msra.mxu0 0.0
  %1720 = vmatprep.subr.mxu0 0.0
  %1721 = vmatpush1.msra.mxu0 0.0
  %1722 = vmatprep.subr.mxu0 0.0
  %1723 = vmatpush1.msra.mxu0 0.0
  %1724 = vmatprep.subr.mxu0 0.0
  %1725 = vmatpush1.msra.mxu0 0.0
  %1726 = vmatprep.subr.mxu0 0.0
  %1727 = vmatpush1.msra.mxu0 0.0
  %1728 = vmatprep.subr.mxu0 0.0
  %1729 = vmatpush1.msra.mxu0 0.0
  %1730 = vmatprep.subr.mxu0 0.0
  %1731 = vmatpush1.msra.mxu0 0.0
  %1732 = vmatprep.subr.mxu0 0.0
  %1733 = vmatpush1.msra.mxu0 0.0
  %1734 = vmatprep.subr.mxu0 0.0
  %1735 = vmatpush1.msra.mxu0 %v1706
  %1736 = vmatprep.subr.mxu0 0.0
  %1737 = vmatpush1.msra.mxu0 %v1705
  %1738 = vmatprep.subr.mxu0 0.0
  %1739 = vmatpush1.msra.mxu0 %v1704
  %1740 = vmatprep.subr.mxu0 0.0
  %1741 = vmatpush1.msra.mxu0 %v1703
  %1742 = vmatprep.subr.mxu0 0.0
  %1743 = vmatpush2.msra.mxu0 0.0
  %1744 = vmatprep.subr.mxu0 0.0
  %1745 = vmatpush2.msra.mxu0 0.0
  %1746 = vmatprep.subr.mxu0 0.0
  %1747 = vmatpush2.msra.mxu0 0.0
  %1748 = vmatprep.subr.mxu0 0.0
  %1749 = vmatpush2.msra.mxu0 0.0
  %1750 = vmatprep.subr.mxu0 0.0
  %1751 = vmatpush2.msra.mxu0 0.0
  %1752 = vmatprep.subr.mxu0 0.0
  %1753 = vmatpush2.msra.mxu0 0.0
  %1754 = vmatprep.subr.mxu0 0.0
  %1755 = vmatpush2.msra.mxu0 0.0
  %1756 = vmatprep.subr.mxu0 0.0
  %1757 = vmatpush2.msra.mxu0 0.0
  %1758 = vmatprep.subr.mxu0 0.0
  %1759 = vmatpush2.msra.mxu0 0.0
  %1760 = vmatprep.subr.mxu0 0.0
  %1761 = vmatpush2.msra.mxu0 0.0
  %1762 = vmatprep.subr.mxu0 0.0
  %1763 = vmatpush2.msra.mxu0 0.0
  %1764 = vmatprep.subr.mxu0 0.0
  %1765 = vmatpush2.msra.mxu0 0.0
  %1766 = vmatprep.subr.mxu0 0.0
  %1767 = vmatpush2.msra.mxu0 0.0
  %1768 = vmatprep.subr.mxu0 0.0
  %1769 = vmatpush2.msra.mxu0 0.0
  %1770 = vmatprep.subr.mxu0 0.0
  %1771 = vmatpush2.msra.mxu0 0.0
  %1772 = vmatprep.subr.mxu0 0.0
  %1773 = vmatpush2.msra.mxu0 0.0
  %1774 = vmatprep.mubr.f32.mxu0 0.0
  %1775 = vmatmul.mubr.f32.gmra.mxu0 %v1708
  %v1776 = vpop.f32.mrf.mxu0
  %v1777 = vadd.f32 0.0, %v1776
  %v1778 = vpop.f32.mrf.mxu0
  %1779 = vdwg.mxu0
  %v1780 = vadd.f32 %v1701, %v1777
  %v1781 = vxor.u32 %v1780, 2147483648
  %v1782 = vmul.f32 %v1781, 1.442695
  %v1783 = vpow.pop %v1782
  %v1784 = vadd.f32 %v1783, 1.0
  %v1785 = vrcp.pop %v1784
  %v1786 = vmul.f32 1.0, %v1785
  %v1787 = vmul.f32 %v1786, 2.0
  %v1788 = vsub.f32 %v1787, 1.0
  %v1789 = vld [vmem:[#allocation6] sm:$0xff]
  %1791 = vrot.lane.b32.xlu0 %v1789, 32
  %v1792 = vpop.permute.xlu0 %1791
  %v1794 = vmul.f32 %v1786, %v1792
  %1796 = vrot.lane.b32.xlu0 %v1788, 64
  %v1797 = vpop.permute.xlu0 %1796
  %v1799 = vmul.f32 %v1786, %v1797
  %1801 = vrot.lane.b32.xlu0 %v1799, 32
  %v1802 = vpop.permute.xlu0 %1801
  %v1804 = vadd.f32 %v1794, %v1802
  %v1805 = vtanh.pop %v1804
  %1807 = vrot.lane.b32.xlu0 %v1805, 64
  %v1808 = vpop.permute.xlu0 %1807
  %v1810 = vmul.f32 %v1786, %v1808
  %1812 = vrot.lane.b32.xlu0 %v1804, 96
  %v1813 = vpop.permute.xlu0 %1812
  %1815 = vst.msk [vmem:[#allocation6] sm:$0xff] %vm196, %v1813
  %1817 = vrot.lane.b32.xlu0 %v1810, 32
  %v1818 = vpop.permute.xlu0 %1817
  %1820 = vst.msk [vmem:[#allocation5] sm:$0xff] %vm196, %v1818
  %v1821 = vld [vmem:[%s689] sm:$0xff]
  %v1822 = vld [vmem:[#allocation5] sm:$0xff]
  %v1823 = vld [vmem:[%s5] sm:$0xff]
  %v1824 = vld [vmem:[%s5 + $0x8] sm:$0xff]
  %v1825 = vld [vmem:[%s5 + $0x10] sm:$0xff]
  %v1826 = vld [vmem:[%s5 + $0x18] sm:$0xff]
  %v1828 = vsel %vm196, %v1822, 0
  %1830 = vmatprep.subr.mxu0 0.0
  %1831 = vmatpush1.msra.mxu0 0.0
  %1832 = vmatprep.subr.mxu0 0.0
  %1833 = vmatpush1.msra.mxu0 0.0
  %1834 = vmatprep.subr.mxu0 0.0
  %1835 = vmatpush1.msra.mxu0 0.0
  %1836 = vmatprep.subr.mxu0 0.0
  %1837 = vmatpush1.msra.mxu0 0.0
  %1838 = vmatprep.subr.mxu0 0.0
  %1839 = vmatpush1.msra.mxu0 0.0
  %1840 = vmatprep.subr.mxu0 0.0
  %1841 = vmatpush1.msra.mxu0 0.0
  %1842 = vmatprep.subr.mxu0 0.0
  %1843 = vmatpush1.msra.mxu0 0.0
  %1844 = vmatprep.subr.mxu0 0.0
  %1845 = vmatpush1.msra.mxu0 0.0
  %1846 = vmatprep.subr.mxu0 0.0
  %1847 = vmatpush1.msra.mxu0 0.0
  %1848 = vmatprep.subr.mxu0 0.0
  %1849 = vmatpush1.msra.mxu0 0.0
  %1850 = vmatprep.subr.mxu0 0.0
  %1851 = vmatpush1.msra.mxu0 0.0
  %1852 = vmatprep.subr.mxu0 0.0
  %1853 = vmatpush1.msra.mxu0 0.0
  %1854 = vmatprep.subr.mxu0 0.0
  %1855 = vmatpush1.msra.mxu0 %v1826
  %1856 = vmatprep.subr.mxu0 0.0
  %1857 = vmatpush1.msra.mxu0 %v1825
  %1858 = vmatprep.subr.mxu0 0.0
  %1859 = vmatpush1.msra.mxu0 %v1824
  %1860 = vmatprep.subr.mxu0 0.0
  %1861 = vmatpush1.msra.mxu0 %v1823
  %1862 = vmatprep.subr.mxu0 0.0
  %1863 = vmatpush2.msra.mxu0 0.0
  %1864 = vmatprep.subr.mxu0 0.0
  %1865 = vmatpush2.msra.mxu0 0.0
  %1866 = vmatprep.subr.mxu0 0.0
  %1867 = vmatpush2.msra.mxu0 0.0
  %1868 = vmatprep.subr.mxu0 0.0
  %1869 = vmatpush2.msra.mxu0 0.0
  %1870 = vmatprep.subr.mxu0 0.0
  %1871 = vmatpush2.msra.mxu0 0.0
  %1872 = vmatprep.subr.mxu0 0.0
  %1873 = vmatpush2.msra.mxu0 0.0
  %1874 = vmatprep.subr.mxu0 0.0
  %1875 = vmatpush2.msra.mxu0 0.0
  %1876 = vmatprep.subr.mxu0 0.0
  %1877 = vmatpush2.msra.mxu0 0.0
  %1878 = vmatprep.subr.mxu0 0.0
  %1879 = vmatpush2.msra.mxu0 0.0
  %1880 = vmatprep.subr.mxu0 0.0
  %1881 = vmatpush2.msra.mxu0 0.0
  %1882 = vmatprep.subr.mxu0 0.0
  %1883 = vmatpush2.msra.mxu0 0.0
  %1884 = vmatprep.subr.mxu0 0.0
  %1885 = vmatpush2.msra.mxu0 0.0
  %1886 = vmatprep.subr.mxu0 0.0
  %1887 = vmatpush2.msra.mxu0 0.0
  %1888 = vmatprep.subr.mxu0 0.0
  %1889 = vmatpush2.msra.mxu0 0.0
  %1890 = vmatprep.subr.mxu0 0.0
  %1891 = vmatpush2.msra.mxu0 0.0
  %1892 = vmatprep.subr.mxu0 0.0
  %1893 = vmatpush2.msra.mxu0 0.0
  %1894 = vmatprep.mubr.f32.mxu0 0.0
  %1895 = vmatmul.mubr.f32.gmra.mxu0 %v1828
  %v1896 = vpop.f32.mrf.mxu0
  %v1897 = vadd.f32 0.0, %v1896
  %v1898 = vpop.f32.mrf.mxu0
  %1899 = vdwg.mxu0
  %v1900 = vadd.f32 %v1821, %v1897
  %v1901 = vxor.u32 %v1900, 2147483648
  %v1902 = vmul.f32 %v1901, 1.442695
  %v1903 = vpow.pop %v1902
  %v1904 = vadd.f32 %v1903, 1.0
  %v1905 = vrcp.pop %v1904
  %v1906 = vmul.f32 1.0, %v1905
  %v1907 = vmul.f32 %v1906, 2.0
  %v1908 = vsub.f32 %v1907, 1.0
  %v1909 = vld [vmem:[#allocation6] sm:$0xff]
  %1911 = vrot.lane.b32.xlu0 %v1909, 32
  %v1912 = vpop.permute.xlu0 %1911
  %v1914 = vmul.f32 %v1906, %v1912
  %1916 = vrot.lane.b32.xlu0 %v1908, 64
  %v1917 = vpop.permute.xlu0 %1916
  %v1919 = vmul.f32 %v1906, %v1917
  %1921 = vrot.lane.b32.xlu0 %v1919, 32
  %v1922 = vpop.permute.xlu0 %1921
  %v1924 = vadd.f32 %v1914, %v1922
  %v1925 = vtanh.pop %v1924
  %1927 = vrot.lane.b32.xlu0 %v1925, 64
  %v1928 = vpop.permute.xlu0 %1927
  %v1930 = vmul.f32 %v1906, %v1928
  %1932 = vrot.lane.b32.xlu0 %v1924, 96
  %v1933 = vpop.permute.xlu0 %1932
  %1935 = vst.msk [vmem:[#allocation6] sm:$0xff] %vm196, %v1933
  %1937 = vrot.lane.b32.xlu0 %v1930, 32
  %v1938 = vpop.permute.xlu0 %1937
  %1940 = vst.msk [vmem:[#allocation5] sm:$0xff] %vm196, %v1938
  %v1941 = vld [vmem:[%s812] sm:$0xff]
  %v1942 = vld [vmem:[#allocation5] sm:$0xff]
  %v1943 = vld [vmem:[%s5] sm:$0xff]
  %v1944 = vld [vmem:[%s5 + $0x8] sm:$0xff]
  %v1945 = vld [vmem:[%s5 + $0x10] sm:$0xff]
  %v1946 = vld [vmem:[%s5 + $0x18] sm:$0xff]
  %v1948 = vsel %vm196, %v1942, 0
  %1950 = vmatprep.subr.mxu0 0.0
  %1951 = vmatpush1.msra.mxu0 0.0
  %1952 = vmatprep.subr.mxu0 0.0
  %1953 = vmatpush1.msra.mxu0 0.0
  %1954 = vmatprep.subr.mxu0 0.0
  %1955 = vmatpush1.msra.mxu0 0.0
  %1956 = vmatprep.subr.mxu0 0.0
  %1957 = vmatpush1.msra.mxu0 0.0
  %1958 = vmatprep.subr.mxu0 0.0
  %1959 = vmatpush1.msra.mxu0 0.0
  %1960 = vmatprep.subr.mxu0 0.0
  %1961 = vmatpush1.msra.mxu0 0.0
  %1962 = vmatprep.subr.mxu0 0.0
  %1963 = vmatpush1.msra.mxu0 0.0
  %1964 = vmatprep.subr.mxu0 0.0
  %1965 = vmatpush1.msra.mxu0 0.0
  %1966 = vmatprep.subr.mxu0 0.0
  %1967 = vmatpush1.msra.mxu0 0.0
  %1968 = vmatprep.subr.mxu0 0.0
  %1969 = vmatpush1.msra.mxu0 0.0
  %1970 = vmatprep.subr.mxu0 0.0
  %1971 = vmatpush1.msra.mxu0 0.0
  %1972 = vmatprep.subr.mxu0 0.0
  %1973 = vmatpush1.msra.mxu0 0.0
  %1974 = vmatprep.subr.mxu0 0.0
  %1975 = vmatpush1.msra.mxu0 %v1946
  %1976 = vmatprep.subr.mxu0 0.0
  %1977 = vmatpush1.msra.mxu0 %v1945
  %1978 = vmatprep.subr.mxu0 0.0
  %1979 = vmatpush1.msra.mxu0 %v1944
  %1980 = vmatprep.subr.mxu0 0.0
  %1981 = vmatpush1.msra.mxu0 %v1943
  %1982 = vmatprep.subr.mxu0 0.0
  %1983 = vmatpush2.msra.mxu0 0.0
  %1984 = vmatprep.subr.mxu0 0.0
  %1985 = vmatpush2.msra.mxu0 0.0
  %1986 = vmatprep.subr.mxu0 0.0
  %1987 = vmatpush2.msra.mxu0 0.0
  %1988 = vmatprep.subr.mxu0 0.0
  %1989 = vmatpush2.msra.mxu0 0.0
  %1990 = vmatprep.subr.mxu0 0.0
  %1991 = vmatpush2.msra.mxu0 0.0
  %1992 = vmatprep.subr.mxu0 0.0
  %1993 = vmatpush2.msra.mxu0 0.0
  %1994 = vmatprep.subr.mxu0 0.0
  %1995 = vmatpush2.msra.mxu0 0.0
  %1996 = vmatprep.subr.mxu0 0.0
  %1997 = vmatpush2.msra.mxu0 0.0
  %1998 = vmatprep.subr.mxu0 0.0
  %1999 = vmatpush2.msra.mxu0 0.0
  %2000 = vmatprep.subr.mxu0 0.0
  %2001 = vmatpush2.msra.mxu0 0.0
  %2002 = vmatprep.subr.mxu0 0.0
  %2003 = vmatpush2.msra.mxu0 0.0
  %2004 = vmatprep.subr.mxu0 0.0
  %2005 = vmatpush2.msra.mxu0 0.0
  %2006 = vmatprep.subr.mxu0 0.0
  %2007 = vmatpush2.msra.mxu0 0.0
  %2008 = vmatprep.subr.mxu0 0.0
  %2009 = vmatpush2.msra.mxu0 0.0
  %2010 = vmatprep.subr.mxu0 0.0
  %2011 = vmatpush2.msra.mxu0 0.0
  %2012 = vmatprep.subr.mxu0 0.0
  %2013 = vmatpush2.msra.mxu0 0.0
  %2014 = vmatprep.mubr.f32.mxu0 0.0
  %2015 = vmatmul.mubr.f32.gmra.mxu0 %v1948
  %v2016 = vpop.f32.mrf.mxu0
  %v2017 = vadd.f32 0.0, %v2016
  %v2018 = vpop.f32.mrf.mxu0
  %2019 = vdwg.mxu0
  %v2020 = vadd.f32 %v1941, %v2017
  %v2021 = vxor.u32 %v2020, 2147483648
  %v2022 = vmul.f32 %v2021, 1.442695
  %v2023 = vpow.pop %v2022
  %v2024 = vadd.f32 %v2023, 1.0
  %v2025 = vrcp.pop %v2024
  %v2026 = vmul.f32 1.0, %v2025
  %v2027 = vmul.f32 %v2026, 2.0
  %v2028 = vsub.f32 %v2027, 1.0
  %v2029 = vld [vmem:[#allocation6] sm:$0xff]
  %2031 = vrot.lane.b32.xlu0 %v2029, 32
  %v2032 = vpop.permute.xlu0 %2031
  %v2034 = vmul.f32 %v2026, %v2032
  %2036 = vrot.lane.b32.xlu0 %v2028, 64
  %v2037 = vpop.permute.xlu0 %2036
  %v2039 = vmul.f32 %v2026, %v2037
  %2041 = vrot.lane.b32.xlu0 %v2039, 32
  %v2042 = vpop.permute.xlu0 %2041
  %v2044 = vadd.f32 %v2034, %v2042
  %v2045 = vtanh.pop %v2044
  %2047 = vrot.lane.b32.xlu0 %v2045, 64
  %v2048 = vpop.permute.xlu0 %2047
  %v2050 = vmul.f32 %v2026, %v2048
  %2052 = vrot.lane.b32.xlu0 %v2044, 96
  %v2053 = vpop.permute.xlu0 %2052
  %2055 = vst.msk [vmem:[#allocation6] sm:$0xff] %vm196, %v2053
  %2057 = vrot.lane.b32.xlu0 %v2050, 32
  %v2058 = vpop.permute.xlu0 %2057
  %2060 = vst.msk [vmem:[#allocation5] sm:$0xff] %vm196, %v2058
  %v2061 = vld [vmem:[%s935] sm:$0xff]
  %v2062 = vld [vmem:[#allocation5] sm:$0xff]
  %v2063 = vld [vmem:[%s5] sm:$0xff]
  %v2064 = vld [vmem:[%s5 + $0x8] sm:$0xff]
  %v2065 = vld [vmem:[%s5 + $0x10] sm:$0xff]
  %v2066 = vld [vmem:[%s5 + $0x18] sm:$0xff]
  %v2068 = vsel %vm196, %v2062, 0
  %2070 = vmatprep.subr.mxu0 0.0
  %2071 = vmatpush1.msra.mxu0 0.0
  %2072 = vmatprep.subr.mxu0 0.0
  %2073 = vmatpush1.msra.mxu0 0.0
  %2074 = vmatprep.subr.mxu0 0.0
  %2075 = vmatpush1.msra.mxu0 0.0
  %2076 = vmatprep.subr.mxu0 0.0
  %2077 = vmatpush1.msra.mxu0 0.0
  %2078 = vmatprep.subr.mxu0 0.0
  %2079 = vmatpush1.msra.mxu0 0.0
  %2080 = vmatprep.subr.mxu0 0.0
  %2081 = vmatpush1.msra.mxu0 0.0
  %2082 = vmatprep.subr.mxu0 0.0
  %2083 = vmatpush1.msra.mxu0 0.0
  %2084 = vmatprep.subr.mxu0 0.0
  %2085 = vmatpush1.msra.mxu0 0.0
  %2086 = vmatprep.subr.mxu0 0.0
  %2087 = vmatpush1.msra.mxu0 0.0
  %2088 = vmatprep.subr.mxu0 0.0
  %2089 = vmatpush1.msra.mxu0 0.0
  %2090 = vmatprep.subr.mxu0 0.0
  %2091 = vmatpush1.msra.mxu0 0.0
  %2092 = vmatprep.subr.mxu0 0.0
  %2093 = vmatpush1.msra.mxu0 0.0
  %2094 = vmatprep.subr.mxu0 0.0
  %2095 = vmatpush1.msra.mxu0 %v2066
  %2096 = vmatprep.subr.mxu0 0.0
  %2097 = vmatpush1.msra.mxu0 %v2065
  %2098 = vmatprep.subr.mxu0 0.0
  %2099 = vmatpush1.msra.mxu0 %v2064
  %2100 = vmatprep.subr.mxu0 0.0
  %2101 = vmatpush1.msra.mxu0 %v2063
  %2102 = vmatprep.subr.mxu0 0.0
  %2103 = vmatpush2.msra.mxu0 0.0
  %2104 = vmatprep.subr.mxu0 0.0
  %2105 = vmatpush2.msra.mxu0 0.0
  %2106 = vmatprep.subr.mxu0 0.0
  %2107 = vmatpush2.msra.mxu0 0.0
  %2108 = vmatprep.subr.mxu0 0.0
  %2109 = vmatpush2.msra.mxu0 0.0
  %2110 = vmatprep.subr.mxu0 0.0
  %2111 = vmatpush2.msra.mxu0 0.0
  %2112 = vmatprep.subr.mxu0 0.0
  %2113 = vmatpush2.msra.mxu0 0.0
  %2114 = vmatprep.subr.mxu0 0.0
  %2115 = vmatpush2.msra.mxu0 0.0
  %2116 = vmatprep.subr.mxu0 0.0
  %2117 = vmatpush2.msra.mxu0 0.0
  %2118 = vmatprep.subr.mxu0 0.0
  %2119 = vmatpush2.msra.mxu0 0.0
  %2120 = vmatprep.subr.mxu0 0.0
  %2121 = vmatpush2.msra.mxu0 0.0
  %2122 = vmatprep.subr.mxu0 0.0
  %2123 = vmatpush2.msra.mxu0 0.0
  %2124 = vmatprep.subr.mxu0 0.0
  %2125 = vmatpush2.msra.mxu0 0.0
  %2126 = vmatprep.subr.mxu0 0.0
  %2127 = vmatpush2.msra.mxu0 0.0
  %2128 = vmatprep.subr.mxu0 0.0
  %2129 = vmatpush2.msra.mxu0 0.0
  %2130 = vmatprep.subr.mxu0 0.0
  %2131 = vmatpush2.msra.mxu0 0.0
  %2132 = vmatprep.subr.mxu0 0.0
  %2133 = vmatpush2.msra.mxu0 0.0
  %2134 = vmatprep.mubr.f32.mxu0 0.0
  %2135 = vmatmul.mubr.f32.gmra.mxu0 %v2068
  %v2136 = vpop.f32.mrf.mxu0
  %v2137 = vadd.f32 0.0, %v2136
  %v2138 = vpop.f32.mrf.mxu0
  %2139 = vdwg.mxu0
  %v2140 = vadd.f32 %v2061, %v2137
  %v2141 = vxor.u32 %v2140, 2147483648
  %v2142 = vmul.f32 %v2141, 1.442695
  %v2143 = vpow.pop %v2142
  %v2144 = vadd.f32 %v2143, 1.0
  %v2145 = vrcp.pop %v2144
  %v2146 = vmul.f32 1.0, %v2145
  %v2147 = vmul.f32 %v2146, 2.0
  %v2148 = vsub.f32 %v2147, 1.0
  %v2149 = vld [vmem:[#allocation6] sm:$0xff]
  %2151 = vrot.lane.b32.xlu0 %v2149, 32
  %v2152 = vpop.permute.xlu0 %2151
  %v2154 = vmul.f32 %v2146, %v2152
  %2156 = vrot.lane.b32.xlu0 %v2148, 64
  %v2157 = vpop.permute.xlu0 %2156
  %v2159 = vmul.f32 %v2146, %v2157
  %2161 = vrot.lane.b32.xlu0 %v2159, 32
  %v2162 = vpop.permute.xlu0 %2161
  %v2164 = vadd.f32 %v2154, %v2162
  %v2165 = vtanh.pop %v2164
  %2167 = vrot.lane.b32.xlu0 %v2165, 64
  %v2168 = vpop.permute.xlu0 %2167
  %v2170 = vmul.f32 %v2146, %v2168
  %2172 = vrot.lane.b32.xlu0 %v2164, 96
  %v2173 = vpop.permute.xlu0 %2172
  %2175 = vst.msk [vmem:[#allocation6] sm:$0xff] %vm196, %v2173
  %2177 = vrot.lane.b32.xlu0 %v2170, 32
  %v2178 = vpop.permute.xlu0 %2177
  %2180 = vst.msk [vmem:[#allocation5] sm:$0xff] %vm196, %v2178
  %v2181 = vld [vmem:[%s1058] sm:$0xff]
  %v2182 = vld [vmem:[#allocation5] sm:$0xff]
  %v2183 = vld [vmem:[%s5] sm:$0xff]
  %v2184 = vld [vmem:[%s5 + $0x8] sm:$0xff]
  %v2185 = vld [vmem:[%s5 + $0x10] sm:$0xff]
  %v2186 = vld [vmem:[%s5 + $0x18] sm:$0xff]
  %v2188 = vsel %vm196, %v2182, 0
  %2190 = vmatprep.subr.mxu0 0.0
  %2191 = vmatpush1.msra.mxu0 0.0
  %2192 = vmatprep.subr.mxu0 0.0
  %2193 = vmatpush1.msra.mxu0 0.0
  %2194 = vmatprep.subr.mxu0 0.0
  %2195 = vmatpush1.msra.mxu0 0.0
  %2196 = vmatprep.subr.mxu0 0.0
  %2197 = vmatpush1.msra.mxu0 0.0
  %2198 = vmatprep.subr.mxu0 0.0
  %2199 = vmatpush1.msra.mxu0 0.0
  %2200 = vmatprep.subr.mxu0 0.0
  %2201 = vmatpush1.msra.mxu0 0.0
  %2202 = vmatprep.subr.mxu0 0.0
  %2203 = vmatpush1.msra.mxu0 0.0
  %2204 = vmatprep.subr.mxu0 0.0
  %2205 = vmatpush1.msra.mxu0 0.0
  %2206 = vmatprep.subr.mxu0 0.0
  %2207 = vmatpush1.msra.mxu0 0.0
  %2208 = vmatprep.subr.mxu0 0.0
  %2209 = vmatpush1.msra.mxu0 0.0
  %2210 = vmatprep.subr.mxu0 0.0
  %2211 = vmatpush1.msra.mxu0 0.0
  %2212 = vmatprep.subr.mxu0 0.0
  %2213 = vmatpush1.msra.mxu0 0.0
  %2214 = vmatprep.subr.mxu0 0.0
  %2215 = vmatpush1.msra.mxu0 %v2186
  %2216 = vmatprep.subr.mxu0 0.0
  %2217 = vmatpush1.msra.mxu0 %v2185
  %2218 = vmatprep.subr.mxu0 0.0
  %2219 = vmatpush1.msra.mxu0 %v2184
  %2220 = vmatprep.subr.mxu0 0.0
  %2221 = vmatpush1.msra.mxu0 %v2183
  %2222 = vmatprep.subr.mxu0 0.0
  %2223 = vmatpush2.msra.mxu0 0.0
  %2224 = vmatprep.subr.mxu0 0.0
  %2225 = vmatpush2.msra.mxu0 0.0
  %2226 = vmatprep.subr.mxu0 0.0
  %2227 = vmatpush2.msra.mxu0 0.0
  %2228 = vmatprep.subr.mxu0 0.0
  %2229 = vmatpush2.msra.mxu0 0.0
  %2230 = vmatprep.subr.mxu0 0.0
  %2231 = vmatpush2.msra.mxu0 0.0
  %2232 = vmatprep.subr.mxu0 0.0
  %2233 = vmatpush2.msra.mxu0 0.0
  %2234 = vmatprep.subr.mxu0 0.0
  %2235 = vmatpush2.msra.mxu0 0.0
  %2236 = vmatprep.subr.mxu0 0.0
  %2237 = vmatpush2.msra.mxu0 0.0
  %2238 = vmatprep.subr.mxu0 0.0
  %2239 = vmatpush2.msra.mxu0 0.0
  %2240 = vmatprep.subr.mxu0 0.0
  %2241 = vmatpush2.msra.mxu0 0.0
  %2242 = vmatprep.subr.mxu0 0.0
  %2243 = vmatpush2.msra.mxu0 0.0
  %2244 = vmatprep.subr.mxu0 0.0
  %2245 = vmatpush2.msra.mxu0 0.0
  %2246 = vmatprep.subr.mxu0 0.0
  %2247 = vmatpush2.msra.mxu0 0.0
  %2248 = vmatprep.subr.mxu0 0.0
  %2249 = vmatpush2.msra.mxu0 0.0
  %2250 = vmatprep.subr.mxu0 0.0
  %2251 = vmatpush2.msra.mxu0 0.0
  %2252 = vmatprep.subr.mxu0 0.0
  %2253 = vmatpush2.msra.mxu0 0.0
  %2254 = vmatprep.mubr.f32.mxu0 0.0
  %2255 = vmatmul.mubr.f32.gmra.mxu0 %v2188
  %v2256 = vpop.f32.mrf.mxu0
  %v2257 = vadd.f32 0.0, %v2256
  %v2258 = vpop.f32.mrf.mxu0
  %2259 = vdwg.mxu0
  %v2260 = vadd.f32 %v2181, %v2257
  %v2261 = vxor.u32 %v2260, 2147483648
  %v2262 = vmul.f32 %v2261, 1.442695
  %v2263 = vpow.pop %v2262
  %v2264 = vadd.f32 %v2263, 1.0
  %v2265 = vrcp.pop %v2264
  %v2266 = vmul.f32 1.0, %v2265
  %v2267 = vmul.f32 %v2266, 2.0
  %v2268 = vsub.f32 %v2267, 1.0
  %v2269 = vld [vmem:[#allocation6] sm:$0xff]
  %2271 = vrot.lane.b32.xlu0 %v2269, 32
  %v2272 = vpop.permute.xlu0 %2271
  %v2274 = vmul.f32 %v2266, %v2272
  %2276 = vrot.lane.b32.xlu0 %v2268, 64
  %v2277 = vpop.permute.xlu0 %2276
  %v2279 = vmul.f32 %v2266, %v2277
  %2281 = vrot.lane.b32.xlu0 %v2279, 32
  %v2282 = vpop.permute.xlu0 %2281
  %v2284 = vadd.f32 %v2274, %v2282
  %v2285 = vtanh.pop %v2284
  %2287 = vrot.lane.b32.xlu0 %v2285, 64
  %v2288 = vpop.permute.xlu0 %2287
  %v2290 = vmul.f32 %v2266, %v2288
  %2292 = vrot.lane.b32.xlu0 %v2284, 96
  %v2293 = vpop.permute.xlu0 %2292
  %2295 = vst.msk [vmem:[#allocation6] sm:$0xff] %vm196, %v2293
  %2297 = vrot.lane.b32.xlu0 %v2290, 32
  %v2298 = vpop.permute.xlu0 %2297
  %2300 = vst.msk [vmem:[#allocation5] sm:$0xff] %vm196, %v2298
  %v2301 = vld [vmem:[#allocation5] sm:$0xff]
  %2302 = vst.msk [vmem:[#allocation4 + $0x8] sm:$0xff] %vm196, %v2301
  %v2303 = vld [vmem:[#allocation4] sm:$0xff]
  %v2304 = vld [vmem:[#allocation4 + $0x8] sm:$0xff]
  %v2305 = vmax.f32 %v2303, 0.0
  %v2306 = vmax.f32 %v2304, 0.0
  %v2307 = vld [vmem:[%s7] sm:$0xff]
  %v2308 = vld [vmem:[%s7 + $0x8] sm:$0xff]
  %v2309 = vld [vmem:[%s7 + $0x10] sm:$0xff]
  %v2310 = vld [vmem:[%s7 + $0x18] sm:$0xff]
  %v2311 = vld [vmem:[%s7 + $0x20] sm:$0xff]
  %v2312 = vld [vmem:[%s7 + $0x28] sm:$0xff]
  %v2313 = vld [vmem:[%s7 + $0x30] sm:$0xff]
  %v2314 = vld [vmem:[%s7 + $0x38] sm:$0xff]
  %v2315 = vld [vmem:[%s8] sm:$0x3]
  %v2317 = vlaneseq
  %v2318 = vshrl.u32 %v2317, 7
  %v2319 = vsub.s32 0, %v2318
  %v2320 = vrot.slane %v2315, %v2319
  %v2321 = vlaneseq
  %v2322 = vshrl.u32 %v2321, 7
  %v2323 = vsub.s32 1, %v2322
  %v2324 = vrot.slane %v2315, %v2323
  %v2328 = vsel %vm196, %v2305, 0
  %v2331 = vsel %vm196, %v2306, 0
  %2333 = vmatprep.subr.mxu0 0.0
  %2334 = vmatpush1.msra.mxu0 0.0
  %2335 = vmatprep.subr.mxu0 0.0
  %2336 = vmatpush1.msra.mxu0 0.0
  %2337 = vmatprep.subr.mxu0 0.0
  %2338 = vmatpush1.msra.mxu0 0.0
  %2339 = vmatprep.subr.mxu0 0.0
  %2340 = vmatpush1.msra.mxu0 0.0
  %2341 = vmatprep.subr.mxu0 0.0
  %2342 = vmatpush1.msra.mxu0 0.0
  %2343 = vmatprep.subr.mxu0 0.0
  %2344 = vmatpush1.msra.mxu0 0.0
  %2345 = vmatprep.subr.mxu0 0.0
  %2346 = vmatpush1.msra.mxu0 0.0
  %2347 = vmatprep.subr.mxu0 0.0
  %2348 = vmatpush1.msra.mxu0 0.0
  %2349 = vmatprep.subr.mxu0 0.0
  %2350 = vmatpush1.msra.mxu0 0.0
  %2351 = vmatprep.subr.mxu0 0.0
  %2352 = vmatpush1.msra.mxu0 0.0
  %2353 = vmatprep.subr.mxu0 0.0
  %2354 = vmatpush1.msra.mxu0 0.0
  %2355 = vmatprep.subr.mxu0 0.0
  %2356 = vmatpush1.msra.mxu0 0.0
  %2357 = vmatprep.subr.mxu0 %v2314
  %2358 = vmatpush1.msra.mxu0 %v2313
  %2359 = vmatprep.subr.mxu0 %v2312
  %2360 = vmatpush1.msra.mxu0 %v2311
  %2361 = vmatprep.subr.mxu0 %v2310
  %2362 = vmatpush1.msra.mxu0 %v2309
  %2363 = vmatprep.subr.mxu0 %v2308
  %2364 = vmatpush1.msra.mxu0 %v2307
  %2365 = vmatprep.subr.mxu0 0.0
  %2366 = vmatpush2.msra.mxu0 0.0
  %2367 = vmatprep.subr.mxu0 0.0
  %2368 = vmatpush2.msra.mxu0 0.0
  %2369 = vmatprep.subr.mxu0 0.0
  %2370 = vmatpush2.msra.mxu0 0.0
  %2371 = vmatprep.subr.mxu0 0.0
  %2372 = vmatpush2.msra.mxu0 0.0
  %2373 = vmatprep.subr.mxu0 0.0
  %2374 = vmatpush2.msra.mxu0 0.0
  %2375 = vmatprep.subr.mxu0 0.0
  %2376 = vmatpush2.msra.mxu0 0.0
  %2377 = vmatprep.subr.mxu0 0.0
  %2378 = vmatpush2.msra.mxu0 0.0
  %2379 = vmatprep.subr.mxu0 0.0
  %2380 = vmatpush2.msra.mxu0 0.0
  %2381 = vmatprep.subr.mxu0 0.0
  %2382 = vmatpush2.msra.mxu0 0.0
  %2383 = vmatprep.subr.mxu0 0.0
  %2384 = vmatpush2.msra.mxu0 0.0
  %2385 = vmatprep.subr.mxu0 0.0
  %2386 = vmatpush2.msra.mxu0 0.0
  %2387 = vmatprep.subr.mxu0 0.0
  %2388 = vmatpush2.msra.mxu0 0.0
  %2389 = vmatprep.subr.mxu0 0.0
  %2390 = vmatpush2.msra.mxu0 0.0
  %2391 = vmatprep.subr.mxu0 0.0
  %2392 = vmatpush2.msra.mxu0 0.0
  %2393 = vmatprep.subr.mxu0 0.0
  %2394 = vmatpush2.msra.mxu0 0.0
  %2395 = vmatprep.subr.mxu0 0.0
  %2396 = vmatpush2.msra.mxu0 0.0
  %2397 = vmatprep.mubr.f32.mxu0 0.0
  %2398 = vmatmul.mubr.f32.gmra.mxu0 %v2328
  %v2399 = vpop.f32.mrf.mxu0
  %v2400 = vadd.f32 %v2320, %v2399
  %v2401 = vpop.f32.mrf.mxu0
  %v2402 = vadd.f32 %v2324, %v2401
  %2403 = vmatprep.mubr.f32.mxu0 0.0
  %2404 = vmatmul.mubr.f32.gmra.mxu0 %v2331
  %v2405 = vpop.f32.mrf.mxu0
  %v2406 = vadd.f32 %v2320, %v2405
  %v2407 = vpop.f32.mrf.mxu0
  %v2408 = vadd.f32 %v2324, %v2407
  %2409 = vdwg.mxu0
  %v2410 = vmax.f32 %v2400, 0.0
  %v2411 = vmax.f32 %v2402, 0.0
  %v2412 = vmax.f32 %v2406, 0.0
  %v2413 = vmax.f32 %v2408, 0.0
  %v2414 = vld [vmem:[%s9] sm:$0xff]
  %v2415 = vld [vmem:[%s9 + $0x8] sm:$0xff]
  %v2416 = vld [vmem:[%s9 + $0x10] sm:$0xff]
  %v2417 = vld [vmem:[%s9 + $0x18] sm:$0xff]
  %v2418 = vld [vmem:[%s9 + $0x20] sm:$0xff]
  %v2419 = vld [vmem:[%s9 + $0x28] sm:$0xff]
  %v2420 = vld [vmem:[%s9 + $0x30] sm:$0xff]
  %v2421 = vld [vmem:[%s9 + $0x38] sm:$0xff]
  %v2422 = vld [vmem:[%s9 + $0x40] sm:$0xff]
  %v2423 = vld [vmem:[%s9 + $0x48] sm:$0xff]
  %v2424 = vld [vmem:[%s9 + $0x50] sm:$0xff]
  %v2425 = vld [vmem:[%s9 + $0x58] sm:$0xff]
  %v2426 = vld [vmem:[%s9 + $0x60] sm:$0xff]
  %v2427 = vld [vmem:[%s9 + $0x68] sm:$0xff]
  %v2428 = vld [vmem:[%s9 + $0x70] sm:$0xff]
  %v2429 = vld [vmem:[%s9 + $0x78] sm:$0xff]
  %v2430 = vld [vmem:[%s9 + $0x80] sm:$0xff]
  %v2431 = vld [vmem:[%s9 + $0x88] sm:$0xff]
  %v2432 = vld [vmem:[%s9 + $0x90] sm:$0xff]
  %v2433 = vld [vmem:[%s9 + $0x98] sm:$0xff]
  %v2434 = vld [vmem:[%s9 + $0xa0] sm:$0xff]
  %v2435 = vld [vmem:[%s9 + $0xa8] sm:$0xff]
  %v2436 = vld [vmem:[%s9 + $0xb0] sm:$0xff]
  %v2437 = vld [vmem:[%s9 + $0xb8] sm:$0xff]
  %v2438 = vld [vmem:[%s9 + $0xc0] sm:$0xff]
  %v2439 = vld [vmem:[%s9 + $0xc8] sm:$0xff]
  %v2440 = vld [vmem:[%s9 + $0xd0] sm:$0xff]
  %v2441 = vld [vmem:[%s9 + $0xd8] sm:$0xff]
  %v2442 = vld [vmem:[%s9 + $0xe0] sm:$0xff]
  %v2443 = vld [vmem:[%s9 + $0xe8] sm:$0xff]
  %v2444 = vld [vmem:[%s9 + $0xf0] sm:$0xff]
  %v2445 = vld [vmem:[%s9 + $0xf8] sm:$0xff]
  %v2446 = vld [vmem:[%s10] sm:$0x1]
  %v2448 = vlaneseq
  %v2449 = vshrl.u32 %v2448, 7
  %v2450 = vsub.s32 0, %v2449
  %v2451 = vrot.slane %v2446, %v2450
  %2453 = vmatprep.subr.mxu0 0.0
  %2454 = vmatpush1.msra.mxu0 %v2429
  %2455 = vmatprep.subr.mxu0 0.0
  %2456 = vmatpush1.msra.mxu0 %v2428
  %2457 = vmatprep.subr.mxu0 0.0
  %2458 = vmatpush1.msra.mxu0 %v2427
  %2459 = vmatprep.subr.mxu0 0.0
  %2460 = vmatpush1.msra.mxu0 %v2426
  %2461 = vmatprep.subr.mxu0 0.0
  %2462 = vmatpush1.msra.mxu0 %v2425
  %2463 = vmatprep.subr.mxu0 0.0
  %2464 = vmatpush1.msra.mxu0 %v2424
  %2465 = vmatprep.subr.mxu0 0.0
  %2466 = vmatpush1.msra.mxu0 %v2423
  %2467 = vmatprep.subr.mxu0 0.0
  %2468 = vmatpush1.msra.mxu0 %v2422
  %2469 = vmatprep.subr.mxu0 0.0
  %2470 = vmatpush1.msra.mxu0 %v2421
  %2471 = vmatprep.subr.mxu0 0.0
  %2472 = vmatpush1.msra.mxu0 %v2420
  %2473 = vmatprep.subr.mxu0 0.0
  %2474 = vmatpush1.msra.mxu0 %v2419
  %2475 = vmatprep.subr.mxu0 0.0
  %2476 = vmatpush1.msra.mxu0 %v2418
  %2477 = vmatprep.subr.mxu0 0.0
  %2478 = vmatpush1.msra.mxu0 %v2417
  %2479 = vmatprep.subr.mxu0 0.0
  %2480 = vmatpush1.msra.mxu0 %v2416
  %2481 = vmatprep.subr.mxu0 0.0
  %2482 = vmatpush1.msra.mxu0 %v2415
  %2483 = vmatprep.subr.mxu0 0.0
  %2484 = vmatpush1.msra.mxu0 %v2414
  %2485 = vmatprep.subr.mxu0 0.0
  %2486 = vmatpush2.msra.mxu0 %v2445
  %2487 = vmatprep.subr.mxu0 0.0
  %2488 = vmatpush2.msra.mxu0 %v2444
  %2489 = vmatprep.subr.mxu0 0.0
  %2490 = vmatpush2.msra.mxu0 %v2443
  %2491 = vmatprep.subr.mxu0 0.0
  %2492 = vmatpush2.msra.mxu0 %v2442
  %2493 = vmatprep.subr.mxu0 0.0
  %2494 = vmatpush2.msra.mxu0 %v2441
  %2495 = vmatprep.subr.mxu0 0.0
  %2496 = vmatpush2.msra.mxu0 %v2440
  %2497 = vmatprep.subr.mxu0 0.0
  %2498 = vmatpush2.msra.mxu0 %v2439
  %2499 = vmatprep.subr.mxu0 0.0
  %2500 = vmatpush2.msra.mxu0 %v2438
  %2501 = vmatprep.subr.mxu0 0.0
  %2502 = vmatpush2.msra.mxu0 %v2437
  %2503 = vmatprep.subr.mxu0 0.0
  %2504 = vmatpush2.msra.mxu0 %v2436
  %2505 = vmatprep.subr.mxu0 0.0
  %2506 = vmatpush2.msra.mxu0 %v2435
  %2507 = vmatprep.subr.mxu0 0.0
  %2508 = vmatpush2.msra.mxu0 %v2434
  %2509 = vmatprep.subr.mxu0 0.0
  %2510 = vmatpush2.msra.mxu0 %v2433
  %2511 = vmatprep.subr.mxu0 0.0
  %2512 = vmatpush2.msra.mxu0 %v2432
  %2513 = vmatprep.subr.mxu0 0.0
  %2514 = vmatpush2.msra.mxu0 %v2431
  %2515 = vmatprep.subr.mxu0 0.0
  %2516 = vmatpush2.msra.mxu0 %v2430
  %2517 = vmatprep.mubr.f32.mxu0 %v2411
  %2518 = vmatmul.mubr.f32.gmra.mxu0 %v2410
  %v2519 = vpop.f32.mrf.mxu0
  %v2520 = vadd.f32 %v2451, %v2519
  %v2521 = vpop.f32.mrf.mxu0
  %2522 = vmatprep.mubr.f32.mxu0 %v2413
  %2523 = vmatmul.mubr.f32.gmra.mxu0 %v2412
  %v2524 = vpop.f32.mrf.mxu0
  %v2525 = vadd.f32 %v2451, %v2524
  %v2526 = vpop.f32.mrf.mxu0
  %2527 = vdwg.mxu0
  %2528 = vst [vmem:[%s11] sm:$0xff] %v2520
  %2529 = vst [vmem:[%s11 + $0x8] sm:$0xff] %v2525
  // Predicated region
  $region46: #{lstm_model_forward.1} parent=0 // pred_check
    _
  $region47: #{lstm_model_forward.1} parent=0 // pred_check_branch
    %2531 = sbr.rel (0) target = $region49
  $region48: #{lstm_model_forward.1} parent=0 // pred_region
    _
  $region49: #{lstm_model_forward.1} parent=0 // pred_fallthru
    _
  // Predicated region
  $region50: #{lstm_model_forward.1} parent=0 // pred_check
    _
  $region51: #{lstm_model_forward.1} parent=0 // pred_check_branch
    %2533 = sbr.rel (0) target = $region53
  $region52: #{lstm_model_forward.1} parent=0 // pred_region
    _
  $region53: #{lstm_model_forward.1} parent=0 // pred_fallthru
    _

</llo_original>
